<compile_context>
chip_gen: v5e
topology: v5e:2x2
jax: 0.10.0
libtpu: 0.0.40
codegen_flags: <defaults>
</compile_context>

<pallas_src>
import jax
import jax.numpy as jnp
from jax import lax
from jax.experimental import pallas as pl
from jax.experimental.pallas import tpu as pltpu

# ----- Hyperparameters (from LSTNet.__init__) ---------------------------------
M = 38          # self.m
HID_C = 100     # self.hidC
HID_S = 50      # self.hidS
CK = 3          # self.Ck
SKIP = 20       # self.skip
HW = 20         # self.hw
P = 24          # args.lookback (>= Ck + skip so pt >= 1)
HID_R = 32      # args.gru_hid_dim
B = 1           # batch; the PyTorch residual add only broadcasts for B == 1

T_CONV = P - CK + 1            # conv output length (22)
PT = (P - CK) // SKIP          # self.pt (1)
SKIP_T = PT * SKIP             # conv rows consumed by the skip GRU (20)

VMEM = pltpu.MemorySpace.VMEM


# ----- Fused kernel ------------------------------------------------------------
def _gru_step(gx, h, w_hh, b_hh, H):
    """One GRU step. gx already contains x @ W_ih^T + b_ih for all 3 gates."""
    gh = jnp.dot(h, w_hh, preferred_element_type=jnp.float32) + b_hh
    r = jax.nn.sigmoid(gx[:, :H] + gh[:, :H])
    z = jax.nn.sigmoid(gx[:, H:2 * H] + gh[:, H:2 * H])
    n = jnp.tanh(gx[:, 2 * H:] + r * gh[:, 2 * H:])
    return (1.0 - z) * n + z * h


def lstnet_kernel(x_ref, zhw_ref,
                  convw_ref, convb_ref,
                  w_ih1_ref, w_hh1_ref, b_ih1_ref, b_hh1_ref,
                  w_ihs_ref, w_hhs_ref, b_ihs_ref, b_hhs_ref,
                  w1r_ref, w1s_ref, b1_ref, whw2_ref, bhw2_ref,
                  o_ref,
                  gx1_ref, gxs_ref):
    # --- Conv1d (3 taps accumulated on the MXU) + bias + ReLU -----------------
    x = x_ref[0]                                                   # (P, M)
    c = jnp.dot(x[0:T_CONV, :], convw_ref[0],
                preferred_element_type=jnp.float32)
    for k in range(1, CK):                                         # static unroll
        c = c + jnp.dot(x[k:k + T_CONV, :], convw_ref[k],
                        preferred_element_type=jnp.float32)
    c = jnp.maximum(c + convb_ref[...], 0.0)                       # (T_CONV, HID_C)
    # TODO(synk): nn.Dropout treated as identity (inference mode).

    # --- Precompute all input->gate projections (one matmul per GRU), park in
    #     VMEM scratch and index per step (no dynamic slicing of vreg values).
    gx1_ref[...] = (jnp.dot(c, w_ih1_ref[...],
                            preferred_element_type=jnp.float32)
                    + b_ih1_ref[...])                              # (T_CONV, 3*HID_R)
    gxs_ref[...] = (jnp.dot(c[T_CONV - SKIP_T:, :], w_ihs_ref[...],
                            preferred_element_type=jnp.float32)
                    + b_ihs_ref[...])                              # (SKIP_T, 3*HID_S)

    # --- Skip GRU: PT step(s), "batch" = SKIP rows, h0 = 0 (independent of GRU1,
    #     so the scheduler can hide it inside GRU1's serial-latency bubbles). ---
    def skip_body(p, h):
        gx = gxs_ref[pl.ds(p * SKIP, SKIP), :]                     # (SKIP, 3*HID_S)
        return _gru_step(gx, h, w_hhs_ref[...], b_hhs_ref[...], HID_S)

    h_s = lax.fori_loop(0, PT, skip_body,
                        jnp.zeros((SKIP, HID_S), jnp.float32), unroll=True)

    # --- GRU1: T_CONV serial steps, batch 1, h0 = 0, fully unrolled -----------
    def gru1_body(t, h):
        gx = gx1_ref[pl.ds(t, 1), :]                               # (1, 3*HID_R)
        return _gru_step(gx, h, w_hh1_ref[...], b_hh1_ref[...], HID_R)

    h_r = lax.fori_loop(0, T_CONV, gru1_body,
                        jnp.zeros((1, HID_R), jnp.float32), unroll=True)

    # --- linear1: r part + s part + bias  -> (1, 38) ---------------------------
    res = jnp.dot(h_r, w1r_ref[...],
                  preferred_element_type=jnp.float32) + b1_ref[...]
    # s contribution: sum_i h_s[i, :] @ W1s_block[i]; avoids an in-kernel
    # (SKIP, HID_S) -> (1, SKIP*HID_S) reshape across lanes.
    for i in range(SKIP):                                          # static unroll
        res = res + jnp.dot(h_s[i:i + 1, :], w1s_ref[i],
                            preferred_element_type=jnp.float32)

    # --- highway + linear2 (algebraically folded host-side) + residual add ----
    z = (jnp.dot(zhw_ref[...], whw2_ref[...],
                 preferred_element_type=jnp.float32) + bhw2_ref[...])  # (B*M, 38)
    o_ref[...] = res + z                                            # broadcast, B == 1


# ----- One-time weight preprocessing (outside the jitted hot path) -------------
def prepare_params(p):
    return {
        # Conv1d weights, tap-major, transposed for (time, feat) x (feat, out).
        "conv_w": jnp.transpose(p["conv_w"], (2, 1, 0)),            # (CK, M, HID_C)
        "conv_b": p["conv_b"].reshape(1, HID_C),
        # GRU weights: PyTorch rows are [r; z; n]; transposing gives columns
        # ordered [r | z | n], so one matmul produces all three gates.
        "gru1_w_ih": p["gru1_w_ih"].T,                              # (HID_C, 3*HID_R)
        "gru1_w_hh": p["gru1_w_hh"].T,                              # (HID_R, 3*HID_R)
        "gru1_b_ih": p["gru1_b_ih"].reshape(1, 3 * HID_R),
        "gru1_b_hh": p["gru1_b_hh"].reshape(1, 3 * HID_R),
        "grus_w_ih": p["grus_w_ih"].T,                              # (HID_C, 3*HID_S)
        "grus_w_hh": p["grus_w_hh"].T,                              # (HID_S, 3*HID_S)
        "grus_b_ih": p["grus_b_ih"].reshape(1, 3 * HID_S),
        "grus_b_hh": p["grus_b_hh"].reshape(1, 3 * HID_S),
        # linear1 split into the r block and the skip block (as SKIP sub-blocks).
        "lin1_w_r": p["lin1_w"][:, :HID_R].T,                       # (HID_R, 38)
        "lin1_w_s": p["lin1_w"][:, HID_R:].T.reshape(SKIP, HID_S, 38),
        "lin1_b": p["lin1_b"].reshape(1, 38),
        # highway followed by linear2, folded:
        #   (z @ Ahw^T + bhw) @ A2^T + b2 = z @ (A2 @ Ahw)^T + (bhw @ A2^T + b2)
        "hw2_w": (p["lin2_w"] @ p["hw_w"]).T,                       # (HW, 38)
        "hw2_b": (p["hw_b"] @ p["lin2_w"].T + p["lin2_b"]).reshape(1, 38),
    }


# ----- Forward (single pallas_call) --------------------------------------------
def lstnet_forward(x, prep):
    assert B == 1 and x.shape == (B, P, M), x.shape
    # Highway input: last HW time steps, one row per series -> (B*M, HW).
    z_hw = jnp.transpose(x[:, P - HW:, :], (0, 2, 1)).reshape(B * M, HW)

    vspec = pl.BlockSpec(memory_space=VMEM)
    return pl.pallas_call(
        lstnet_kernel,
        out_shape=jax.ShapeDtypeStruct((B * M, 38), jnp.float32),
        in_specs=[vspec] * 17,
        out_specs=vspec,
        scratch_shapes=[
            pltpu.VMEM((T_CONV, 3 * HID_R), jnp.float32),           # GRU1 gates
            pltpu.VMEM((SKIP_T, 3 * HID_S), jnp.float32),           # skip-GRU gates
        ],
    )(x, z_hw,
      prep["conv_w"], prep["conv_b"],
      prep["gru1_w_ih"], prep["gru1_w_hh"], prep["gru1_b_ih"], prep["gru1_b_hh"],
      prep["grus_w_ih"], prep["grus_w_hh"], prep["grus_b_ih"], prep["grus_b_hh"],
      prep["lin1_w_r"], prep["lin1_w_s"], prep["lin1_b"],
      prep["hw2_w"], prep["hw2_b"])


# ----- Pure-JAX reference (correctness check only) ------------------------------
def _ref_gru(x_tnd, w_ih, w_hh, b_ih, b_hh, H):
    T, N, _ = x_tnd.shape
    h = jnp.zeros((N, H), jnp.float32)
    for t in range(T):
        gi = x_tnd[t] @ w_ih.T + b_ih
        gh = h @ w_hh.T + b_hh
        r = jax.nn.sigmoid(gi[:, :H] + gh[:, :H])
        z = jax.nn.sigmoid(gi[:, H:2 * H] + gh[:, H:2 * H])
        n = jnp.tanh(gi[:, 2 * H:] + r * gh[:, 2 * H:])
        h = (1.0 - z) * n + z * h
    return h


def _ref_forward(x, p):
    xin = jnp.transpose(x, (0, 2, 1))                                # (B, M, P)
    c = sum(jnp.einsum("bmp,cm->bcp", xin[:, :, k:k + T_CONV], p["conv_w"][:, :, k])
            for k in range(CK))
    c = jax.nn.relu(c + p["conv_b"][None, :, None])                  # (B, HID_C, T_CONV)
    r_in = jnp.transpose(c, (2, 0, 1))
    r = _ref_gru(r_in, p["gru1_w_ih"], p["gru1_w_hh"],
                 p["gru1_b_ih"], p["gru1_b_hh"], HID_R)
    s = c[:, :, c.shape[2] - PT * SKIP:]
    s = s.reshape(B, HID_C, PT, SKIP)
    s = jnp.transpose(s, (2, 0, 3, 1)).reshape(PT, B * SKIP, HID_C)
    s = _ref_gru(s, p["grus_w_ih"], p["grus_w_hh"],
                 p["grus_b_ih"], p["grus_b_hh"], HID_S)
    s = s.reshape(B, SKIP * HID_S)
    res = jnp.concatenate([r, s], axis=1) @ p["lin1_w"].T + p["lin1_b"]
    z = x[:, P - HW:, :]
    z = jnp.transpose(z, (0, 2, 1)).reshape(B * M, HW)
    z = z @ p["hw_w"].T + p["hw_b"]
    z = z @ p["lin2_w"].T + p["lin2_b"]
    return res + z


# ----- Deterministic parameter init ---------------------------------------------
def init_params(key):
    ks = jax.random.split(key, 16)

    def u(k, shape, fan_in):
        bound = 1.0 / float(fan_in) ** 0.5
        return jax.random.uniform(k, shape, jnp.float32, -bound, bound)

    return {
        "conv_w": u(ks[0], (HID_C, M, CK), M * CK),
        "conv_b": u(ks[1], (HID_C,), M * CK),
        "gru1_w_ih": u(ks[2], (3 * HID_R, HID_C), HID_R),
        "gru1_w_hh": u(ks[3], (3 * HID_R, HID_R), HID_R),
        "gru1_b_ih": u(ks[4], (3 * HID_R,), HID_R),
        "gru1_b_hh": u(ks[5], (3 * HID_R,), HID_R),
        "grus_w_ih": u(ks[6], (3 * HID_S, HID_C), HID_S),
        "grus_w_hh": u(ks[7], (3 * HID_S, HID_S), HID_S),
        "grus_b_ih": u(ks[8], (3 * HID_S,), HID_S),
        "grus_b_hh": u(ks[9], (3 * HID_S,), HID_S),
        "lin1_w": u(ks[10], (38, HID_R + SKIP * HID_S), HID_R + SKIP * HID_S),
        "lin1_b": u(ks[11], (38,), HID_R + SKIP * HID_S),
        "hw_w": u(ks[12], (M, HW), HW),
        "hw_b": u(ks[13], (M,), HW),
        "lin2_w": u(ks[14], (38, M), M),
        "lin2_b": u(ks[15], (38,), M),
    }


if __name__ == "__main__":
    key = jax.random.PRNGKey(0)
    pkey, xkey = jax.random.split(key)
    params = init_params(pkey)
    prep = prepare_params(params)            # one-time, outside jit / hot path
    x = jax.random.normal(xkey, (B, P, M), jnp.float32)

    fwd = jax.jit(lstnet_forward)
    out = jax.block_until_ready(fwd(x, prep))

    ref = _ref_forward(x, params)
    assert out.shape == (B * M, 38), out.shape
    max_err = float(jnp.max(jnp.abs(out - ref)))
    assert max_err < 5e-3, f"mismatch vs reference: {max_err}"

    print("KERNEL_OK")
</pallas_src>

<mosaic_0001>
module attributes {stable_mosaic.version = 11 : i64} {
  func.func @lstnet_kernel(%arg0: memref<1x24x38xf32, #tpu.memory_space<vmem>>, %arg1: memref<38x20xf32, #tpu.memory_space<vmem>>, %arg2: memref<3x38x100xf32, #tpu.memory_space<vmem>>, %arg3: memref<1x100xf32, #tpu.memory_space<vmem>>, %arg4: memref<100x96xf32, #tpu.memory_space<vmem>>, %arg5: memref<32x96xf32, #tpu.memory_space<vmem>>, %arg6: memref<1x96xf32, #tpu.memory_space<vmem>>, %arg7: memref<1x96xf32, #tpu.memory_space<vmem>>, %arg8: memref<100x150xf32, #tpu.memory_space<vmem>>, %arg9: memref<50x150xf32, #tpu.memory_space<vmem>>, %arg10: memref<1x150xf32, #tpu.memory_space<vmem>>, %arg11: memref<1x150xf32, #tpu.memory_space<vmem>>, %arg12: memref<32x38xf32, #tpu.memory_space<vmem>>, %arg13: memref<20x50x38xf32, #tpu.memory_space<vmem>>, %arg14: memref<1x38xf32, #tpu.memory_space<vmem>>, %arg15: memref<20x38xf32, #tpu.memory_space<vmem>>, %arg16: memref<1x38xf32, #tpu.memory_space<vmem>>, %arg17: memref<38x38xf32, #tpu.memory_space<vmem>>, %arg18: memref<22x96xf32, #tpu.memory_space<vmem>>, %arg19: memref<20x150xf32, #tpu.memory_space<vmem>>) attributes {dimension_semantics = [], scalar_prefetch = 0 : i64, scratch_operands = 2 : i64, tpu.core_type = #tpu.core_type<tc>} {
    %c0 = arith.constant 0 : index
    %c0_0 = arith.constant 0 : index
    %c0_1 = arith.constant 0 : index
    %0 = vector.load %arg0[%c0, %c0_0, %c0_1] : memref<1x24x38xf32, #tpu.memory_space<vmem>>, vector<1x24x38xf32>
    %1 = vector.shape_cast %0 : vector<1x24x38xf32> to vector<24x38xf32>
    %2 = vector.extract_strided_slice %1 {offsets = [0, 0], sizes = [22, 38], strides = [1, 1]} : vector<24x38xf32> to vector<22x38xf32>
    %c0_2 = arith.constant 0 : index
    %c0_3 = arith.constant 0 : index
    %c0_4 = arith.constant 0 : index
    %3 = vector.load %arg2[%c0_2, %c0_3, %c0_4] : memref<3x38x100xf32, #tpu.memory_space<vmem>>, vector<1x38x100xf32>
    %4 = vector.shape_cast %3 : vector<1x38x100xf32> to vector<38x100xf32>
    %cst = arith.constant dense<0.000000e+00> : vector<22x100xf32>
    %5 = tpu.matmul %2, %4, %cst {dimension_numbers = #tpu.dot_dimension_numbers<[1], [0], [0], [1], [0, 0, 1, 1], [], []>} : vector<22x38xf32>, vector<38x100xf32>, vector<22x100xf32> -> vector<22x100xf32>
    %6 = vector.extract_strided_slice %1 {offsets = [1, 0], sizes = [22, 38], strides = [1, 1]} : vector<24x38xf32> to vector<22x38xf32>
    %c1 = arith.constant 1 : index
    %c0_5 = arith.constant 0 : index
    %c0_6 = arith.constant 0 : index
    %7 = vector.load %arg2[%c1, %c0_5, %c0_6] : memref<3x38x100xf32, #tpu.memory_space<vmem>>, vector<1x38x100xf32>
    %8 = vector.shape_cast %7 : vector<1x38x100xf32> to vector<38x100xf32>
    %cst_7 = arith.constant dense<0.000000e+00> : vector<22x100xf32>
    %9 = tpu.matmul %6, %8, %cst_7 {dimension_numbers = #tpu.dot_dimension_numbers<[1], [0], [0], [1], [0, 0, 1, 1], [], []>} : vector<22x38xf32>, vector<38x100xf32>, vector<22x100xf32> -> vector<22x100xf32>
    %10 = arith.addf %5, %9 : vector<22x100xf32>
    %11 = vector.extract_strided_slice %1 {offsets = [2, 0], sizes = [22, 38], strides = [1, 1]} : vector<24x38xf32> to vector<22x38xf32>
    %c2 = arith.constant 2 : index
    %c0_8 = arith.constant 0 : index
    %c0_9 = arith.constant 0 : index
    %12 = vector.load %arg2[%c2, %c0_8, %c0_9] : memref<3x38x100xf32, #tpu.memory_space<vmem>>, vector<1x38x100xf32>
    %13 = vector.shape_cast %12 : vector<1x38x100xf32> to vector<38x100xf32>
    %cst_10 = arith.constant dense<0.000000e+00> : vector<22x100xf32>
    %14 = tpu.matmul %11, %13, %cst_10 {dimension_numbers = #tpu.dot_dimension_numbers<[1], [0], [0], [1], [0, 0, 1, 1], [], []>} : vector<22x38xf32>, vector<38x100xf32>, vector<22x100xf32> -> vector<22x100xf32>
    %15 = arith.addf %10, %14 : vector<22x100xf32>
    %c0_11 = arith.constant 0 : index
    %c0_12 = arith.constant 0 : index
    %16 = vector.load %arg3[%c0_11, %c0_12] : memref<1x100xf32, #tpu.memory_space<vmem>>, vector<1x100xf32>
    %17 = vector.broadcast %16 : vector<1x100xf32> to vector<22x100xf32>
    %18 = arith.addf %15, %17 : vector<22x100xf32>
    %cst_13 = arith.constant 0.000000e+00 : f32
    %19 = vector.broadcast %cst_13 : f32 to vector<22x100xf32>
    %20 = arith.maximumf %18, %19 : vector<22x100xf32>
    %c0_14 = arith.constant 0 : index
    %c0_15 = arith.constant 0 : index
    %21 = vector.load %arg4[%c0_14, %c0_15] : memref<100x96xf32, #tpu.memory_space<vmem>>, vector<100x96xf32>
    %cst_16 = arith.constant dense<0.000000e+00> : vector<22x96xf32>
    %22 = tpu.matmul %20, %21, %cst_16 {dimension_numbers = #tpu.dot_dimension_numbers<[1], [0], [0], [1], [0, 0, 1, 1], [], []>} : vector<22x100xf32>, vector<100x96xf32>, vector<22x96xf32> -> vector<22x96xf32>
    %c0_17 = arith.constant 0 : index
    %c0_18 = arith.constant 0 : index
    %23 = vector.load %arg6[%c0_17, %c0_18] : memref<1x96xf32, #tpu.memory_space<vmem>>, vector<1x96xf32>
    %24 = vector.broadcast %23 : vector<1x96xf32> to vector<22x96xf32>
    %25 = arith.addf %22, %24 : vector<22x96xf32>
    %c0_19 = arith.constant 0 : index
    %c0_20 = arith.constant 0 : index
    %26 = vector.load %arg18[%c0_19, %c0_20] : memref<22x96xf32, #tpu.memory_space<vmem>>, vector<22x96xf32>
    tpu.vector_store %arg18[%c0_19, %c0_20], %25 {strides = array<i32>} : memref<22x96xf32, #tpu.memory_space<vmem>>, vector<22x96xf32>,
    %27 = vector.extract_strided_slice %20 {offsets = [2, 0], sizes = [20, 100], strides = [1, 1]} : vector<22x100xf32> to vector<20x100xf32>
    %c0_21 = arith.constant 0 : index
    %c0_22 = arith.constant 0 : index
    %28 = vector.load %arg8[%c0_21, %c0_22] : memref<100x150xf32, #tpu.memory_space<vmem>>, vector<100x150xf32>
    %cst_23 = arith.constant dense<0.000000e+00> : vector<20x150xf32>
    %29 = tpu.matmul %27, %28, %cst_23 {dimension_numbers = #tpu.dot_dimension_numbers<[1], [0], [0], [1], [0, 0, 1, 1], [], []>} : vector<20x100xf32>, vector<100x150xf32>, vector<20x150xf32> -> vector<20x150xf32>
    %c0_24 = arith.constant 0 : index
    %c0_25 = arith.constant 0 : index
    %30 = vector.load %arg10[%c0_24, %c0_25] : memref<1x150xf32, #tpu.memory_space<vmem>>, vector<1x150xf32>
    %31 = vector.broadcast %30 : vector<1x150xf32> to vector<20x150xf32>
    %32 = arith.addf %29, %31 : vector<20x150xf32>
    %c0_26 = arith.constant 0 : index
    %c0_27 = arith.constant 0 : index
    %33 = vector.load %arg19[%c0_26, %c0_27] : memref<20x150xf32, #tpu.memory_space<vmem>>, vector<20x150xf32>
    tpu.vector_store %arg19[%c0_26, %c0_27], %32 {strides = array<i32>} : memref<20x150xf32, #tpu.memory_space<vmem>>, vector<20x150xf32>,
    %cst_28 = arith.constant 0.000000e+00 : f32
    %34 = vector.broadcast %cst_28 : f32 to vector<20x50xf32>
    %c0_i32 = arith.constant 0 : i32
    %c20_i32 = arith.constant 20 : i32
    %35 = arith.muli %c0_i32, %c20_i32 : i32
    %36 = arith.index_cast %35 : i32 to index
    %c0_29 = arith.constant 0 : index
    %37 = vector.load %arg19[%36, %c0_29] : memref<20x150xf32, #tpu.memory_space<vmem>>, vector<20x150xf32>
    %c0_30 = arith.constant 0 : index
    %c0_31 = arith.constant 0 : index
    %38 = vector.load %arg9[%c0_30, %c0_31] : memref<50x150xf32, #tpu.memory_space<vmem>>, vector<50x150xf32>
    %c0_32 = arith.constant 0 : index
    %c0_33 = arith.constant 0 : index
    %39 = vector.load %arg11[%c0_32, %c0_33] : memref<1x150xf32, #tpu.memory_space<vmem>>, vector<1x150xf32>
    %cst_34 = arith.constant dense<0.000000e+00> : vector<20x150xf32>
    %40 = tpu.matmul %34, %38, %cst_34 {dimension_numbers = #tpu.dot_dimension_numbers<[1], [0], [0], [1], [0, 0, 1, 1], [], []>} : vector<20x50xf32>, vector<50x150xf32>, vector<20x150xf32> -> vector<20x150xf32>
    %41 = vector.broadcast %39 : vector<1x150xf32> to vector<20x150xf32>
    %42 = arith.addf %40, %41 : vector<20x150xf32>
    %43 = vector.extract_strided_slice %37 {offsets = [0, 0], sizes = [20, 50], strides = [1, 1]} : vector<20x150xf32> to vector<20x50xf32>
    %44 = vector.extract_strided_slice %42 {offsets = [0, 0], sizes = [20, 50], strides = [1, 1]} : vector<20x150xf32> to vector<20x50xf32>
    %45 = arith.addf %43, %44 : vector<20x50xf32>
    %46 = arith.negf %45 : vector<20x50xf32>
    %47 = math.exp %46 : vector<20x50xf32>
    %cst_35 = arith.constant 1.000000e+00 : f32
    %48 = vector.broadcast %cst_35 : f32 to vector<20x50xf32>
    %49 = arith.addf %48, %47 : vector<20x50xf32>
    %50 = arith.divf %48, %49 : vector<20x50xf32>
    %51 = vector.extract_strided_slice %37 {offsets = [0, 50], sizes = [20, 50], strides = [1, 1]} : vector<20x150xf32> to vector<20x50xf32>
    %52 = vector.extract_strided_slice %42 {offsets = [0, 50], sizes = [20, 50], strides = [1, 1]} : vector<20x150xf32> to vector<20x50xf32>
    %53 = arith.addf %51, %52 : vector<20x50xf32>
    %54 = arith.negf %53 : vector<20x50xf32>
    %55 = math.exp %54 : vector<20x50xf32>
    %cst_36 = arith.constant 1.000000e+00 : f32
    %56 = vector.broadcast %cst_36 : f32 to vector<20x50xf32>
    %57 = arith.addf %56, %55 : vector<20x50xf32>
    %58 = arith.divf %56, %57 : vector<20x50xf32>
    %59 = vector.extract_strided_slice %37 {offsets = [0, 100], sizes = [20, 50], strides = [1, 1]} : vector<20x150xf32> to vector<20x50xf32>
    %60 = vector.extract_strided_slice %42 {offsets = [0, 100], sizes = [20, 50], strides = [1, 1]} : vector<20x150xf32> to vector<20x50xf32>
    %61 = arith.mulf %50, %60 : vector<20x50xf32>
    %62 = arith.addf %59, %61 : vector<20x50xf32>
    %63 = math.tanh %62 : vector<20x50xf32>
    %cst_37 = arith.constant 1.000000e+00 : f32
    %64 = vector.broadcast %cst_37 : f32 to vector<20x50xf32>
    %65 = arith.subf %64, %58 : vector<20x50xf32>
    %66 = arith.mulf %65, %63 : vector<20x50xf32>
    %67 = arith.mulf %58, %34 : vector<20x50xf32>
    %68 = arith.addf %66, %67 : vector<20x50xf32>
    %c1_i32 = arith.constant 1 : i32
    %cst_38 = arith.constant 0.000000e+00 : f32
    %69 = vector.broadcast %cst_38 : f32 to vector<1x32xf32>
    %c0_i32_39 = arith.constant 0 : i32
    %70 = arith.index_cast %c0_i32_39 : i32 to index
    %c0_40 = arith.constant 0 : index
    %71 = vector.load %arg18[%70, %c0_40] : memref<22x96xf32, #tpu.memory_space<vmem>>, vector<1x96xf32>
    %c0_41 = arith.constant 0 : index
    %c0_42 = arith.constant 0 : index
    %72 = vector.load %arg5[%c0_41, %c0_42] : memref<32x96xf32, #tpu.memory_space<vmem>>, vector<32x96xf32>
    %c0_43 = arith.constant 0 : index
    %c0_44 = arith.constant 0 : index
    %73 = vector.load %arg7[%c0_43, %c0_44] : memref<1x96xf32, #tpu.memory_space<vmem>>, vector<1x96xf32>
    %cst_45 = arith.constant dense<0.000000e+00> : vector<1x96xf32>
    %74 = tpu.matmul %69, %72, %cst_45 {dimension_numbers = #tpu.dot_dimension_numbers<[1], [0], [0], [1], [0, 0, 1, 1], [], []>} : vector<1x32xf32>, vector<32x96xf32>, vector<1x96xf32> -> vector<1x96xf32>
    %75 = arith.addf %74, %73 : vector<1x96xf32>
    %76 = vector.extract_strided_slice %71 {offsets = [0, 0], sizes = [1, 32], strides = [1, 1]} : vector<1x96xf32> to vector<1x32xf32>
    %77 = vector.extract_strided_slice %75 {offsets = [0, 0], sizes = [1, 32], strides = [1, 1]} : vector<1x96xf32> to vector<1x32xf32>
    %78 = arith.addf %76, %77 : vector<1x32xf32>
    %79 = arith.negf %78 : vector<1x32xf32>
    %80 = math.exp %79 : vector<1x32xf32>
    %cst_46 = arith.constant 1.000000e+00 : f32
    %81 = vector.broadcast %cst_46 : f32 to vector<1x32xf32>
    %82 = arith.addf %81, %80 : vector<1x32xf32>
    %83 = arith.divf %81, %82 : vector<1x32xf32>
    %84 = vector.extract_strided_slice %71 {offsets = [0, 32], sizes = [1, 32], strides = [1, 1]} : vector<1x96xf32> to vector<1x32xf32>
    %85 = vector.extract_strided_slice %75 {offsets = [0, 32], sizes = [1, 32], strides = [1, 1]} : vector<1x96xf32> to vector<1x32xf32>
    %86 = arith.addf %84, %85 : vector<1x32xf32>
    %87 = arith.negf %86 : vector<1x32xf32>
    %88 = math.exp %87 : vector<1x32xf32>
    %cst_47 = arith.constant 1.000000e+00 : f32
    %89 = vector.broadcast %cst_47 : f32 to vector<1x32xf32>
    %90 = arith.addf %89, %88 : vector<1x32xf32>
    %91 = arith.divf %89, %90 : vector<1x32xf32>
    %92 = vector.extract_strided_slice %71 {offsets = [0, 64], sizes = [1, 32], strides = [1, 1]} : vector<1x96xf32> to vector<1x32xf32>
    %93 = vector.extract_strided_slice %75 {offsets = [0, 64], sizes = [1, 32], strides = [1, 1]} : vector<1x96xf32> to vector<1x32xf32>
    %94 = arith.mulf %83, %93 : vector<1x32xf32>
    %95 = arith.addf %92, %94 : vector<1x32xf32>
    %96 = math.tanh %95 : vector<1x32xf32>
    %cst_48 = arith.constant 1.000000e+00 : f32
    %97 = vector.broadcast %cst_48 : f32 to vector<1x32xf32>
    %98 = arith.subf %97, %91 : vector<1x32xf32>
    %99 = arith.mulf %98, %96 : vector<1x32xf32>
    %100 = arith.mulf %91, %69 : vector<1x32xf32>
    %101 = arith.addf %99, %100 : vector<1x32xf32>
    %c1_i32_49 = arith.constant 1 : i32
    %102 = arith.index_cast %c1_i32_49 : i32 to index
    %c0_50 = arith.constant 0 : index
    %103 = vector.load %arg18[%102, %c0_50] : memref<22x96xf32, #tpu.memory_space<vmem>>, vector<1x96xf32>
    %c0_51 = arith.constant 0 : index
    %c0_52 = arith.constant 0 : index
    %104 = vector.load %arg5[%c0_51, %c0_52] : memref<32x96xf32, #tpu.memory_space<vmem>>, vector<32x96xf32>
    %c0_53 = arith.constant 0 : index
    %c0_54 = arith.constant 0 : index
    %105 = vector.load %arg7[%c0_53, %c0_54] : memref<1x96xf32, #tpu.memory_space<vmem>>, vector<1x96xf32>
    %cst_55 = arith.constant dense<0.000000e+00> : vector<1x96xf32>
    %106 = tpu.matmul %101, %104, %cst_55 {dimension_numbers = #tpu.dot_dimension_numbers<[1], [0], [0], [1], [0, 0, 1, 1], [], []>} : vector<1x32xf32>, vector<32x96xf32>, vector<1x96xf32> -> vector<1x96xf32>
    %107 = arith.addf %106, %105 : vector<1x96xf32>
    %108 = vector.extract_strided_slice %103 {offsets = [0, 0], sizes = [1, 32], strides = [1, 1]} : vector<1x96xf32> to vector<1x32xf32>
    %109 = vector.extract_strided_slice %107 {offsets = [0, 0], sizes = [1, 32], strides = [1, 1]} : vector<1x96xf32> to vector<1x32xf32>
    %110 = arith.addf %108, %109 : vector<1x32xf32>
    %111 = arith.negf %110 : vector<1x32xf32>
    %112 = math.exp %111 : vector<1x32xf32>
    %cst_56 = arith.constant 1.000000e+00 : f32
    %113 = vector.broadcast %cst_56 : f32 to vector<1x32xf32>
    %114 = arith.addf %113, %112 : vector<1x32xf32>
    %115 = arith.divf %113, %114 : vector<1x32xf32>
    %116 = vector.extract_strided_slice %103 {offsets = [0, 32], sizes = [1, 32], strides = [1, 1]} : vector<1x96xf32> to vector<1x32xf32>
    %117 = vector.extract_strided_slice %107 {offsets = [0, 32], sizes = [1, 32], strides = [1, 1]} : vector<1x96xf32> to vector<1x32xf32>
    %118 = arith.addf %116, %117 : vector<1x32xf32>
    %119 = arith.negf %118 : vector<1x32xf32>
    %120 = math.exp %119 : vector<1x32xf32>
    %cst_57 = arith.constant 1.000000e+00 : f32
    %121 = vector.broadcast %cst_57 : f32 to vector<1x32xf32>
    %122 = arith.addf %121, %120 : vector<1x32xf32>
    %123 = arith.divf %121, %122 : vector<1x32xf32>
    %124 = vector.extract_strided_slice %103 {offsets = [0, 64], sizes = [1, 32], strides = [1, 1]} : vector<1x96xf32> to vector<1x32xf32>
    %125 = vector.extract_strided_slice %107 {offsets = [0, 64], sizes = [1, 32], strides = [1, 1]} : vector<1x96xf32> to vector<1x32xf32>
    %126 = arith.mulf %115, %125 : vector<1x32xf32>
    %127 = arith.addf %124, %126 : vector<1x32xf32>
    %128 = math.tanh %127 : vector<1x32xf32>
    %cst_58 = arith.constant 1.000000e+00 : f32
    %129 = vector.broadcast %cst_58 : f32 to vector<1x32xf32>
    %130 = arith.subf %129, %123 : vector<1x32xf32>
    %131 = arith.mulf %130, %128 : vector<1x32xf32>
    %132 = arith.mulf %123, %101 : vector<1x32xf32>
    %133 = arith.addf %131, %132 : vector<1x32xf32>
    %c2_i32 = arith.constant 2 : i32
    %134 = arith.index_cast %c2_i32 : i32 to index
    %c0_59 = arith.constant 0 : index
    %135 = vector.load %arg18[%134, %c0_59] : memref<22x96xf32, #tpu.memory_space<vmem>>, vector<1x96xf32>
    %c0_60 = arith.constant 0 : index
    %c0_61 = arith.constant 0 : index
    %136 = vector.load %arg5[%c0_60, %c0_61] : memref<32x96xf32, #tpu.memory_space<vmem>>, vector<32x96xf32>
    %c0_62 = arith.constant 0 : index
    %c0_63 = arith.constant 0 : index
    %137 = vector.load %arg7[%c0_62, %c0_63] : memref<1x96xf32, #tpu.memory_space<vmem>>, vector<1x96xf32>
    %cst_64 = arith.constant dense<0.000000e+00> : vector<1x96xf32>
    %138 = tpu.matmul %133, %136, %cst_64 {dimension_numbers = #tpu.dot_dimension_numbers<[1], [0], [0], [1], [0, 0, 1, 1], [], []>} : vector<1x32xf32>, vector<32x96xf32>, vector<1x96xf32> -> vector<1x96xf32>
    %139 = arith.addf %138, %137 : vector<1x96xf32>
    %140 = vector.extract_strided_slice %135 {offsets = [0, 0], sizes = [1, 32], strides = [1, 1]} : vector<1x96xf32> to vector<1x32xf32>
    %141 = vector.extract_strided_slice %139 {offsets = [0, 0], sizes = [1, 32], strides = [1, 1]} : vector<1x96xf32> to vector<1x32xf32>
    %142 = arith.addf %140, %141 : vector<1x32xf32>
    %143 = arith.negf %142 : vector<1x32xf32>
    %144 = math.exp %143 : vector<1x32xf32>
    %cst_65 = arith.constant 1.000000e+00 : f32
    %145 = vector.broadcast %cst_65 : f32 to vector<1x32xf32>
    %146 = arith.addf %145, %144 : vector<1x32xf32>
    %147 = arith.divf %145, %146 : vector<1x32xf32>
    %148 = vector.extract_strided_slice %135 {offsets = [0, 32], sizes = [1, 32], strides = [1, 1]} : vector<1x96xf32> to vector<1x32xf32>
    %149 = vector.extract_strided_slice %139 {offsets = [0, 32], sizes = [1, 32], strides = [1, 1]} : vector<1x96xf32> to vector<1x32xf32>
    %150 = arith.addf %148, %149 : vector<1x32xf32>
    %151 = arith.negf %150 : vector<1x32xf32>
    %152 = math.exp %151 : vector<1x32xf32>
    %cst_66 = arith.constant 1.000000e+00 : f32
    %153 = vector.broadcast %cst_66 : f32 to vector<1x32xf32>
    %154 = arith.addf %153, %152 : vector<1x32xf32>
    %155 = arith.divf %153, %154 : vector<1x32xf32>
    %156 = vector.extract_strided_slice %135 {offsets = [0, 64], sizes = [1, 32], strides = [1, 1]} : vector<1x96xf32> to vector<1x32xf32>
    %157 = vector.extract_strided_slice %139 {offsets = [0, 64], sizes = [1, 32], strides = [1, 1]} : vector<1x96xf32> to vector<1x32xf32>
    %158 = arith.mulf %147, %157 : vector<1x32xf32>
    %159 = arith.addf %156, %158 : vector<1x32xf32>
    %160 = math.tanh %159 : vector<1x32xf32>
    %cst_67 = arith.constant 1.000000e+00 : f32
    %161 = vector.broadcast %cst_67 : f32 to vector<1x32xf32>
    %162 = arith.subf %161, %155 : vector<1x32xf32>
    %163 = arith.mulf %162, %160 : vector<1x32xf32>
    %164 = arith.mulf %155, %133 : vector<1x32xf32>
    %165 = arith.addf %163, %164 : vector<1x32xf32>
    %c3_i32 = arith.constant 3 : i32
    %166 = arith.index_cast %c3_i32 : i32 to index
    %c0_68 = arith.constant 0 : index
    %167 = vector.load %arg18[%166, %c0_68] : memref<22x96xf32, #tpu.memory_space<vmem>>, vector<1x96xf32>
    %c0_69 = arith.constant 0 : index
    %c0_70 = arith.constant 0 : index
    %168 = vector.load %arg5[%c0_69, %c0_70] : memref<32x96xf32, #tpu.memory_space<vmem>>, vector<32x96xf32>
    %c0_71 = arith.constant 0 : index
    %c0_72 = arith.constant 0 : index
    %169 = vector.load %arg7[%c0_71, %c0_72] : memref<1x96xf32, #tpu.memory_space<vmem>>, vector<1x96xf32>
    %cst_73 = arith.constant dense<0.000000e+00> : vector<1x96xf32>
    %170 = tpu.matmul %165, %168, %cst_73 {dimension_numbers = #tpu.dot_dimension_numbers<[1], [0], [0], [1], [0, 0, 1, 1], [], []>} : vector<1x32xf32>, vector<32x96xf32>, vector<1x96xf32> -> vector<1x96xf32>
    %171 = arith.addf %170, %169 : vector<1x96xf32>
    %172 = vector.extract_strided_slice %167 {offsets = [0, 0], sizes = [1, 32], strides = [1, 1]} : vector<1x96xf32> to vector<1x32xf32>
    %173 = vector.extract_strided_slice %171 {offsets = [0, 0], sizes = [1, 32], strides = [1, 1]} : vector<1x96xf32> to vector<1x32xf32>
    %174 = arith.addf %172, %173 : vector<1x32xf32>
    %175 = arith.negf %174 : vector<1x32xf32>
    %176 = math.exp %175 : vector<1x32xf32>
    %cst_74 = arith.constant 1.000000e+00 : f32
    %177 = vector.broadcast %cst_74 : f32 to vector<1x32xf32>
    %178 = arith.addf %177, %176 : vector<1x32xf32>
    %179 = arith.divf %177, %178 : vector<1x32xf32>
    %180 = vector.extract_strided_slice %167 {offsets = [0, 32], sizes = [1, 32], strides = [1, 1]} : vector<1x96xf32> to vector<1x32xf32>
    %181 = vector.extract_strided_slice %171 {offsets = [0, 32], sizes = [1, 32], strides = [1, 1]} : vector<1x96xf32> to vector<1x32xf32>
    %182 = arith.addf %180, %181 : vector<1x32xf32>
    %183 = arith.negf %182 : vector<1x32xf32>
    %184 = math.exp %183 : vector<1x32xf32>
    %cst_75 = arith.constant 1.000000e+00 : f32
    %185 = vector.broadcast %cst_75 : f32 to vector<1x32xf32>
    %186 = arith.addf %185, %184 : vector<1x32xf32>
    %187 = arith.divf %185, %186 : vector<1x32xf32>
    %188 = vector.extract_strided_slice %167 {offsets = [0, 64], sizes = [1, 32], strides = [1, 1]} : vector<1x96xf32> to vector<1x32xf32>
    %189 = vector.extract_strided_slice %171 {offsets = [0, 64], sizes = [1, 32], strides = [1, 1]} : vector<1x96xf32> to vector<1x32xf32>
    %190 = arith.mulf %179, %189 : vector<1x32xf32>
    %191 = arith.addf %188, %190 : vector<1x32xf32>
    %192 = math.tanh %191 : vector<1x32xf32>
    %cst_76 = arith.constant 1.000000e+00 : f32
    %193 = vector.broadcast %cst_76 : f32 to vector<1x32xf32>
    %194 = arith.subf %193, %187 : vector<1x32xf32>
    %195 = arith.mulf %194, %192 : vector<1x32xf32>
    %196 = arith.mulf %187, %165 : vector<1x32xf32>
    %197 = arith.addf %195, %196 : vector<1x32xf32>
    %c4_i32 = arith.constant 4 : i32
    %198 = arith.index_cast %c4_i32 : i32 to index
    %c0_77 = arith.constant 0 : index
    %199 = vector.load %arg18[%198, %c0_77] : memref<22x96xf32, #tpu.memory_space<vmem>>, vector<1x96xf32>
    %c0_78 = arith.constant 0 : index
    %c0_79 = arith.constant 0 : index
    %200 = vector.load %arg5[%c0_78, %c0_79] : memref<32x96xf32, #tpu.memory_space<vmem>>, vector<32x96xf32>
    %c0_80 = arith.constant 0 : index
    %c0_81 = arith.constant 0 : index
    %201 = vector.load %arg7[%c0_80, %c0_81] : memref<1x96xf32, #tpu.memory_space<vmem>>, vector<1x96xf32>
    %cst_82 = arith.constant dense<0.000000e+00> : vector<1x96xf32>
    %202 = tpu.matmul %197, %200, %cst_82 {dimension_numbers = #tpu.dot_dimension_numbers<[1], [0], [0], [1], [0, 0, 1, 1], [], []>} : vector<1x32xf32>, vector<32x96xf32>, vector<1x96xf32> -> vector<1x96xf32>
    %203 = arith.addf %202, %201 : vector<1x96xf32>
    %204 = vector.extract_strided_slice %199 {offsets = [0, 0], sizes = [1, 32], strides = [1, 1]} : vector<1x96xf32> to vector<1x32xf32>
    %205 = vector.extract_strided_slice %203 {offsets = [0, 0], sizes = [1, 32], strides = [1, 1]} : vector<1x96xf32> to vector<1x32xf32>
    %206 = arith.addf %204, %205 : vector<1x32xf32>
    %207 = arith.negf %206 : vector<1x32xf32>
    %208 = math.exp %207 : vector<1x32xf32>
    %cst_83 = arith.constant 1.000000e+00 : f32
    %209 = vector.broadcast %cst_83 : f32 to vector<1x32xf32>
    %210 = arith.addf %209, %208 : vector<1x32xf32>
    %211 = arith.divf %209, %210 : vector<1x32xf32>
    %212 = vector.extract_strided_slice %199 {offsets = [0, 32], sizes = [1, 32], strides = [1, 1]} : vector<1x96xf32> to vector<1x32xf32>
    %213 = vector.extract_strided_slice %203 {offsets = [0, 32], sizes = [1, 32], strides = [1, 1]} : vector<1x96xf32> to vector<1x32xf32>
    %214 = arith.addf %212, %213 : vector<1x32xf32>
    %215 = arith.negf %214 : vector<1x32xf32>
    %216 = math.exp %215 : vector<1x32xf32>
    %cst_84 = arith.constant 1.000000e+00 : f32
    %217 = vector.broadcast %cst_84 : f32 to vector<1x32xf32>
    %218 = arith.addf %217, %216 : vector<1x32xf32>
    %219 = arith.divf %217, %218 : vector<1x32xf32>
    %220 = vector.extract_strided_slice %199 {offsets = [0, 64], sizes = [1, 32], strides = [1, 1]} : vector<1x96xf32> to vector<1x32xf32>
    %221 = vector.extract_strided_slice %203 {offsets = [0, 64], sizes = [1, 32], strides = [1, 1]} : vector<1x96xf32> to vector<1x32xf32>
    %222 = arith.mulf %211, %221 : vector<1x32xf32>
    %223 = arith.addf %220, %222 : vector<1x32xf32>
    %224 = math.tanh %223 : vector<1x32xf32>
    %cst_85 = arith.constant 1.000000e+00 : f32
    %225 = vector.broadcast %cst_85 : f32 to vector<1x32xf32>
    %226 = arith.subf %225, %219 : vector<1x32xf32>
    %227 = arith.mulf %226, %224 : vector<1x32xf32>
    %228 = arith.mulf %219, %197 : vector<1x32xf32>
    %229 = arith.addf %227, %228 : vector<1x32xf32>
    %c5_i32 = arith.constant 5 : i32
    %230 = arith.index_cast %c5_i32 : i32 to index
    %c0_86 = arith.constant 0 : index
    %231 = vector.load %arg18[%230, %c0_86] : memref<22x96xf32, #tpu.memory_space<vmem>>, vector<1x96xf32>
    %c0_87 = arith.constant 0 : index
    %c0_88 = arith.constant 0 : index
    %232 = vector.load %arg5[%c0_87, %c0_88] : memref<32x96xf32, #tpu.memory_space<vmem>>, vector<32x96xf32>
    %c0_89 = arith.constant 0 : index
    %c0_90 = arith.constant 0 : index
    %233 = vector.load %arg7[%c0_89, %c0_90] : memref<1x96xf32, #tpu.memory_space<vmem>>, vector<1x96xf32>
    %cst_91 = arith.constant dense<0.000000e+00> : vector<1x96xf32>
    %234 = tpu.matmul %229, %232, %cst_91 {dimension_numbers = #tpu.dot_dimension_numbers<[1], [0], [0], [1], [0, 0, 1, 1], [], []>} : vector<1x32xf32>, vector<32x96xf32>, vector<1x96xf32> -> vector<1x96xf32>
    %235 = arith.addf %234, %233 : vector<1x96xf32>
    %236 = vector.extract_strided_slice %231 {offsets = [0, 0], sizes = [1, 32], strides = [1, 1]} : vector<1x96xf32> to vector<1x32xf32>
    %237 = vector.extract_strided_slice %235 {offsets = [0, 0], sizes = [1, 32], strides = [1, 1]} : vector<1x96xf32> to vector<1x32xf32>
    %238 = arith.addf %236, %237 : vector<1x32xf32>
    %239 = arith.negf %238 : vector<1x32xf32>
    %240 = math.exp %239 : vector<1x32xf32>
    %cst_92 = arith.constant 1.000000e+00 : f32
    %241 = vector.broadcast %cst_92 : f32 to vector<1x32xf32>
    %242 = arith.addf %241, %240 : vector<1x32xf32>
    %243 = arith.divf %241, %242 : vector<1x32xf32>
    %244 = vector.extract_strided_slice %231 {offsets = [0, 32], sizes = [1, 32], strides = [1, 1]} : vector<1x96xf32> to vector<1x32xf32>
    %245 = vector.extract_strided_slice %235 {offsets = [0, 32], sizes = [1, 32], strides = [1, 1]} : vector<1x96xf32> to vector<1x32xf32>
    %246 = arith.addf %244, %245 : vector<1x32xf32>
    %247 = arith.negf %246 : vector<1x32xf32>
    %248 = math.exp %247 : vector<1x32xf32>
    %cst_93 = arith.constant 1.000000e+00 : f32
    %249 = vector.broadcast %cst_93 : f32 to vector<1x32xf32>
    %250 = arith.addf %249, %248 : vector<1x32xf32>
    %251 = arith.divf %249, %250 : vector<1x32xf32>
    %252 = vector.extract_strided_slice %231 {offsets = [0, 64], sizes = [1, 32], strides = [1, 1]} : vector<1x96xf32> to vector<1x32xf32>
    %253 = vector.extract_strided_slice %235 {offsets = [0, 64], sizes = [1, 32], strides = [1, 1]} : vector<1x96xf32> to vector<1x32xf32>
    %254 = arith.mulf %243, %253 : vector<1x32xf32>
    %255 = arith.addf %252, %254 : vector<1x32xf32>
    %256 = math.tanh %255 : vector<1x32xf32>
    %cst_94 = arith.constant 1.000000e+00 : f32
    %257 = vector.broadcast %cst_94 : f32 to vector<1x32xf32>
    %258 = arith.subf %257, %251 : vector<1x32xf32>
    %259 = arith.mulf %258, %256 : vector<1x32xf32>
    %260 = arith.mulf %251, %229 : vector<1x32xf32>
    %261 = arith.addf %259, %260 : vector<1x32xf32>
    %c6_i32 = arith.constant 6 : i32
    %262 = arith.index_cast %c6_i32 : i32 to index
    %c0_95 = arith.constant 0 : index
    %263 = vector.load %arg18[%262, %c0_95] : memref<22x96xf32, #tpu.memory_space<vmem>>, vector<1x96xf32>
    %c0_96 = arith.constant 0 : index
    %c0_97 = arith.constant 0 : index
    %264 = vector.load %arg5[%c0_96, %c0_97] : memref<32x96xf32, #tpu.memory_space<vmem>>, vector<32x96xf32>
    %c0_98 = arith.constant 0 : index
    %c0_99 = arith.constant 0 : index
    %265 = vector.load %arg7[%c0_98, %c0_99] : memref<1x96xf32, #tpu.memory_space<vmem>>, vector<1x96xf32>
    %cst_100 = arith.constant dense<0.000000e+00> : vector<1x96xf32>
    %266 = tpu.matmul %261, %264, %cst_100 {dimension_numbers = #tpu.dot_dimension_numbers<[1], [0], [0], [1], [0, 0, 1, 1], [], []>} : vector<1x32xf32>, vector<32x96xf32>, vector<1x96xf32> -> vector<1x96xf32>
    %267 = arith.addf %266, %265 : vector<1x96xf32>
    %268 = vector.extract_strided_slice %263 {offsets = [0, 0], sizes = [1, 32], strides = [1, 1]} : vector<1x96xf32> to vector<1x32xf32>
    %269 = vector.extract_strided_slice %267 {offsets = [0, 0], sizes = [1, 32], strides = [1, 1]} : vector<1x96xf32> to vector<1x32xf32>
    %270 = arith.addf %268, %269 : vector<1x32xf32>
    %271 = arith.negf %270 : vector<1x32xf32>
    %272 = math.exp %271 : vector<1x32xf32>
    %cst_101 = arith.constant 1.000000e+00 : f32
    %273 = vector.broadcast %cst_101 : f32 to vector<1x32xf32>
    %274 = arith.addf %273, %272 : vector<1x32xf32>
    %275 = arith.divf %273, %274 : vector<1x32xf32>
    %276 = vector.extract_strided_slice %263 {offsets = [0, 32], sizes = [1, 32], strides = [1, 1]} : vector<1x96xf32> to vector<1x32xf32>
    %277 = vector.extract_strided_slice %267 {offsets = [0, 32], sizes = [1, 32], strides = [1, 1]} : vector<1x96xf32> to vector<1x32xf32>
    %278 = arith.addf %276, %277 : vector<1x32xf32>
    %279 = arith.negf %278 : vector<1x32xf32>
    %280 = math.exp %279 : vector<1x32xf32>
    %cst_102 = arith.constant 1.000000e+00 : f32
    %281 = vector.broadcast %cst_102 : f32 to vector<1x32xf32>
    %282 = arith.addf %281, %280 : vector<1x32xf32>
    %283 = arith.divf %281, %282 : vector<1x32xf32>
    %284 = vector.extract_strided_slice %263 {offsets = [0, 64], sizes = [1, 32], strides = [1, 1]} : vector<1x96xf32> to vector<1x32xf32>
    %285 = vector.extract_strided_slice %267 {offsets = [0, 64], sizes = [1, 32], strides = [1, 1]} : vector<1x96xf32> to vector<1x32xf32>
    %286 = arith.mulf %275, %285 : vector<1x32xf32>
    %287 = arith.addf %284, %286 : vector<1x32xf32>
    %288 = math.tanh %287 : vector<1x32xf32>
    %cst_103 = arith.constant 1.000000e+00 : f32
    %289 = vector.broadcast %cst_103 : f32 to vector<1x32xf32>
    %290 = arith.subf %289, %283 : vector<1x32xf32>
    %291 = arith.mulf %290, %288 : vector<1x32xf32>
    %292 = arith.mulf %283, %261 : vector<1x32xf32>
    %293 = arith.addf %291, %292 : vector<1x32xf32>
    %c7_i32 = arith.constant 7 : i32
    %294 = arith.index_cast %c7_i32 : i32 to index
    %c0_104 = arith.constant 0 : index
    %295 = vector.load %arg18[%294, %c0_104] : memref<22x96xf32, #tpu.memory_space<vmem>>, vector<1x96xf32>
    %c0_105 = arith.constant 0 : index
    %c0_106 = arith.constant 0 : index
    %296 = vector.load %arg5[%c0_105, %c0_106] : memref<32x96xf32, #tpu.memory_space<vmem>>, vector<32x96xf32>
    %c0_107 = arith.constant 0 : index
    %c0_108 = arith.constant 0 : index
    %297 = vector.load %arg7[%c0_107, %c0_108] : memref<1x96xf32, #tpu.memory_space<vmem>>, vector<1x96xf32>
    %cst_109 = arith.constant dense<0.000000e+00> : vector<1x96xf32>
    %298 = tpu.matmul %293, %296, %cst_109 {dimension_numbers = #tpu.dot_dimension_numbers<[1], [0], [0], [1], [0, 0, 1, 1], [], []>} : vector<1x32xf32>, vector<32x96xf32>, vector<1x96xf32> -> vector<1x96xf32>
    %299 = arith.addf %298, %297 : vector<1x96xf32>
    %300 = vector.extract_strided_slice %295 {offsets = [0, 0], sizes = [1, 32], strides = [1, 1]} : vector<1x96xf32> to vector<1x32xf32>
    %301 = vector.extract_strided_slice %299 {offsets = [0, 0], sizes = [1, 32], strides = [1, 1]} : vector<1x96xf32> to vector<1x32xf32>
    %302 = arith.addf %300, %301 : vector<1x32xf32>
    %303 = arith.negf %302 : vector<1x32xf32>
    %304 = math.exp %303 : vector<1x32xf32>
    %cst_110 = arith.constant 1.000000e+00 : f32
    %305 = vector.broadcast %cst_110 : f32 to vector<1x32xf32>
    %306 = arith.addf %305, %304 : vector<1x32xf32>
    %307 = arith.divf %305, %306 : vector<1x32xf32>
    %308 = vector.extract_strided_slice %295 {offsets = [0, 32], sizes = [1, 32], strides = [1, 1]} : vector<1x96xf32> to vector<1x32xf32>
    %309 = vector.extract_strided_slice %299 {offsets = [0, 32], sizes = [1, 32], strides = [1, 1]} : vector<1x96xf32> to vector<1x32xf32>
    %310 = arith.addf %308, %309 : vector<1x32xf32>
    %311 = arith.negf %310 : vector<1x32xf32>
    %312 = math.exp %311 : vector<1x32xf32>
    %cst_111 = arith.constant 1.000000e+00 : f32
    %313 = vector.broadcast %cst_111 : f32 to vector<1x32xf32>
    %314 = arith.addf %313, %312 : vector<1x32xf32>
    %315 = arith.divf %313, %314 : vector<1x32xf32>
    %316 = vector.extract_strided_slice %295 {offsets = [0, 64], sizes = [1, 32], strides = [1, 1]} : vector<1x96xf32> to vector<1x32xf32>
    %317 = vector.extract_strided_slice %299 {offsets = [0, 64], sizes = [1, 32], strides = [1, 1]} : vector<1x96xf32> to vector<1x32xf32>
    %318 = arith.mulf %307, %317 : vector<1x32xf32>
    %319 = arith.addf %316, %318 : vector<1x32xf32>
    %320 = math.tanh %319 : vector<1x32xf32>
    %cst_112 = arith.constant 1.000000e+00 : f32
    %321 = vector.broadcast %cst_112 : f32 to vector<1x32xf32>
    %322 = arith.subf %321, %315 : vector<1x32xf32>
    %323 = arith.mulf %322, %320 : vector<1x32xf32>
    %324 = arith.mulf %315, %293 : vector<1x32xf32>
    %325 = arith.addf %323, %324 : vector<1x32xf32>
    %c8_i32 = arith.constant 8 : i32
    %326 = arith.index_cast %c8_i32 : i32 to index
    %c0_113 = arith.constant 0 : index
    %327 = vector.load %arg18[%326, %c0_113] : memref<22x96xf32, #tpu.memory_space<vmem>>, vector<1x96xf32>
    %c0_114 = arith.constant 0 : index
    %c0_115 = arith.constant 0 : index
    %328 = vector.load %arg5[%c0_114, %c0_115] : memref<32x96xf32, #tpu.memory_space<vmem>>, vector<32x96xf32>
    %c0_116 = arith.constant 0 : index
    %c0_117 = arith.constant 0 : index
    %329 = vector.load %arg7[%c0_116, %c0_117] : memref<1x96xf32, #tpu.memory_space<vmem>>, vector<1x96xf32>
    %cst_118 = arith.constant dense<0.000000e+00> : vector<1x96xf32>
    %330 = tpu.matmul %325, %328, %cst_118 {dimension_numbers = #tpu.dot_dimension_numbers<[1], [0], [0], [1], [0, 0, 1, 1], [], []>} : vector<1x32xf32>, vector<32x96xf32>, vector<1x96xf32> -> vector<1x96xf32>
    %331 = arith.addf %330, %329 : vector<1x96xf32>
    %332 = vector.extract_strided_slice %327 {offsets = [0, 0], sizes = [1, 32], strides = [1, 1]} : vector<1x96xf32> to vector<1x32xf32>
    %333 = vector.extract_strided_slice %331 {offsets = [0, 0], sizes = [1, 32], strides = [1, 1]} : vector<1x96xf32> to vector<1x32xf32>
    %334 = arith.addf %332, %333 : vector<1x32xf32>
    %335 = arith.negf %334 : vector<1x32xf32>
    %336 = math.exp %335 : vector<1x32xf32>
    %cst_119 = arith.constant 1.000000e+00 : f32
    %337 = vector.broadcast %cst_119 : f32 to vector<1x32xf32>
    %338 = arith.addf %337, %336 : vector<1x32xf32>
    %339 = arith.divf %337, %338 : vector<1x32xf32>
    %340 = vector.extract_strided_slice %327 {offsets = [0, 32], sizes = [1, 32], strides = [1, 1]} : vector<1x96xf32> to vector<1x32xf32>
    %341 = vector.extract_strided_slice %331 {offsets = [0, 32], sizes = [1, 32], strides = [1, 1]} : vector<1x96xf32> to vector<1x32xf32>
    %342 = arith.addf %340, %341 : vector<1x32xf32>
    %343 = arith.negf %342 : vector<1x32xf32>
    %344 = math.exp %343 : vector<1x32xf32>
    %cst_120 = arith.constant 1.000000e+00 : f32
    %345 = vector.broadcast %cst_120 : f32 to vector<1x32xf32>
    %346 = arith.addf %345, %344 : vector<1x32xf32>
    %347 = arith.divf %345, %346 : vector<1x32xf32>
    %348 = vector.extract_strided_slice %327 {offsets = [0, 64], sizes = [1, 32], strides = [1, 1]} : vector<1x96xf32> to vector<1x32xf32>
    %349 = vector.extract_strided_slice %331 {offsets = [0, 64], sizes = [1, 32], strides = [1, 1]} : vector<1x96xf32> to vector<1x32xf32>
    %350 = arith.mulf %339, %349 : vector<1x32xf32>
    %351 = arith.addf %348, %350 : vector<1x32xf32>
    %352 = math.tanh %351 : vector<1x32xf32>
    %cst_121 = arith.constant 1.000000e+00 : f32
    %353 = vector.broadcast %cst_121 : f32 to vector<1x32xf32>
    %354 = arith.subf %353, %347 : vector<1x32xf32>
    %355 = arith.mulf %354, %352 : vector<1x32xf32>
    %356 = arith.mulf %347, %325 : vector<1x32xf32>
    %357 = arith.addf %355, %356 : vector<1x32xf32>
    %c9_i32 = arith.constant 9 : i32
    %358 = arith.index_cast %c9_i32 : i32 to index
    %c0_122 = arith.constant 0 : index
    %359 = vector.load %arg18[%358, %c0_122] : memref<22x96xf32, #tpu.memory_space<vmem>>, vector<1x96xf32>
    %c0_123 = arith.constant 0 : index
    %c0_124 = arith.constant 0 : index
    %360 = vector.load %arg5[%c0_123, %c0_124] : memref<32x96xf32, #tpu.memory_space<vmem>>, vector<32x96xf32>
    %c0_125 = arith.constant 0 : index
    %c0_126 = arith.constant 0 : index
    %361 = vector.load %arg7[%c0_125, %c0_126] : memref<1x96xf32, #tpu.memory_space<vmem>>, vector<1x96xf32>
    %cst_127 = arith.constant dense<0.000000e+00> : vector<1x96xf32>
    %362 = tpu.matmul %357, %360, %cst_127 {dimension_numbers = #tpu.dot_dimension_numbers<[1], [0], [0], [1], [0, 0, 1, 1], [], []>} : vector<1x32xf32>, vector<32x96xf32>, vector<1x96xf32> -> vector<1x96xf32>
    %363 = arith.addf %362, %361 : vector<1x96xf32>
    %364 = vector.extract_strided_slice %359 {offsets = [0, 0], sizes = [1, 32], strides = [1, 1]} : vector<1x96xf32> to vector<1x32xf32>
    %365 = vector.extract_strided_slice %363 {offsets = [0, 0], sizes = [1, 32], strides = [1, 1]} : vector<1x96xf32> to vector<1x32xf32>
    %366 = arith.addf %364, %365 : vector<1x32xf32>
    %367 = arith.negf %366 : vector<1x32xf32>
    %368 = math.exp %367 : vector<1x32xf32>
    %cst_128 = arith.constant 1.000000e+00 : f32
    %369 = vector.broadcast %cst_128 : f32 to vector<1x32xf32>
    %370 = arith.addf %369, %368 : vector<1x32xf32>
    %371 = arith.divf %369, %370 : vector<1x32xf32>
    %372 = vector.extract_strided_slice %359 {offsets = [0, 32], sizes = [1, 32], strides = [1, 1]} : vector<1x96xf32> to vector<1x32xf32>
    %373 = vector.extract_strided_slice %363 {offsets = [0, 32], sizes = [1, 32], strides = [1, 1]} : vector<1x96xf32> to vector<1x32xf32>
    %374 = arith.addf %372, %373 : vector<1x32xf32>
    %375 = arith.negf %374 : vector<1x32xf32>
    %376 = math.exp %375 : vector<1x32xf32>
    %cst_129 = arith.constant 1.000000e+00 : f32
    %377 = vector.broadcast %cst_129 : f32 to vector<1x32xf32>
    %378 = arith.addf %377, %376 : vector<1x32xf32>
    %379 = arith.divf %377, %378 : vector<1x32xf32>
    %380 = vector.extract_strided_slice %359 {offsets = [0, 64], sizes = [1, 32], strides = [1, 1]} : vector<1x96xf32> to vector<1x32xf32>
    %381 = vector.extract_strided_slice %363 {offsets = [0, 64], sizes = [1, 32], strides = [1, 1]} : vector<1x96xf32> to vector<1x32xf32>
    %382 = arith.mulf %371, %381 : vector<1x32xf32>
    %383 = arith.addf %380, %382 : vector<1x32xf32>
    %384 = math.tanh %383 : vector<1x32xf32>
    %cst_130 = arith.constant 1.000000e+00 : f32
    %385 = vector.broadcast %cst_130 : f32 to vector<1x32xf32>
    %386 = arith.subf %385, %379 : vector<1x32xf32>
    %387 = arith.mulf %386, %384 : vector<1x32xf32>
    %388 = arith.mulf %379, %357 : vector<1x32xf32>
    %389 = arith.addf %387, %388 : vector<1x32xf32>
    %c10_i32 = arith.constant 10 : i32
    %390 = arith.index_cast %c10_i32 : i32 to index
    %c0_131 = arith.constant 0 : index
    %391 = vector.load %arg18[%390, %c0_131] : memref<22x96xf32, #tpu.memory_space<vmem>>, vector<1x96xf32>
    %c0_132 = arith.constant 0 : index
    %c0_133 = arith.constant 0 : index
    %392 = vector.load %arg5[%c0_132, %c0_133] : memref<32x96xf32, #tpu.memory_space<vmem>>, vector<32x96xf32>
    %c0_134 = arith.constant 0 : index
    %c0_135 = arith.constant 0 : index
    %393 = vector.load %arg7[%c0_134, %c0_135] : memref<1x96xf32, #tpu.memory_space<vmem>>, vector<1x96xf32>
    %cst_136 = arith.constant dense<0.000000e+00> : vector<1x96xf32>
    %394 = tpu.matmul %389, %392, %cst_136 {dimension_numbers = #tpu.dot_dimension_numbers<[1], [0], [0], [1], [0, 0, 1, 1], [], []>} : vector<1x32xf32>, vector<32x96xf32>, vector<1x96xf32> -> vector<1x96xf32>
    %395 = arith.addf %394, %393 : vector<1x96xf32>
    %396 = vector.extract_strided_slice %391 {offsets = [0, 0], sizes = [1, 32], strides = [1, 1]} : vector<1x96xf32> to vector<1x32xf32>
    %397 = vector.extract_strided_slice %395 {offsets = [0, 0], sizes = [1, 32], strides = [1, 1]} : vector<1x96xf32> to vector<1x32xf32>
    %398 = arith.addf %396, %397 : vector<1x32xf32>
    %399 = arith.negf %398 : vector<1x32xf32>
    %400 = math.exp %399 : vector<1x32xf32>
    %cst_137 = arith.constant 1.000000e+00 : f32
    %401 = vector.broadcast %cst_137 : f32 to vector<1x32xf32>
    %402 = arith.addf %401, %400 : vector<1x32xf32>
    %403 = arith.divf %401, %402 : vector<1x32xf32>
    %404 = vector.extract_strided_slice %391 {offsets = [0, 32], sizes = [1, 32], strides = [1, 1]} : vector<1x96xf32> to vector<1x32xf32>
    %405 = vector.extract_strided_slice %395 {offsets = [0, 32], sizes = [1, 32], strides = [1, 1]} : vector<1x96xf32> to vector<1x32xf32>
    %406 = arith.addf %404, %405 : vector<1x32xf32>
    %407 = arith.negf %406 : vector<1x32xf32>
    %408 = math.exp %407 : vector<1x32xf32>
    %cst_138 = arith.constant 1.000000e+00 : f32
    %409 = vector.broadcast %cst_138 : f32 to vector<1x32xf32>
    %410 = arith.addf %409, %408 : vector<1x32xf32>
    %411 = arith.divf %409, %410 : vector<1x32xf32>
    %412 = vector.extract_strided_slice %391 {offsets = [0, 64], sizes = [1, 32], strides = [1, 1]} : vector<1x96xf32> to vector<1x32xf32>
    %413 = vector.extract_strided_slice %395 {offsets = [0, 64], sizes = [1, 32], strides = [1, 1]} : vector<1x96xf32> to vector<1x32xf32>
    %414 = arith.mulf %403, %413 : vector<1x32xf32>
    %415 = arith.addf %412, %414 : vector<1x32xf32>
    %416 = math.tanh %415 : vector<1x32xf32>
    %cst_139 = arith.constant 1.000000e+00 : f32
    %417 = vector.broadcast %cst_139 : f32 to vector<1x32xf32>
    %418 = arith.subf %417, %411 : vector<1x32xf32>
    %419 = arith.mulf %418, %416 : vector<1x32xf32>
    %420 = arith.mulf %411, %389 : vector<1x32xf32>
    %421 = arith.addf %419, %420 : vector<1x32xf32>
    %c11_i32 = arith.constant 11 : i32
    %422 = arith.index_cast %c11_i32 : i32 to index
    %c0_140 = arith.constant 0 : index
    %423 = vector.load %arg18[%422, %c0_140] : memref<22x96xf32, #tpu.memory_space<vmem>>, vector<1x96xf32>
    %c0_141 = arith.constant 0 : index
    %c0_142 = arith.constant 0 : index
    %424 = vector.load %arg5[%c0_141, %c0_142] : memref<32x96xf32, #tpu.memory_space<vmem>>, vector<32x96xf32>
    %c0_143 = arith.constant 0 : index
    %c0_144 = arith.constant 0 : index
    %425 = vector.load %arg7[%c0_143, %c0_144] : memref<1x96xf32, #tpu.memory_space<vmem>>, vector<1x96xf32>
    %cst_145 = arith.constant dense<0.000000e+00> : vector<1x96xf32>
    %426 = tpu.matmul %421, %424, %cst_145 {dimension_numbers = #tpu.dot_dimension_numbers<[1], [0], [0], [1], [0, 0, 1, 1], [], []>} : vector<1x32xf32>, vector<32x96xf32>, vector<1x96xf32> -> vector<1x96xf32>
    %427 = arith.addf %426, %425 : vector<1x96xf32>
    %428 = vector.extract_strided_slice %423 {offsets = [0, 0], sizes = [1, 32], strides = [1, 1]} : vector<1x96xf32> to vector<1x32xf32>
    %429 = vector.extract_strided_slice %427 {offsets = [0, 0], sizes = [1, 32], strides = [1, 1]} : vector<1x96xf32> to vector<1x32xf32>
    %430 = arith.addf %428, %429 : vector<1x32xf32>
    %431 = arith.negf %430 : vector<1x32xf32>
    %432 = math.exp %431 : vector<1x32xf32>
    %cst_146 = arith.constant 1.000000e+00 : f32
    %433 = vector.broadcast %cst_146 : f32 to vector<1x32xf32>
    %434 = arith.addf %433, %432 : vector<1x32xf32>
    %435 = arith.divf %433, %434 : vector<1x32xf32>
    %436 = vector.extract_strided_slice %423 {offsets = [0, 32], sizes = [1, 32], strides = [1, 1]} : vector<1x96xf32> to vector<1x32xf32>
    %437 = vector.extract_strided_slice %427 {offsets = [0, 32], sizes = [1, 32], strides = [1, 1]} : vector<1x96xf32> to vector<1x32xf32>
    %438 = arith.addf %436, %437 : vector<1x32xf32>
    %439 = arith.negf %438 : vector<1x32xf32>
    %440 = math.exp %439 : vector<1x32xf32>
    %cst_147 = arith.constant 1.000000e+00 : f32
    %441 = vector.broadcast %cst_147 : f32 to vector<1x32xf32>
    %442 = arith.addf %441, %440 : vector<1x32xf32>
    %443 = arith.divf %441, %442 : vector<1x32xf32>
    %444 = vector.extract_strided_slice %423 {offsets = [0, 64], sizes = [1, 32], strides = [1, 1]} : vector<1x96xf32> to vector<1x32xf32>
    %445 = vector.extract_strided_slice %427 {offsets = [0, 64], sizes = [1, 32], strides = [1, 1]} : vector<1x96xf32> to vector<1x32xf32>
    %446 = arith.mulf %435, %445 : vector<1x32xf32>
    %447 = arith.addf %444, %446 : vector<1x32xf32>
    %448 = math.tanh %447 : vector<1x32xf32>
    %cst_148 = arith.constant 1.000000e+00 : f32
    %449 = vector.broadcast %cst_148 : f32 to vector<1x32xf32>
    %450 = arith.subf %449, %443 : vector<1x32xf32>
    %451 = arith.mulf %450, %448 : vector<1x32xf32>
    %452 = arith.mulf %443, %421 : vector<1x32xf32>
    %453 = arith.addf %451, %452 : vector<1x32xf32>
    %c12_i32 = arith.constant 12 : i32
    %454 = arith.index_cast %c12_i32 : i32 to index
    %c0_149 = arith.constant 0 : index
    %455 = vector.load %arg18[%454, %c0_149] : memref<22x96xf32, #tpu.memory_space<vmem>>, vector<1x96xf32>
    %c0_150 = arith.constant 0 : index
    %c0_151 = arith.constant 0 : index
    %456 = vector.load %arg5[%c0_150, %c0_151] : memref<32x96xf32, #tpu.memory_space<vmem>>, vector<32x96xf32>
    %c0_152 = arith.constant 0 : index
    %c0_153 = arith.constant 0 : index
    %457 = vector.load %arg7[%c0_152, %c0_153] : memref<1x96xf32, #tpu.memory_space<vmem>>, vector<1x96xf32>
    %cst_154 = arith.constant dense<0.000000e+00> : vector<1x96xf32>
    %458 = tpu.matmul %453, %456, %cst_154 {dimension_numbers = #tpu.dot_dimension_numbers<[1], [0], [0], [1], [0, 0, 1, 1], [], []>} : vector<1x32xf32>, vector<32x96xf32>, vector<1x96xf32> -> vector<1x96xf32>
    %459 = arith.addf %458, %457 : vector<1x96xf32>
    %460 = vector.extract_strided_slice %455 {offsets = [0, 0], sizes = [1, 32], strides = [1, 1]} : vector<1x96xf32> to vector<1x32xf32>
    %461 = vector.extract_strided_slice %459 {offsets = [0, 0], sizes = [1, 32], strides = [1, 1]} : vector<1x96xf32> to vector<1x32xf32>
    %462 = arith.addf %460, %461 : vector<1x32xf32>
    %463 = arith.negf %462 : vector<1x32xf32>
    %464 = math.exp %463 : vector<1x32xf32>
    %cst_155 = arith.constant 1.000000e+00 : f32
    %465 = vector.broadcast %cst_155 : f32 to vector<1x32xf32>
    %466 = arith.addf %465, %464 : vector<1x32xf32>
    %467 = arith.divf %465, %466 : vector<1x32xf32>
    %468 = vector.extract_strided_slice %455 {offsets = [0, 32], sizes = [1, 32], strides = [1, 1]} : vector<1x96xf32> to vector<1x32xf32>
    %469 = vector.extract_strided_slice %459 {offsets = [0, 32], sizes = [1, 32], strides = [1, 1]} : vector<1x96xf32> to vector<1x32xf32>
    %470 = arith.addf %468, %469 : vector<1x32xf32>
    %471 = arith.negf %470 : vector<1x32xf32>
    %472 = math.exp %471 : vector<1x32xf32>
    %cst_156 = arith.constant 1.000000e+00 : f32
    %473 = vector.broadcast %cst_156 : f32 to vector<1x32xf32>
    %474 = arith.addf %473, %472 : vector<1x32xf32>
    %475 = arith.divf %473, %474 : vector<1x32xf32>
    %476 = vector.extract_strided_slice %455 {offsets = [0, 64], sizes = [1, 32], strides = [1, 1]} : vector<1x96xf32> to vector<1x32xf32>
    %477 = vector.extract_strided_slice %459 {offsets = [0, 64], sizes = [1, 32], strides = [1, 1]} : vector<1x96xf32> to vector<1x32xf32>
    %478 = arith.mulf %467, %477 : vector<1x32xf32>
    %479 = arith.addf %476, %478 : vector<1x32xf32>
    %480 = math.tanh %479 : vector<1x32xf32>
    %cst_157 = arith.constant 1.000000e+00 : f32
    %481 = vector.broadcast %cst_157 : f32 to vector<1x32xf32>
    %482 = arith.subf %481, %475 : vector<1x32xf32>
    %483 = arith.mulf %482, %480 : vector<1x32xf32>
    %484 = arith.mulf %475, %453 : vector<1x32xf32>
    %485 = arith.addf %483, %484 : vector<1x32xf32>
    %c13_i32 = arith.constant 13 : i32
    %486 = arith.index_cast %c13_i32 : i32 to index
    %c0_158 = arith.constant 0 : index
    %487 = vector.load %arg18[%486, %c0_158] : memref<22x96xf32, #tpu.memory_space<vmem>>, vector<1x96xf32>
    %c0_159 = arith.constant 0 : index
    %c0_160 = arith.constant 0 : index
    %488 = vector.load %arg5[%c0_159, %c0_160] : memref<32x96xf32, #tpu.memory_space<vmem>>, vector<32x96xf32>
    %c0_161 = arith.constant 0 : index
    %c0_162 = arith.constant 0 : index
    %489 = vector.load %arg7[%c0_161, %c0_162] : memref<1x96xf32, #tpu.memory_space<vmem>>, vector<1x96xf32>
    %cst_163 = arith.constant dense<0.000000e+00> : vector<1x96xf32>
    %490 = tpu.matmul %485, %488, %cst_163 {dimension_numbers = #tpu.dot_dimension_numbers<[1], [0], [0], [1], [0, 0, 1, 1], [], []>} : vector<1x32xf32>, vector<32x96xf32>, vector<1x96xf32> -> vector<1x96xf32>
    %491 = arith.addf %490, %489 : vector<1x96xf32>
    %492 = vector.extract_strided_slice %487 {offsets = [0, 0], sizes = [1, 32], strides = [1, 1]} : vector<1x96xf32> to vector<1x32xf32>
    %493 = vector.extract_strided_slice %491 {offsets = [0, 0], sizes = [1, 32], strides = [1, 1]} : vector<1x96xf32> to vector<1x32xf32>
    %494 = arith.addf %492, %493 : vector<1x32xf32>
    %495 = arith.negf %494 : vector<1x32xf32>
    %496 = math.exp %495 : vector<1x32xf32>
    %cst_164 = arith.constant 1.000000e+00 : f32
    %497 = vector.broadcast %cst_164 : f32 to vector<1x32xf32>
    %498 = arith.addf %497, %496 : vector<1x32xf32>
    %499 = arith.divf %497, %498 : vector<1x32xf32>
    %500 = vector.extract_strided_slice %487 {offsets = [0, 32], sizes = [1, 32], strides = [1, 1]} : vector<1x96xf32> to vector<1x32xf32>
    %501 = vector.extract_strided_slice %491 {offsets = [0, 32], sizes = [1, 32], strides = [1, 1]} : vector<1x96xf32> to vector<1x32xf32>
    %502 = arith.addf %500, %501 : vector<1x32xf32>
    %503 = arith.negf %502 : vector<1x32xf32>
    %504 = math.exp %503 : vector<1x32xf32>
    %cst_165 = arith.constant 1.000000e+00 : f32
    %505 = vector.broadcast %cst_165 : f32 to vector<1x32xf32>
    %506 = arith.addf %505, %504 : vector<1x32xf32>
    %507 = arith.divf %505, %506 : vector<1x32xf32>
    %508 = vector.extract_strided_slice %487 {offsets = [0, 64], sizes = [1, 32], strides = [1, 1]} : vector<1x96xf32> to vector<1x32xf32>
    %509 = vector.extract_strided_slice %491 {offsets = [0, 64], sizes = [1, 32], strides = [1, 1]} : vector<1x96xf32> to vector<1x32xf32>
    %510 = arith.mulf %499, %509 : vector<1x32xf32>
    %511 = arith.addf %508, %510 : vector<1x32xf32>
    %512 = math.tanh %511 : vector<1x32xf32>
    %cst_166 = arith.constant 1.000000e+00 : f32
    %513 = vector.broadcast %cst_166 : f32 to vector<1x32xf32>
    %514 = arith.subf %513, %507 : vector<1x32xf32>
    %515 = arith.mulf %514, %512 : vector<1x32xf32>
    %516 = arith.mulf %507, %485 : vector<1x32xf32>
    %517 = arith.addf %515, %516 : vector<1x32xf32>
    %c14_i32 = arith.constant 14 : i32
    %518 = arith.index_cast %c14_i32 : i32 to index
    %c0_167 = arith.constant 0 : index
    %519 = vector.load %arg18[%518, %c0_167] : memref<22x96xf32, #tpu.memory_space<vmem>>, vector<1x96xf32>
    %c0_168 = arith.constant 0 : index
    %c0_169 = arith.constant 0 : index
    %520 = vector.load %arg5[%c0_168, %c0_169] : memref<32x96xf32, #tpu.memory_space<vmem>>, vector<32x96xf32>
    %c0_170 = arith.constant 0 : index
    %c0_171 = arith.constant 0 : index
    %521 = vector.load %arg7[%c0_170, %c0_171] : memref<1x96xf32, #tpu.memory_space<vmem>>, vector<1x96xf32>
    %cst_172 = arith.constant dense<0.000000e+00> : vector<1x96xf32>
    %522 = tpu.matmul %517, %520, %cst_172 {dimension_numbers = #tpu.dot_dimension_numbers<[1], [0], [0], [1], [0, 0, 1, 1], [], []>} : vector<1x32xf32>, vector<32x96xf32>, vector<1x96xf32> -> vector<1x96xf32>
    %523 = arith.addf %522, %521 : vector<1x96xf32>
    %524 = vector.extract_strided_slice %519 {offsets = [0, 0], sizes = [1, 32], strides = [1, 1]} : vector<1x96xf32> to vector<1x32xf32>
    %525 = vector.extract_strided_slice %523 {offsets = [0, 0], sizes = [1, 32], strides = [1, 1]} : vector<1x96xf32> to vector<1x32xf32>
    %526 = arith.addf %524, %525 : vector<1x32xf32>
    %527 = arith.negf %526 : vector<1x32xf32>
    %528 = math.exp %527 : vector<1x32xf32>
    %cst_173 = arith.constant 1.000000e+00 : f32
    %529 = vector.broadcast %cst_173 : f32 to vector<1x32xf32>
    %530 = arith.addf %529, %528 : vector<1x32xf32>
    %531 = arith.divf %529, %530 : vector<1x32xf32>
    %532 = vector.extract_strided_slice %519 {offsets = [0, 32], sizes = [1, 32], strides = [1, 1]} : vector<1x96xf32> to vector<1x32xf32>
    %533 = vector.extract_strided_slice %523 {offsets = [0, 32], sizes = [1, 32], strides = [1, 1]} : vector<1x96xf32> to vector<1x32xf32>
    %534 = arith.addf %532, %533 : vector<1x32xf32>
    %535 = arith.negf %534 : vector<1x32xf32>
    %536 = math.exp %535 : vector<1x32xf32>
    %cst_174 = arith.constant 1.000000e+00 : f32
    %537 = vector.broadcast %cst_174 : f32 to vector<1x32xf32>
    %538 = arith.addf %537, %536 : vector<1x32xf32>
    %539 = arith.divf %537, %538 : vector<1x32xf32>
    %540 = vector.extract_strided_slice %519 {offsets = [0, 64], sizes = [1, 32], strides = [1, 1]} : vector<1x96xf32> to vector<1x32xf32>
    %541 = vector.extract_strided_slice %523 {offsets = [0, 64], sizes = [1, 32], strides = [1, 1]} : vector<1x96xf32> to vector<1x32xf32>
    %542 = arith.mulf %531, %541 : vector<1x32xf32>
    %543 = arith.addf %540, %542 : vector<1x32xf32>
    %544 = math.tanh %543 : vector<1x32xf32>
    %cst_175 = arith.constant 1.000000e+00 : f32
    %545 = vector.broadcast %cst_175 : f32 to vector<1x32xf32>
    %546 = arith.subf %545, %539 : vector<1x32xf32>
    %547 = arith.mulf %546, %544 : vector<1x32xf32>
    %548 = arith.mulf %539, %517 : vector<1x32xf32>
    %549 = arith.addf %547, %548 : vector<1x32xf32>
    %c15_i32 = arith.constant 15 : i32
    %550 = arith.index_cast %c15_i32 : i32 to index
    %c0_176 = arith.constant 0 : index
    %551 = vector.load %arg18[%550, %c0_176] : memref<22x96xf32, #tpu.memory_space<vmem>>, vector<1x96xf32>
    %c0_177 = arith.constant 0 : index
    %c0_178 = arith.constant 0 : index
    %552 = vector.load %arg5[%c0_177, %c0_178] : memref<32x96xf32, #tpu.memory_space<vmem>>, vector<32x96xf32>
    %c0_179 = arith.constant 0 : index
    %c0_180 = arith.constant 0 : index
    %553 = vector.load %arg7[%c0_179, %c0_180] : memref<1x96xf32, #tpu.memory_space<vmem>>, vector<1x96xf32>
    %cst_181 = arith.constant dense<0.000000e+00> : vector<1x96xf32>
    %554 = tpu.matmul %549, %552, %cst_181 {dimension_numbers = #tpu.dot_dimension_numbers<[1], [0], [0], [1], [0, 0, 1, 1], [], []>} : vector<1x32xf32>, vector<32x96xf32>, vector<1x96xf32> -> vector<1x96xf32>
    %555 = arith.addf %554, %553 : vector<1x96xf32>
    %556 = vector.extract_strided_slice %551 {offsets = [0, 0], sizes = [1, 32], strides = [1, 1]} : vector<1x96xf32> to vector<1x32xf32>
    %557 = vector.extract_strided_slice %555 {offsets = [0, 0], sizes = [1, 32], strides = [1, 1]} : vector<1x96xf32> to vector<1x32xf32>
    %558 = arith.addf %556, %557 : vector<1x32xf32>
    %559 = arith.negf %558 : vector<1x32xf32>
    %560 = math.exp %559 : vector<1x32xf32>
    %cst_182 = arith.constant 1.000000e+00 : f32
    %561 = vector.broadcast %cst_182 : f32 to vector<1x32xf32>
    %562 = arith.addf %561, %560 : vector<1x32xf32>
    %563 = arith.divf %561, %562 : vector<1x32xf32>
    %564 = vector.extract_strided_slice %551 {offsets = [0, 32], sizes = [1, 32], strides = [1, 1]} : vector<1x96xf32> to vector<1x32xf32>
    %565 = vector.extract_strided_slice %555 {offsets = [0, 32], sizes = [1, 32], strides = [1, 1]} : vector<1x96xf32> to vector<1x32xf32>
    %566 = arith.addf %564, %565 : vector<1x32xf32>
    %567 = arith.negf %566 : vector<1x32xf32>
    %568 = math.exp %567 : vector<1x32xf32>
    %cst_183 = arith.constant 1.000000e+00 : f32
    %569 = vector.broadcast %cst_183 : f32 to vector<1x32xf32>
    %570 = arith.addf %569, %568 : vector<1x32xf32>
    %571 = arith.divf %569, %570 : vector<1x32xf32>
    %572 = vector.extract_strided_slice %551 {offsets = [0, 64], sizes = [1, 32], strides = [1, 1]} : vector<1x96xf32> to vector<1x32xf32>
    %573 = vector.extract_strided_slice %555 {offsets = [0, 64], sizes = [1, 32], strides = [1, 1]} : vector<1x96xf32> to vector<1x32xf32>
    %574 = arith.mulf %563, %573 : vector<1x32xf32>
    %575 = arith.addf %572, %574 : vector<1x32xf32>
    %576 = math.tanh %575 : vector<1x32xf32>
    %cst_184 = arith.constant 1.000000e+00 : f32
    %577 = vector.broadcast %cst_184 : f32 to vector<1x32xf32>
    %578 = arith.subf %577, %571 : vector<1x32xf32>
    %579 = arith.mulf %578, %576 : vector<1x32xf32>
    %580 = arith.mulf %571, %549 : vector<1x32xf32>
    %581 = arith.addf %579, %580 : vector<1x32xf32>
    %c16_i32 = arith.constant 16 : i32
    %582 = arith.index_cast %c16_i32 : i32 to index
    %c0_185 = arith.constant 0 : index
    %583 = vector.load %arg18[%582, %c0_185] : memref<22x96xf32, #tpu.memory_space<vmem>>, vector<1x96xf32>
    %c0_186 = arith.constant 0 : index
    %c0_187 = arith.constant 0 : index
    %584 = vector.load %arg5[%c0_186, %c0_187] : memref<32x96xf32, #tpu.memory_space<vmem>>, vector<32x96xf32>
    %c0_188 = arith.constant 0 : index
    %c0_189 = arith.constant 0 : index
    %585 = vector.load %arg7[%c0_188, %c0_189] : memref<1x96xf32, #tpu.memory_space<vmem>>, vector<1x96xf32>
    %cst_190 = arith.constant dense<0.000000e+00> : vector<1x96xf32>
    %586 = tpu.matmul %581, %584, %cst_190 {dimension_numbers = #tpu.dot_dimension_numbers<[1], [0], [0], [1], [0, 0, 1, 1], [], []>} : vector<1x32xf32>, vector<32x96xf32>, vector<1x96xf32> -> vector<1x96xf32>
    %587 = arith.addf %586, %585 : vector<1x96xf32>
    %588 = vector.extract_strided_slice %583 {offsets = [0, 0], sizes = [1, 32], strides = [1, 1]} : vector<1x96xf32> to vector<1x32xf32>
    %589 = vector.extract_strided_slice %587 {offsets = [0, 0], sizes = [1, 32], strides = [1, 1]} : vector<1x96xf32> to vector<1x32xf32>
    %590 = arith.addf %588, %589 : vector<1x32xf32>
    %591 = arith.negf %590 : vector<1x32xf32>
    %592 = math.exp %591 : vector<1x32xf32>
    %cst_191 = arith.constant 1.000000e+00 : f32
    %593 = vector.broadcast %cst_191 : f32 to vector<1x32xf32>
    %594 = arith.addf %593, %592 : vector<1x32xf32>
    %595 = arith.divf %593, %594 : vector<1x32xf32>
    %596 = vector.extract_strided_slice %583 {offsets = [0, 32], sizes = [1, 32], strides = [1, 1]} : vector<1x96xf32> to vector<1x32xf32>
    %597 = vector.extract_strided_slice %587 {offsets = [0, 32], sizes = [1, 32], strides = [1, 1]} : vector<1x96xf32> to vector<1x32xf32>
    %598 = arith.addf %596, %597 : vector<1x32xf32>
    %599 = arith.negf %598 : vector<1x32xf32>
    %600 = math.exp %599 : vector<1x32xf32>
    %cst_192 = arith.constant 1.000000e+00 : f32
    %601 = vector.broadcast %cst_192 : f32 to vector<1x32xf32>
    %602 = arith.addf %601, %600 : vector<1x32xf32>
    %603 = arith.divf %601, %602 : vector<1x32xf32>
    %604 = vector.extract_strided_slice %583 {offsets = [0, 64], sizes = [1, 32], strides = [1, 1]} : vector<1x96xf32> to vector<1x32xf32>
    %605 = vector.extract_strided_slice %587 {offsets = [0, 64], sizes = [1, 32], strides = [1, 1]} : vector<1x96xf32> to vector<1x32xf32>
    %606 = arith.mulf %595, %605 : vector<1x32xf32>
    %607 = arith.addf %604, %606 : vector<1x32xf32>
    %608 = math.tanh %607 : vector<1x32xf32>
    %cst_193 = arith.constant 1.000000e+00 : f32
    %609 = vector.broadcast %cst_193 : f32 to vector<1x32xf32>
    %610 = arith.subf %609, %603 : vector<1x32xf32>
    %611 = arith.mulf %610, %608 : vector<1x32xf32>
    %612 = arith.mulf %603, %581 : vector<1x32xf32>
    %613 = arith.addf %611, %612 : vector<1x32xf32>
    %c17_i32 = arith.constant 17 : i32
    %614 = arith.index_cast %c17_i32 : i32 to index
    %c0_194 = arith.constant 0 : index
    %615 = vector.load %arg18[%614, %c0_194] : memref<22x96xf32, #tpu.memory_space<vmem>>, vector<1x96xf32>
    %c0_195 = arith.constant 0 : index
    %c0_196 = arith.constant 0 : index
    %616 = vector.load %arg5[%c0_195, %c0_196] : memref<32x96xf32, #tpu.memory_space<vmem>>, vector<32x96xf32>
    %c0_197 = arith.constant 0 : index
    %c0_198 = arith.constant 0 : index
    %617 = vector.load %arg7[%c0_197, %c0_198] : memref<1x96xf32, #tpu.memory_space<vmem>>, vector<1x96xf32>
    %cst_199 = arith.constant dense<0.000000e+00> : vector<1x96xf32>
    %618 = tpu.matmul %613, %616, %cst_199 {dimension_numbers = #tpu.dot_dimension_numbers<[1], [0], [0], [1], [0, 0, 1, 1], [], []>} : vector<1x32xf32>, vector<32x96xf32>, vector<1x96xf32> -> vector<1x96xf32>
    %619 = arith.addf %618, %617 : vector<1x96xf32>
    %620 = vector.extract_strided_slice %615 {offsets = [0, 0], sizes = [1, 32], strides = [1, 1]} : vector<1x96xf32> to vector<1x32xf32>
    %621 = vector.extract_strided_slice %619 {offsets = [0, 0], sizes = [1, 32], strides = [1, 1]} : vector<1x96xf32> to vector<1x32xf32>
    %622 = arith.addf %620, %621 : vector<1x32xf32>
    %623 = arith.negf %622 : vector<1x32xf32>
    %624 = math.exp %623 : vector<1x32xf32>
    %cst_200 = arith.constant 1.000000e+00 : f32
    %625 = vector.broadcast %cst_200 : f32 to vector<1x32xf32>
    %626 = arith.addf %625, %624 : vector<1x32xf32>
    %627 = arith.divf %625, %626 : vector<1x32xf32>
    %628 = vector.extract_strided_slice %615 {offsets = [0, 32], sizes = [1, 32], strides = [1, 1]} : vector<1x96xf32> to vector<1x32xf32>
    %629 = vector.extract_strided_slice %619 {offsets = [0, 32], sizes = [1, 32], strides = [1, 1]} : vector<1x96xf32> to vector<1x32xf32>
    %630 = arith.addf %628, %629 : vector<1x32xf32>
    %631 = arith.negf %630 : vector<1x32xf32>
    %632 = math.exp %631 : vector<1x32xf32>
    %cst_201 = arith.constant 1.000000e+00 : f32
    %633 = vector.broadcast %cst_201 : f32 to vector<1x32xf32>
    %634 = arith.addf %633, %632 : vector<1x32xf32>
    %635 = arith.divf %633, %634 : vector<1x32xf32>
    %636 = vector.extract_strided_slice %615 {offsets = [0, 64], sizes = [1, 32], strides = [1, 1]} : vector<1x96xf32> to vector<1x32xf32>
    %637 = vector.extract_strided_slice %619 {offsets = [0, 64], sizes = [1, 32], strides = [1, 1]} : vector<1x96xf32> to vector<1x32xf32>
    %638 = arith.mulf %627, %637 : vector<1x32xf32>
    %639 = arith.addf %636, %638 : vector<1x32xf32>
    %640 = math.tanh %639 : vector<1x32xf32>
    %cst_202 = arith.constant 1.000000e+00 : f32
    %641 = vector.broadcast %cst_202 : f32 to vector<1x32xf32>
    %642 = arith.subf %641, %635 : vector<1x32xf32>
    %643 = arith.mulf %642, %640 : vector<1x32xf32>
    %644 = arith.mulf %635, %613 : vector<1x32xf32>
    %645 = arith.addf %643, %644 : vector<1x32xf32>
    %c18_i32 = arith.constant 18 : i32
    %646 = arith.index_cast %c18_i32 : i32 to index
    %c0_203 = arith.constant 0 : index
    %647 = vector.load %arg18[%646, %c0_203] : memref<22x96xf32, #tpu.memory_space<vmem>>, vector<1x96xf32>
    %c0_204 = arith.constant 0 : index
    %c0_205 = arith.constant 0 : index
    %648 = vector.load %arg5[%c0_204, %c0_205] : memref<32x96xf32, #tpu.memory_space<vmem>>, vector<32x96xf32>
    %c0_206 = arith.constant 0 : index
    %c0_207 = arith.constant 0 : index
    %649 = vector.load %arg7[%c0_206, %c0_207] : memref<1x96xf32, #tpu.memory_space<vmem>>, vector<1x96xf32>
    %cst_208 = arith.constant dense<0.000000e+00> : vector<1x96xf32>
    %650 = tpu.matmul %645, %648, %cst_208 {dimension_numbers = #tpu.dot_dimension_numbers<[1], [0], [0], [1], [0, 0, 1, 1], [], []>} : vector<1x32xf32>, vector<32x96xf32>, vector<1x96xf32> -> vector<1x96xf32>
    %651 = arith.addf %650, %649 : vector<1x96xf32>
    %652 = vector.extract_strided_slice %647 {offsets = [0, 0], sizes = [1, 32], strides = [1, 1]} : vector<1x96xf32> to vector<1x32xf32>
    %653 = vector.extract_strided_slice %651 {offsets = [0, 0], sizes = [1, 32], strides = [1, 1]} : vector<1x96xf32> to vector<1x32xf32>
    %654 = arith.addf %652, %653 : vector<1x32xf32>
    %655 = arith.negf %654 : vector<1x32xf32>
    %656 = math.exp %655 : vector<1x32xf32>
    %cst_209 = arith.constant 1.000000e+00 : f32
    %657 = vector.broadcast %cst_209 : f32 to vector<1x32xf32>
    %658 = arith.addf %657, %656 : vector<1x32xf32>
    %659 = arith.divf %657, %658 : vector<1x32xf32>
    %660 = vector.extract_strided_slice %647 {offsets = [0, 32], sizes = [1, 32], strides = [1, 1]} : vector<1x96xf32> to vector<1x32xf32>
    %661 = vector.extract_strided_slice %651 {offsets = [0, 32], sizes = [1, 32], strides = [1, 1]} : vector<1x96xf32> to vector<1x32xf32>
    %662 = arith.addf %660, %661 : vector<1x32xf32>
    %663 = arith.negf %662 : vector<1x32xf32>
    %664 = math.exp %663 : vector<1x32xf32>
    %cst_210 = arith.constant 1.000000e+00 : f32
    %665 = vector.broadcast %cst_210 : f32 to vector<1x32xf32>
    %666 = arith.addf %665, %664 : vector<1x32xf32>
    %667 = arith.divf %665, %666 : vector<1x32xf32>
    %668 = vector.extract_strided_slice %647 {offsets = [0, 64], sizes = [1, 32], strides = [1, 1]} : vector<1x96xf32> to vector<1x32xf32>
    %669 = vector.extract_strided_slice %651 {offsets = [0, 64], sizes = [1, 32], strides = [1, 1]} : vector<1x96xf32> to vector<1x32xf32>
    %670 = arith.mulf %659, %669 : vector<1x32xf32>
    %671 = arith.addf %668, %670 : vector<1x32xf32>
    %672 = math.tanh %671 : vector<1x32xf32>
    %cst_211 = arith.constant 1.000000e+00 : f32
    %673 = vector.broadcast %cst_211 : f32 to vector<1x32xf32>
    %674 = arith.subf %673, %667 : vector<1x32xf32>
    %675 = arith.mulf %674, %672 : vector<1x32xf32>
    %676 = arith.mulf %667, %645 : vector<1x32xf32>
    %677 = arith.addf %675, %676 : vector<1x32xf32>
    %c19_i32 = arith.constant 19 : i32
    %678 = arith.index_cast %c19_i32 : i32 to index
    %c0_212 = arith.constant 0 : index
    %679 = vector.load %arg18[%678, %c0_212] : memref<22x96xf32, #tpu.memory_space<vmem>>, vector<1x96xf32>
    %c0_213 = arith.constant 0 : index
    %c0_214 = arith.constant 0 : index
    %680 = vector.load %arg5[%c0_213, %c0_214] : memref<32x96xf32, #tpu.memory_space<vmem>>, vector<32x96xf32>
    %c0_215 = arith.constant 0 : index
    %c0_216 = arith.constant 0 : index
    %681 = vector.load %arg7[%c0_215, %c0_216] : memref<1x96xf32, #tpu.memory_space<vmem>>, vector<1x96xf32>
    %cst_217 = arith.constant dense<0.000000e+00> : vector<1x96xf32>
    %682 = tpu.matmul %677, %680, %cst_217 {dimension_numbers = #tpu.dot_dimension_numbers<[1], [0], [0], [1], [0, 0, 1, 1], [], []>} : vector<1x32xf32>, vector<32x96xf32>, vector<1x96xf32> -> vector<1x96xf32>
    %683 = arith.addf %682, %681 : vector<1x96xf32>
    %684 = vector.extract_strided_slice %679 {offsets = [0, 0], sizes = [1, 32], strides = [1, 1]} : vector<1x96xf32> to vector<1x32xf32>
    %685 = vector.extract_strided_slice %683 {offsets = [0, 0], sizes = [1, 32], strides = [1, 1]} : vector<1x96xf32> to vector<1x32xf32>
    %686 = arith.addf %684, %685 : vector<1x32xf32>
    %687 = arith.negf %686 : vector<1x32xf32>
    %688 = math.exp %687 : vector<1x32xf32>
    %cst_218 = arith.constant 1.000000e+00 : f32
    %689 = vector.broadcast %cst_218 : f32 to vector<1x32xf32>
    %690 = arith.addf %689, %688 : vector<1x32xf32>
    %691 = arith.divf %689, %690 : vector<1x32xf32>
    %692 = vector.extract_strided_slice %679 {offsets = [0, 32], sizes = [1, 32], strides = [1, 1]} : vector<1x96xf32> to vector<1x32xf32>
    %693 = vector.extract_strided_slice %683 {offsets = [0, 32], sizes = [1, 32], strides = [1, 1]} : vector<1x96xf32> to vector<1x32xf32>
    %694 = arith.addf %692, %693 : vector<1x32xf32>
    %695 = arith.negf %694 : vector<1x32xf32>
    %696 = math.exp %695 : vector<1x32xf32>
    %cst_219 = arith.constant 1.000000e+00 : f32
    %697 = vector.broadcast %cst_219 : f32 to vector<1x32xf32>
    %698 = arith.addf %697, %696 : vector<1x32xf32>
    %699 = arith.divf %697, %698 : vector<1x32xf32>
    %700 = vector.extract_strided_slice %679 {offsets = [0, 64], sizes = [1, 32], strides = [1, 1]} : vector<1x96xf32> to vector<1x32xf32>
    %701 = vector.extract_strided_slice %683 {offsets = [0, 64], sizes = [1, 32], strides = [1, 1]} : vector<1x96xf32> to vector<1x32xf32>
    %702 = arith.mulf %691, %701 : vector<1x32xf32>
    %703 = arith.addf %700, %702 : vector<1x32xf32>
    %704 = math.tanh %703 : vector<1x32xf32>
    %cst_220 = arith.constant 1.000000e+00 : f32
    %705 = vector.broadcast %cst_220 : f32 to vector<1x32xf32>
    %706 = arith.subf %705, %699 : vector<1x32xf32>
    %707 = arith.mulf %706, %704 : vector<1x32xf32>
    %708 = arith.mulf %699, %677 : vector<1x32xf32>
    %709 = arith.addf %707, %708 : vector<1x32xf32>
    %c20_i32_221 = arith.constant 20 : i32
    %710 = arith.index_cast %c20_i32_221 : i32 to index
    %c0_222 = arith.constant 0 : index
    %711 = vector.load %arg18[%710, %c0_222] : memref<22x96xf32, #tpu.memory_space<vmem>>, vector<1x96xf32>
    %c0_223 = arith.constant 0 : index
    %c0_224 = arith.constant 0 : index
    %712 = vector.load %arg5[%c0_223, %c0_224] : memref<32x96xf32, #tpu.memory_space<vmem>>, vector<32x96xf32>
    %c0_225 = arith.constant 0 : index
    %c0_226 = arith.constant 0 : index
    %713 = vector.load %arg7[%c0_225, %c0_226] : memref<1x96xf32, #tpu.memory_space<vmem>>, vector<1x96xf32>
    %cst_227 = arith.constant dense<0.000000e+00> : vector<1x96xf32>
    %714 = tpu.matmul %709, %712, %cst_227 {dimension_numbers = #tpu.dot_dimension_numbers<[1], [0], [0], [1], [0, 0, 1, 1], [], []>} : vector<1x32xf32>, vector<32x96xf32>, vector<1x96xf32> -> vector<1x96xf32>
    %715 = arith.addf %714, %713 : vector<1x96xf32>
    %716 = vector.extract_strided_slice %711 {offsets = [0, 0], sizes = [1, 32], strides = [1, 1]} : vector<1x96xf32> to vector<1x32xf32>
    %717 = vector.extract_strided_slice %715 {offsets = [0, 0], sizes = [1, 32], strides = [1, 1]} : vector<1x96xf32> to vector<1x32xf32>
    %718 = arith.addf %716, %717 : vector<1x32xf32>
    %719 = arith.negf %718 : vector<1x32xf32>
    %720 = math.exp %719 : vector<1x32xf32>
    %cst_228 = arith.constant 1.000000e+00 : f32
    %721 = vector.broadcast %cst_228 : f32 to vector<1x32xf32>
    %722 = arith.addf %721, %720 : vector<1x32xf32>
    %723 = arith.divf %721, %722 : vector<1x32xf32>
    %724 = vector.extract_strided_slice %711 {offsets = [0, 32], sizes = [1, 32], strides = [1, 1]} : vector<1x96xf32> to vector<1x32xf32>
    %725 = vector.extract_strided_slice %715 {offsets = [0, 32], sizes = [1, 32], strides = [1, 1]} : vector<1x96xf32> to vector<1x32xf32>
    %726 = arith.addf %724, %725 : vector<1x32xf32>
    %727 = arith.negf %726 : vector<1x32xf32>
    %728 = math.exp %727 : vector<1x32xf32>
    %cst_229 = arith.constant 1.000000e+00 : f32
    %729 = vector.broadcast %cst_229 : f32 to vector<1x32xf32>
    %730 = arith.addf %729, %728 : vector<1x32xf32>
    %731 = arith.divf %729, %730 : vector<1x32xf32>
    %732 = vector.extract_strided_slice %711 {offsets = [0, 64], sizes = [1, 32], strides = [1, 1]} : vector<1x96xf32> to vector<1x32xf32>
    %733 = vector.extract_strided_slice %715 {offsets = [0, 64], sizes = [1, 32], strides = [1, 1]} : vector<1x96xf32> to vector<1x32xf32>
    %734 = arith.mulf %723, %733 : vector<1x32xf32>
    %735 = arith.addf %732, %734 : vector<1x32xf32>
    %736 = math.tanh %735 : vector<1x32xf32>
    %cst_230 = arith.constant 1.000000e+00 : f32
    %737 = vector.broadcast %cst_230 : f32 to vector<1x32xf32>
    %738 = arith.subf %737, %731 : vector<1x32xf32>
    %739 = arith.mulf %738, %736 : vector<1x32xf32>
    %740 = arith.mulf %731, %709 : vector<1x32xf32>
    %741 = arith.addf %739, %740 : vector<1x32xf32>
    %c21_i32 = arith.constant 21 : i32
    %742 = arith.index_cast %c21_i32 : i32 to index
    %c0_231 = arith.constant 0 : index
    %743 = vector.load %arg18[%742, %c0_231] : memref<22x96xf32, #tpu.memory_space<vmem>>, vector<1x96xf32>
    %c0_232 = arith.constant 0 : index
    %c0_233 = arith.constant 0 : index
    %744 = vector.load %arg5[%c0_232, %c0_233] : memref<32x96xf32, #tpu.memory_space<vmem>>, vector<32x96xf32>
    %c0_234 = arith.constant 0 : index
    %c0_235 = arith.constant 0 : index
    %745 = vector.load %arg7[%c0_234, %c0_235] : memref<1x96xf32, #tpu.memory_space<vmem>>, vector<1x96xf32>
    %cst_236 = arith.constant dense<0.000000e+00> : vector<1x96xf32>
    %746 = tpu.matmul %741, %744, %cst_236 {dimension_numbers = #tpu.dot_dimension_numbers<[1], [0], [0], [1], [0, 0, 1, 1], [], []>} : vector<1x32xf32>, vector<32x96xf32>, vector<1x96xf32> -> vector<1x96xf32>
    %747 = arith.addf %746, %745 : vector<1x96xf32>
    %748 = vector.extract_strided_slice %743 {offsets = [0, 0], sizes = [1, 32], strides = [1, 1]} : vector<1x96xf32> to vector<1x32xf32>
    %749 = vector.extract_strided_slice %747 {offsets = [0, 0], sizes = [1, 32], strides = [1, 1]} : vector<1x96xf32> to vector<1x32xf32>
    %750 = arith.addf %748, %749 : vector<1x32xf32>
    %751 = arith.negf %750 : vector<1x32xf32>
    %752 = math.exp %751 : vector<1x32xf32>
    %cst_237 = arith.constant 1.000000e+00 : f32
    %753 = vector.broadcast %cst_237 : f32 to vector<1x32xf32>
    %754 = arith.addf %753, %752 : vector<1x32xf32>
    %755 = arith.divf %753, %754 : vector<1x32xf32>
    %756 = vector.extract_strided_slice %743 {offsets = [0, 32], sizes = [1, 32], strides = [1, 1]} : vector<1x96xf32> to vector<1x32xf32>
    %757 = vector.extract_strided_slice %747 {offsets = [0, 32], sizes = [1, 32], strides = [1, 1]} : vector<1x96xf32> to vector<1x32xf32>
    %758 = arith.addf %756, %757 : vector<1x32xf32>
    %759 = arith.negf %758 : vector<1x32xf32>
    %760 = math.exp %759 : vector<1x32xf32>
    %cst_238 = arith.constant 1.000000e+00 : f32
    %761 = vector.broadcast %cst_238 : f32 to vector<1x32xf32>
    %762 = arith.addf %761, %760 : vector<1x32xf32>
    %763 = arith.divf %761, %762 : vector<1x32xf32>
    %764 = vector.extract_strided_slice %743 {offsets = [0, 64], sizes = [1, 32], strides = [1, 1]} : vector<1x96xf32> to vector<1x32xf32>
    %765 = vector.extract_strided_slice %747 {offsets = [0, 64], sizes = [1, 32], strides = [1, 1]} : vector<1x96xf32> to vector<1x32xf32>
    %766 = arith.mulf %755, %765 : vector<1x32xf32>
    %767 = arith.addf %764, %766 : vector<1x32xf32>
    %768 = math.tanh %767 : vector<1x32xf32>
    %cst_239 = arith.constant 1.000000e+00 : f32
    %769 = vector.broadcast %cst_239 : f32 to vector<1x32xf32>
    %770 = arith.subf %769, %763 : vector<1x32xf32>
    %771 = arith.mulf %770, %768 : vector<1x32xf32>
    %772 = arith.mulf %763, %741 : vector<1x32xf32>
    %773 = arith.addf %771, %772 : vector<1x32xf32>
    %c22_i32 = arith.constant 22 : i32
    %c0_240 = arith.constant 0 : index
    %c0_241 = arith.constant 0 : index
    %774 = vector.load %arg12[%c0_240, %c0_241] : memref<32x38xf32, #tpu.memory_space<vmem>>, vector<32x38xf32>
    %cst_242 = arith.constant dense<0.000000e+00> : vector<1x38xf32>
    %775 = tpu.matmul %773, %774, %cst_242 {dimension_numbers = #tpu.dot_dimension_numbers<[1], [0], [0], [1], [0, 0, 1, 1], [], []>} : vector<1x32xf32>, vector<32x38xf32>, vector<1x38xf32> -> vector<1x38xf32>
    %c0_243 = arith.constant 0 : index
    %c0_244 = arith.constant 0 : index
    %776 = vector.load %arg14[%c0_243, %c0_244] : memref<1x38xf32, #tpu.memory_space<vmem>>, vector<1x38xf32>
    %777 = arith.addf %775, %776 : vector<1x38xf32>
    %778 = vector.extract_strided_slice %68 {offsets = [0, 0], sizes = [1, 50], strides = [1, 1]} : vector<20x50xf32> to vector<1x50xf32>
    %c0_245 = arith.constant 0 : index
    %c0_246 = arith.constant 0 : index
    %c0_247 = arith.constant 0 : index
    %779 = vector.load %arg13[%c0_245, %c0_246, %c0_247] : memref<20x50x38xf32, #tpu.memory_space<vmem>>, vector<1x50x38xf32>
    %780 = vector.shape_cast %779 : vector<1x50x38xf32> to vector<50x38xf32>
    %cst_248 = arith.constant dense<0.000000e+00> : vector<1x38xf32>
    %781 = tpu.matmul %778, %780, %cst_248 {dimension_numbers = #tpu.dot_dimension_numbers<[1], [0], [0], [1], [0, 0, 1, 1], [], []>} : vector<1x50xf32>, vector<50x38xf32>, vector<1x38xf32> -> vector<1x38xf32>
    %782 = arith.addf %777, %781 : vector<1x38xf32>
    %783 = vector.extract_strided_slice %68 {offsets = [1, 0], sizes = [1, 50], strides = [1, 1]} : vector<20x50xf32> to vector<1x50xf32>
    %c1_249 = arith.constant 1 : index
    %c0_250 = arith.constant 0 : index
    %c0_251 = arith.constant 0 : index
    %784 = vector.load %arg13[%c1_249, %c0_250, %c0_251] : memref<20x50x38xf32, #tpu.memory_space<vmem>>, vector<1x50x38xf32>
    %785 = vector.shape_cast %784 : vector<1x50x38xf32> to vector<50x38xf32>
    %cst_252 = arith.constant dense<0.000000e+00> : vector<1x38xf32>
    %786 = tpu.matmul %783, %785, %cst_252 {dimension_numbers = #tpu.dot_dimension_numbers<[1], [0], [0], [1], [0, 0, 1, 1], [], []>} : vector<1x50xf32>, vector<50x38xf32>, vector<1x38xf32> -> vector<1x38xf32>
    %787 = arith.addf %782, %786 : vector<1x38xf32>
    %788 = vector.extract_strided_slice %68 {offsets = [2, 0], sizes = [1, 50], strides = [1, 1]} : vector<20x50xf32> to vector<1x50xf32>
    %c2_253 = arith.constant 2 : index
    %c0_254 = arith.constant 0 : index
    %c0_255 = arith.constant 0 : index
    %789 = vector.load %arg13[%c2_253, %c0_254, %c0_255] : memref<20x50x38xf32, #tpu.memory_space<vmem>>, vector<1x50x38xf32>
    %790 = vector.shape_cast %789 : vector<1x50x38xf32> to vector<50x38xf32>
    %cst_256 = arith.constant dense<0.000000e+00> : vector<1x38xf32>
    %791 = tpu.matmul %788, %790, %cst_256 {dimension_numbers = #tpu.dot_dimension_numbers<[1], [0], [0], [1], [0, 0, 1, 1], [], []>} : vector<1x50xf32>, vector<50x38xf32>, vector<1x38xf32> -> vector<1x38xf32>
    %792 = arith.addf %787, %791 : vector<1x38xf32>
    %793 = vector.extract_strided_slice %68 {offsets = [3, 0], sizes = [1, 50], strides = [1, 1]} : vector<20x50xf32> to vector<1x50xf32>
    %c3 = arith.constant 3 : index
    %c0_257 = arith.constant 0 : index
    %c0_258 = arith.constant 0 : index
    %794 = vector.load %arg13[%c3, %c0_257, %c0_258] : memref<20x50x38xf32, #tpu.memory_space<vmem>>, vector<1x50x38xf32>
    %795 = vector.shape_cast %794 : vector<1x50x38xf32> to vector<50x38xf32>
    %cst_259 = arith.constant dense<0.000000e+00> : vector<1x38xf32>
    %796 = tpu.matmul %793, %795, %cst_259 {dimension_numbers = #tpu.dot_dimension_numbers<[1], [0], [0], [1], [0, 0, 1, 1], [], []>} : vector<1x50xf32>, vector<50x38xf32>, vector<1x38xf32> -> vector<1x38xf32>
    %797 = arith.addf %792, %796 : vector<1x38xf32>
    %798 = vector.extract_strided_slice %68 {offsets = [4, 0], sizes = [1, 50], strides = [1, 1]} : vector<20x50xf32> to vector<1x50xf32>
    %c4 = arith.constant 4 : index
    %c0_260 = arith.constant 0 : index
    %c0_261 = arith.constant 0 : index
    %799 = vector.load %arg13[%c4, %c0_260, %c0_261] : memref<20x50x38xf32, #tpu.memory_space<vmem>>, vector<1x50x38xf32>
    %800 = vector.shape_cast %799 : vector<1x50x38xf32> to vector<50x38xf32>
    %cst_262 = arith.constant dense<0.000000e+00> : vector<1x38xf32>
    %801 = tpu.matmul %798, %800, %cst_262 {dimension_numbers = #tpu.dot_dimension_numbers<[1], [0], [0], [1], [0, 0, 1, 1], [], []>} : vector<1x50xf32>, vector<50x38xf32>, vector<1x38xf32> -> vector<1x38xf32>
    %802 = arith.addf %797, %801 : vector<1x38xf32>
    %803 = vector.extract_strided_slice %68 {offsets = [5, 0], sizes = [1, 50], strides = [1, 1]} : vector<20x50xf32> to vector<1x50xf32>
    %c5 = arith.constant 5 : index
    %c0_263 = arith.constant 0 : index
    %c0_264 = arith.constant 0 : index
    %804 = vector.load %arg13[%c5, %c0_263, %c0_264] : memref<20x50x38xf32, #tpu.memory_space<vmem>>, vector<1x50x38xf32>
    %805 = vector.shape_cast %804 : vector<1x50x38xf32> to vector<50x38xf32>
    %cst_265 = arith.constant dense<0.000000e+00> : vector<1x38xf32>
    %806 = tpu.matmul %803, %805, %cst_265 {dimension_numbers = #tpu.dot_dimension_numbers<[1], [0], [0], [1], [0, 0, 1, 1], [], []>} : vector<1x50xf32>, vector<50x38xf32>, vector<1x38xf32> -> vector<1x38xf32>
    %807 = arith.addf %802, %806 : vector<1x38xf32>
    %808 = vector.extract_strided_slice %68 {offsets = [6, 0], sizes = [1, 50], strides = [1, 1]} : vector<20x50xf32> to vector<1x50xf32>
    %c6 = arith.constant 6 : index
    %c0_266 = arith.constant 0 : index
    %c0_267 = arith.constant 0 : index
    %809 = vector.load %arg13[%c6, %c0_266, %c0_267] : memref<20x50x38xf32, #tpu.memory_space<vmem>>, vector<1x50x38xf32>
    %810 = vector.shape_cast %809 : vector<1x50x38xf32> to vector<50x38xf32>
    %cst_268 = arith.constant dense<0.000000e+00> : vector<1x38xf32>
    %811 = tpu.matmul %808, %810, %cst_268 {dimension_numbers = #tpu.dot_dimension_numbers<[1], [0], [0], [1], [0, 0, 1, 1], [], []>} : vector<1x50xf32>, vector<50x38xf32>, vector<1x38xf32> -> vector<1x38xf32>
    %812 = arith.addf %807, %811 : vector<1x38xf32>
    %813 = vector.extract_strided_slice %68 {offsets = [7, 0], sizes = [1, 50], strides = [1, 1]} : vector<20x50xf32> to vector<1x50xf32>
    %c7 = arith.constant 7 : index
    %c0_269 = arith.constant 0 : index
    %c0_270 = arith.constant 0 : index
    %814 = vector.load %arg13[%c7, %c0_269, %c0_270] : memref<20x50x38xf32, #tpu.memory_space<vmem>>, vector<1x50x38xf32>
    %815 = vector.shape_cast %814 : vector<1x50x38xf32> to vector<50x38xf32>
    %cst_271 = arith.constant dense<0.000000e+00> : vector<1x38xf32>
    %816 = tpu.matmul %813, %815, %cst_271 {dimension_numbers = #tpu.dot_dimension_numbers<[1], [0], [0], [1], [0, 0, 1, 1], [], []>} : vector<1x50xf32>, vector<50x38xf32>, vector<1x38xf32> -> vector<1x38xf32>
    %817 = arith.addf %812, %816 : vector<1x38xf32>
    %818 = vector.extract_strided_slice %68 {offsets = [8, 0], sizes = [1, 50], strides = [1, 1]} : vector<20x50xf32> to vector<1x50xf32>
    %c8 = arith.constant 8 : index
    %c0_272 = arith.constant 0 : index
    %c0_273 = arith.constant 0 : index
    %819 = vector.load %arg13[%c8, %c0_272, %c0_273] : memref<20x50x38xf32, #tpu.memory_space<vmem>>, vector<1x50x38xf32>
    %820 = vector.shape_cast %819 : vector<1x50x38xf32> to vector<50x38xf32>
    %cst_274 = arith.constant dense<0.000000e+00> : vector<1x38xf32>
    %821 = tpu.matmul %818, %820, %cst_274 {dimension_numbers = #tpu.dot_dimension_numbers<[1], [0], [0], [1], [0, 0, 1, 1], [], []>} : vector<1x50xf32>, vector<50x38xf32>, vector<1x38xf32> -> vector<1x38xf32>
    %822 = arith.addf %817, %821 : vector<1x38xf32>
    %823 = vector.extract_strided_slice %68 {offsets = [9, 0], sizes = [1, 50], strides = [1, 1]} : vector<20x50xf32> to vector<1x50xf32>
    %c9 = arith.constant 9 : index
    %c0_275 = arith.constant 0 : index
    %c0_276 = arith.constant 0 : index
    %824 = vector.load %arg13[%c9, %c0_275, %c0_276] : memref<20x50x38xf32, #tpu.memory_space<vmem>>, vector<1x50x38xf32>
    %825 = vector.shape_cast %824 : vector<1x50x38xf32> to vector<50x38xf32>
    %cst_277 = arith.constant dense<0.000000e+00> : vector<1x38xf32>
    %826 = tpu.matmul %823, %825, %cst_277 {dimension_numbers = #tpu.dot_dimension_numbers<[1], [0], [0], [1], [0, 0, 1, 1], [], []>} : vector<1x50xf32>, vector<50x38xf32>, vector<1x38xf32> -> vector<1x38xf32>
    %827 = arith.addf %822, %826 : vector<1x38xf32>
    %828 = vector.extract_strided_slice %68 {offsets = [10, 0], sizes = [1, 50], strides = [1, 1]} : vector<20x50xf32> to vector<1x50xf32>
    %c10 = arith.constant 10 : index
    %c0_278 = arith.constant 0 : index
    %c0_279 = arith.constant 0 : index
    %829 = vector.load %arg13[%c10, %c0_278, %c0_279] : memref<20x50x38xf32, #tpu.memory_space<vmem>>, vector<1x50x38xf32>
    %830 = vector.shape_cast %829 : vector<1x50x38xf32> to vector<50x38xf32>
    %cst_280 = arith.constant dense<0.000000e+00> : vector<1x38xf32>
    %831 = tpu.matmul %828, %830, %cst_280 {dimension_numbers = #tpu.dot_dimension_numbers<[1], [0], [0], [1], [0, 0, 1, 1], [], []>} : vector<1x50xf32>, vector<50x38xf32>, vector<1x38xf32> -> vector<1x38xf32>
    %832 = arith.addf %827, %831 : vector<1x38xf32>
    %833 = vector.extract_strided_slice %68 {offsets = [11, 0], sizes = [1, 50], strides = [1, 1]} : vector<20x50xf32> to vector<1x50xf32>
    %c11 = arith.constant 11 : index
    %c0_281 = arith.constant 0 : index
    %c0_282 = arith.constant 0 : index
    %834 = vector.load %arg13[%c11, %c0_281, %c0_282] : memref<20x50x38xf32, #tpu.memory_space<vmem>>, vector<1x50x38xf32>
    %835 = vector.shape_cast %834 : vector<1x50x38xf32> to vector<50x38xf32>
    %cst_283 = arith.constant dense<0.000000e+00> : vector<1x38xf32>
    %836 = tpu.matmul %833, %835, %cst_283 {dimension_numbers = #tpu.dot_dimension_numbers<[1], [0], [0], [1], [0, 0, 1, 1], [], []>} : vector<1x50xf32>, vector<50x38xf32>, vector<1x38xf32> -> vector<1x38xf32>
    %837 = arith.addf %832, %836 : vector<1x38xf32>
    %838 = vector.extract_strided_slice %68 {offsets = [12, 0], sizes = [1, 50], strides = [1, 1]} : vector<20x50xf32> to vector<1x50xf32>
    %c12 = arith.constant 12 : index
    %c0_284 = arith.constant 0 : index
    %c0_285 = arith.constant 0 : index
    %839 = vector.load %arg13[%c12, %c0_284, %c0_285] : memref<20x50x38xf32, #tpu.memory_space<vmem>>, vector<1x50x38xf32>
    %840 = vector.shape_cast %839 : vector<1x50x38xf32> to vector<50x38xf32>
    %cst_286 = arith.constant dense<0.000000e+00> : vector<1x38xf32>
    %841 = tpu.matmul %838, %840, %cst_286 {dimension_numbers = #tpu.dot_dimension_numbers<[1], [0], [0], [1], [0, 0, 1, 1], [], []>} : vector<1x50xf32>, vector<50x38xf32>, vector<1x38xf32> -> vector<1x38xf32>
    %842 = arith.addf %837, %841 : vector<1x38xf32>
    %843 = vector.extract_strided_slice %68 {offsets = [13, 0], sizes = [1, 50], strides = [1, 1]} : vector<20x50xf32> to vector<1x50xf32>
    %c13 = arith.constant 13 : index
    %c0_287 = arith.constant 0 : index
    %c0_288 = arith.constant 0 : index
    %844 = vector.load %arg13[%c13, %c0_287, %c0_288] : memref<20x50x38xf32, #tpu.memory_space<vmem>>, vector<1x50x38xf32>
    %845 = vector.shape_cast %844 : vector<1x50x38xf32> to vector<50x38xf32>
    %cst_289 = arith.constant dense<0.000000e+00> : vector<1x38xf32>
    %846 = tpu.matmul %843, %845, %cst_289 {dimension_numbers = #tpu.dot_dimension_numbers<[1], [0], [0], [1], [0, 0, 1, 1], [], []>} : vector<1x50xf32>, vector<50x38xf32>, vector<1x38xf32> -> vector<1x38xf32>
    %847 = arith.addf %842, %846 : vector<1x38xf32>
    %848 = vector.extract_strided_slice %68 {offsets = [14, 0], sizes = [1, 50], strides = [1, 1]} : vector<20x50xf32> to vector<1x50xf32>
    %c14 = arith.constant 14 : index
    %c0_290 = arith.constant 0 : index
    %c0_291 = arith.constant 0 : index
    %849 = vector.load %arg13[%c14, %c0_290, %c0_291] : memref<20x50x38xf32, #tpu.memory_space<vmem>>, vector<1x50x38xf32>
    %850 = vector.shape_cast %849 : vector<1x50x38xf32> to vector<50x38xf32>
    %cst_292 = arith.constant dense<0.000000e+00> : vector<1x38xf32>
    %851 = tpu.matmul %848, %850, %cst_292 {dimension_numbers = #tpu.dot_dimension_numbers<[1], [0], [0], [1], [0, 0, 1, 1], [], []>} : vector<1x50xf32>, vector<50x38xf32>, vector<1x38xf32> -> vector<1x38xf32>
    %852 = arith.addf %847, %851 : vector<1x38xf32>
    %853 = vector.extract_strided_slice %68 {offsets = [15, 0], sizes = [1, 50], strides = [1, 1]} : vector<20x50xf32> to vector<1x50xf32>
    %c15 = arith.constant 15 : index
    %c0_293 = arith.constant 0 : index
    %c0_294 = arith.constant 0 : index
    %854 = vector.load %arg13[%c15, %c0_293, %c0_294] : memref<20x50x38xf32, #tpu.memory_space<vmem>>, vector<1x50x38xf32>
    %855 = vector.shape_cast %854 : vector<1x50x38xf32> to vector<50x38xf32>
    %cst_295 = arith.constant dense<0.000000e+00> : vector<1x38xf32>
    %856 = tpu.matmul %853, %855, %cst_295 {dimension_numbers = #tpu.dot_dimension_numbers<[1], [0], [0], [1], [0, 0, 1, 1], [], []>} : vector<1x50xf32>, vector<50x38xf32>, vector<1x38xf32> -> vector<1x38xf32>
    %857 = arith.addf %852, %856 : vector<1x38xf32>
    %858 = vector.extract_strided_slice %68 {offsets = [16, 0], sizes = [1, 50], strides = [1, 1]} : vector<20x50xf32> to vector<1x50xf32>
    %c16 = arith.constant 16 : index
    %c0_296 = arith.constant 0 : index
    %c0_297 = arith.constant 0 : index
    %859 = vector.load %arg13[%c16, %c0_296, %c0_297] : memref<20x50x38xf32, #tpu.memory_space<vmem>>, vector<1x50x38xf32>
    %860 = vector.shape_cast %859 : vector<1x50x38xf32> to vector<50x38xf32>
    %cst_298 = arith.constant dense<0.000000e+00> : vector<1x38xf32>
    %861 = tpu.matmul %858, %860, %cst_298 {dimension_numbers = #tpu.dot_dimension_numbers<[1], [0], [0], [1], [0, 0, 1, 1], [], []>} : vector<1x50xf32>, vector<50x38xf32>, vector<1x38xf32> -> vector<1x38xf32>
    %862 = arith.addf %857, %861 : vector<1x38xf32>
    %863 = vector.extract_strided_slice %68 {offsets = [17, 0], sizes = [1, 50], strides = [1, 1]} : vector<20x50xf32> to vector<1x50xf32>
    %c17 = arith.constant 17 : index
    %c0_299 = arith.constant 0 : index
    %c0_300 = arith.constant 0 : index
    %864 = vector.load %arg13[%c17, %c0_299, %c0_300] : memref<20x50x38xf32, #tpu.memory_space<vmem>>, vector<1x50x38xf32>
    %865 = vector.shape_cast %864 : vector<1x50x38xf32> to vector<50x38xf32>
    %cst_301 = arith.constant dense<0.000000e+00> : vector<1x38xf32>
    %866 = tpu.matmul %863, %865, %cst_301 {dimension_numbers = #tpu.dot_dimension_numbers<[1], [0], [0], [1], [0, 0, 1, 1], [], []>} : vector<1x50xf32>, vector<50x38xf32>, vector<1x38xf32> -> vector<1x38xf32>
    %867 = arith.addf %862, %866 : vector<1x38xf32>
    %868 = vector.extract_strided_slice %68 {offsets = [18, 0], sizes = [1, 50], strides = [1, 1]} : vector<20x50xf32> to vector<1x50xf32>
    %c18 = arith.constant 18 : index
    %c0_302 = arith.constant 0 : index
    %c0_303 = arith.constant 0 : index
    %869 = vector.load %arg13[%c18, %c0_302, %c0_303] : memref<20x50x38xf32, #tpu.memory_space<vmem>>, vector<1x50x38xf32>
    %870 = vector.shape_cast %869 : vector<1x50x38xf32> to vector<50x38xf32>
    %cst_304 = arith.constant dense<0.000000e+00> : vector<1x38xf32>
    %871 = tpu.matmul %868, %870, %cst_304 {dimension_numbers = #tpu.dot_dimension_numbers<[1], [0], [0], [1], [0, 0, 1, 1], [], []>} : vector<1x50xf32>, vector<50x38xf32>, vector<1x38xf32> -> vector<1x38xf32>
    %872 = arith.addf %867, %871 : vector<1x38xf32>
    %873 = vector.extract_strided_slice %68 {offsets = [19, 0], sizes = [1, 50], strides = [1, 1]} : vector<20x50xf32> to vector<1x50xf32>
    %c19 = arith.constant 19 : index
    %c0_305 = arith.constant 0 : index
    %c0_306 = arith.constant 0 : index
    %874 = vector.load %arg13[%c19, %c0_305, %c0_306] : memref<20x50x38xf32, #tpu.memory_space<vmem>>, vector<1x50x38xf32>
    %875 = vector.shape_cast %874 : vector<1x50x38xf32> to vector<50x38xf32>
    %cst_307 = arith.constant dense<0.000000e+00> : vector<1x38xf32>
    %876 = tpu.matmul %873, %875, %cst_307 {dimension_numbers = #tpu.dot_dimension_numbers<[1], [0], [0], [1], [0, 0, 1, 1], [], []>} : vector<1x50xf32>, vector<50x38xf32>, vector<1x38xf32> -> vector<1x38xf32>
    %877 = arith.addf %872, %876 : vector<1x38xf32>
    %c0_308 = arith.constant 0 : index
    %c0_309 = arith.constant 0 : index
    %878 = vector.load %arg1[%c0_308, %c0_309] : memref<38x20xf32, #tpu.memory_space<vmem>>, vector<38x20xf32>
    %c0_310 = arith.constant 0 : index
    %c0_311 = arith.constant 0 : index
    %879 = vector.load %arg15[%c0_310, %c0_311] : memref<20x38xf32, #tpu.memory_space<vmem>>, vector<20x38xf32>
    %cst_312 = arith.constant dense<0.000000e+00> : vector<38x38xf32>
    %880 = tpu.matmul %878, %879, %cst_312 {dimension_numbers = #tpu.dot_dimension_numbers<[1], [0], [0], [1], [0, 0, 1, 1], [], []>} : vector<38x20xf32>, vector<20x38xf32>, vector<38x38xf32> -> vector<38x38xf32>
    %c0_313 = arith.constant 0 : index
    %c0_314 = arith.constant 0 : index
    %881 = vector.load %arg16[%c0_313, %c0_314] : memref<1x38xf32, #tpu.memory_space<vmem>>, vector<1x38xf32>
    %882 = vector.broadcast %881 : vector<1x38xf32> to vector<38x38xf32>
    %883 = arith.addf %880, %882 : vector<38x38xf32>
    %884 = vector.broadcast %877 : vector<1x38xf32> to vector<38x38xf32>
    %885 = arith.addf %884, %883 : vector<38x38xf32>
    %c0_315 = arith.constant 0 : index
    %c0_316 = arith.constant 0 : index
    %886 = vector.load %arg17[%c0_315, %c0_316] : memref<38x38xf32, #tpu.memory_space<vmem>>, vector<38x38xf32>
    tpu.vector_store %arg17[%c0_315, %c0_316], %885 {strides = array<i32>} : memref<38x38xf32, #tpu.memory_space<vmem>>, vector<38x38xf32>,
    return
  }
}

</mosaic_0001>

<llo_original>
// kernel: lstnet_forward.1
$region0: #{lstnet_forward.1}
  #allocation0 [shape = 'u32[]', space=smem, size = 0x4, offset = 0x4, fixed_abs, tag = 'smem constant byte address 0x4 - core index']
  #allocation1 [shape = 'u32[72,128]{1,0:T(1,128)}', space=vmem, size = 0x9000, scoped, tag = 'internal scratch']
  #allocation2 [shape = 'f32[22,96]{1,0:T(8,128)}', space=vmem, size = 0x3000, scoped, tag = 'scratch operand']
  #allocation3 [shape = 'f32[20,150]{1,0:T(8,128)}', space=vmem, size = 0x6000, scoped, tag = 'scratch operand']
  %s0 = inlined_call_operand.vmem [shape: f32[1,24,38], index: 0, kind: input, shape index: {}]
  %s1 = inlined_call_operand.vmem [shape: f32[38,20], index: 1, kind: input, shape index: {}]
  %s2 = inlined_call_operand.vmem [shape: f32[3,38,100], index: 2, kind: input, shape index: {}]
  %s3 = inlined_call_operand.vmem [shape: f32[1,100], index: 3, kind: input, shape index: {}]
  %s4 = inlined_call_operand.vmem [shape: f32[100,96], index: 4, kind: input, shape index: {}]
  %s5 = inlined_call_operand.vmem [shape: f32[32,96], index: 5, kind: input, shape index: {}]
  %s6 = inlined_call_operand.vmem [shape: f32[1,96], index: 6, kind: input, shape index: {}]
  %s7 = inlined_call_operand.vmem [shape: f32[1,96], index: 7, kind: input, shape index: {}]
  %s8 = inlined_call_operand.vmem [shape: f32[100,150], index: 8, kind: input, shape index: {}]
  %s9 = inlined_call_operand.vmem [shape: f32[50,150], index: 9, kind: input, shape index: {}]
  %s10 = inlined_call_operand.vmem [shape: f32[1,150], index: 10, kind: input, shape index: {}]
  %s11 = inlined_call_operand.vmem [shape: f32[1,150], index: 11, kind: input, shape index: {}]
  %s12 = inlined_call_operand.vmem [shape: f32[32,38], index: 12, kind: input, shape index: {}]
  %s13 = inlined_call_operand.vmem [shape: f32[20,50,38], index: 13, kind: input, shape index: {}]
  %s14 = inlined_call_operand.vmem [shape: f32[1,38], index: 14, kind: input, shape index: {}]
  %s15 = inlined_call_operand.vmem [shape: f32[20,38], index: 15, kind: input, shape index: {}]
  %s16 = inlined_call_operand.vmem [shape: f32[1,38], index: 16, kind: input, shape index: {}]
  %s17 = inlined_call_operand.hbm [shape: f32[38,38], index: 17, kind: output, shape index: {}]
  %s18 = sld [smem:[#allocation0]]
  $region78: #{lstnet_forward.1} parent=0
    _
  %s20 = ssub.s32 1, %s18
  %s21 = scalar_select 0, %s20, %s18
  $region1: #{lstnet_forward.1} parent=0
    #allocation4 [shape = 'u8[20480]{0}', space=vmem, size = 0x5000, scoped, tag = 'output window, operand 0, single buffered']
    #allocation5 [shape = 's32[1]{0}', space=sflag, size = 0x4, scoped, tag = 'scoped memory for lstnet_forward.1']
    %22 = vsyncpa [#allocation5], 0
    // Predicated region
    $region2: #{lstnet_forward.1} parent=1 // pred_check
      _
    $region3: #{lstnet_forward.1} parent=1 // pred_check_branch
      %24 = sbr.rel (0) target = $region5
    $region4: #{lstnet_forward.1} parent=1 // pred_region
      _
    $region5: #{lstnet_forward.1} parent=1 // pred_fallthru
      _
    // Predicated region
    $region6: #{lstnet_forward.1} parent=1 // pred_check
      _
    $region7: #{lstnet_forward.1} parent=1 // pred_check_branch
      %26 = sbr.rel (0) target = $region9
    $region8: #{lstnet_forward.1} parent=1 // pred_region
      _
    $region9: #{lstnet_forward.1} parent=1 // pred_fallthru
      _
    // Predicated region
    $region10: #{lstnet_forward.1} parent=1 // pred_check
      _
    $region11: #{lstnet_forward.1} parent=1 // pred_check_branch
      %28 = sbr.rel (0) target = $region13
    $region12: #{lstnet_forward.1} parent=1 // pred_region
      _
    $region13: #{lstnet_forward.1} parent=1 // pred_fallthru
      _
    // Predicated region
    $region14: #{lstnet_forward.1} parent=1 // pred_check
      _
    $region15: #{lstnet_forward.1} parent=1 // pred_check_branch
      %30 = sbr.rel (0) target = $region17
    $region16: #{lstnet_forward.1} parent=1 // pred_region
      _
    $region17: #{lstnet_forward.1} parent=1 // pred_fallthru
      _
    // Predicated region
    $region18: #{lstnet_forward.1} parent=1 // pred_check
      _
    $region19: #{lstnet_forward.1} parent=1 // pred_check_branch
      %32 = sbr.rel (0) target = $region21
    $region20: #{lstnet_forward.1} parent=1 // pred_region
      _
    $region21: #{lstnet_forward.1} parent=1 // pred_fallthru
      _
    // Predicated region
    $region22: #{lstnet_forward.1} parent=1 // pred_check
      _
    $region23: #{lstnet_forward.1} parent=1 // pred_check_branch
      %34 = sbr.rel (0) target = $region25
    $region24: #{lstnet_forward.1} parent=1 // pred_region
      _
    $region25: #{lstnet_forward.1} parent=1 // pred_fallthru
      _
    // Predicated region
    $region26: #{lstnet_forward.1} parent=1 // pred_check
      _
    $region27: #{lstnet_forward.1} parent=1 // pred_check_branch
      %36 = sbr.rel (0) target = $region29
    $region28: #{lstnet_forward.1} parent=1 // pred_region
      _
    $region29: #{lstnet_forward.1} parent=1 // pred_fallthru
      _
    // Predicated region
    $region30: #{lstnet_forward.1} parent=1 // pred_check
      _
    $region31: #{lstnet_forward.1} parent=1 // pred_check_branch
      %38 = sbr.rel (0) target = $region33
    $region32: #{lstnet_forward.1} parent=1 // pred_region
      _
    $region33: #{lstnet_forward.1} parent=1 // pred_fallthru
      _
    // Predicated region
    $region34: #{lstnet_forward.1} parent=1 // pred_check
      _
    $region35: #{lstnet_forward.1} parent=1 // pred_check_branch
      %40 = sbr.rel (0) target = $region37
    $region36: #{lstnet_forward.1} parent=1 // pred_region
      _
    $region37: #{lstnet_forward.1} parent=1 // pred_fallthru
      _
    // Predicated region
    $region38: #{lstnet_forward.1} parent=1 // pred_check
      _
    $region39: #{lstnet_forward.1} parent=1 // pred_check_branch
      %42 = sbr.rel (0) target = $region41
    $region40: #{lstnet_forward.1} parent=1 // pred_region
      _
    $region41: #{lstnet_forward.1} parent=1 // pred_fallthru
      _
    // Predicated region
    $region42: #{lstnet_forward.1} parent=1 // pred_check
      _
    $region43: #{lstnet_forward.1} parent=1 // pred_check_branch
      %44 = sbr.rel (0) target = $region45
    $region44: #{lstnet_forward.1} parent=1 // pred_region
      _
    $region45: #{lstnet_forward.1} parent=1 // pred_fallthru
      _
    // Predicated region
    $region46: #{lstnet_forward.1} parent=1 // pred_check
      _
    $region47: #{lstnet_forward.1} parent=1 // pred_check_branch
      %46 = sbr.rel (0) target = $region49
    $region48: #{lstnet_forward.1} parent=1 // pred_region
      _
    $region49: #{lstnet_forward.1} parent=1 // pred_fallthru
      _
    // Predicated region
    $region50: #{lstnet_forward.1} parent=1 // pred_check
      _
    $region51: #{lstnet_forward.1} parent=1 // pred_check_branch
      %48 = sbr.rel (0) target = $region53
    $region52: #{lstnet_forward.1} parent=1 // pred_region
      _
    $region53: #{lstnet_forward.1} parent=1 // pred_fallthru
      _
    // Predicated region
    $region54: #{lstnet_forward.1} parent=1 // pred_check
      _
    $region55: #{lstnet_forward.1} parent=1 // pred_check_branch
      %50 = sbr.rel (0) target = $region57
    $region56: #{lstnet_forward.1} parent=1 // pred_region
      _
    $region57: #{lstnet_forward.1} parent=1 // pred_fallthru
      _
    // Predicated region
    $region58: #{lstnet_forward.1} parent=1 // pred_check
      _
    $region59: #{lstnet_forward.1} parent=1 // pred_check_branch
      %52 = sbr.rel (0) target = $region61
    $region60: #{lstnet_forward.1} parent=1 // pred_region
      _
    $region61: #{lstnet_forward.1} parent=1 // pred_fallthru
      _
    // Predicated region
    $region62: #{lstnet_forward.1} parent=1 // pred_check
      _
    $region63: #{lstnet_forward.1} parent=1 // pred_check_branch
      %54 = sbr.rel (0) target = $region65
    $region64: #{lstnet_forward.1} parent=1 // pred_region
      _
    $region65: #{lstnet_forward.1} parent=1 // pred_fallthru
      _
    // Predicated region
    $region66: #{lstnet_forward.1} parent=1 // pred_check
      _
    $region67: #{lstnet_forward.1} parent=1 // pred_check_branch
      %56 = sbr.rel (0) target = $region69
    $region68: #{lstnet_forward.1} parent=1 // pred_region
      _
    $region69: #{lstnet_forward.1} parent=1 // pred_fallthru
      _
    %v57 = vld [vmem:[%s0] sm:$0xff]
    %v58 = vld [vmem:[%s0 + $0x8] sm:$0xff]
    %v59 = vld [vmem:[%s0 + $0x10] sm:$0xff]
    %v60 = vld [vmem:[%s2] sm:$0xff]
    %v61 = vld [vmem:[%s2 + $0x8] sm:$0xff]
    %v62 = vld [vmem:[%s2 + $0x10] sm:$0xff]
    %v63 = vld [vmem:[%s2 + $0x18] sm:$0xff]
    %v64 = vld [vmem:[%s2 + $0x20] sm:$0x3f]
    %s65 = scalar_lea.vmem %s2, 40
    %v66 = vld [vmem:[%s65] sm:$0xff]
    %v67 = vld [vmem:[%s65 + $0x8] sm:$0xff]
    %v68 = vld [vmem:[%s65 + $0x10] sm:$0xff]
    %v69 = vld [vmem:[%s65 + $0x18] sm:$0xff]
    %v70 = vld [vmem:[%s65 + $0x20] sm:$0x3f]
    %vm74 = vcmask 1046528
    %v75 = vrot.slane %v57, 1
    %v76 = vrot.slane %v58, 1
    %v77 = vsel %vm74, %v75, %v76
    %v78 = vrot.slane %v59, 1
    %v79 = vsel %vm74, %v76, %v78
    %vm80 = vcmask 310272
    %v81 = vsel %vm80, %v77, 0
    %v83 = vsel %vm80, %v79, 0
    %v85 = vsel %vm80, %v78, 0
    %vm87 = vcmask 1045504
    %v89 = vsel %vm87, %v70, 0
    %91 = vmatpush.msra.mxu0 0.0
    %92 = vmatpush.msra.mxu0 0.0
    %93 = vmatpush.msra.mxu0 0.0
    %94 = vmatpush.msra.mxu0 0.0
    %95 = vmatpush.msra.mxu0 0.0
    %96 = vmatpush.msra.mxu0 0.0
    %97 = vmatpush.msra.mxu0 0.0
    %98 = vmatpush.msra.mxu0 0.0
    %99 = vmatpush.msra.mxu0 0.0
    %100 = vmatpush.msra.mxu0 0.0
    %101 = vmatpush.msra.mxu0 0.0
    %102 = vmatpush.msra.mxu0 %v89
    %103 = vmatpush.msra.mxu0 %v69
    %104 = vmatpush.msra.mxu0 %v68
    %105 = vmatpush.msra.mxu0 %v67
    %106 = vmatpush.msra.mxu0 %v66
    %107 = vmatmul.f32.gmra.mxu0 %v81
    %v108 = vpop.f32.mrf.mxu0
    %v109 = vadd.f32 0.0, %v108
    %110 = vmatmul.f32.gmra.mxu0 %v83
    %v111 = vpop.f32.mrf.mxu0
    %v112 = vadd.f32 0.0, %v111
    %113 = vmatmul.f32.gmra.mxu0 %v85
    %v114 = vpop.f32.mrf.mxu0
    %v115 = vadd.f32 0.0, %v114
    %116 = vdwg.mxu0
    %v117 = vsel %vm80, %v57, 0
    %v119 = vsel %vm80, %v58, 0
    %v121 = vsel %vm80, %v59, 0
    %v124 = vsel %vm87, %v64, 0
    %126 = vmatpush.msra.mxu0 0.0
    %127 = vmatpush.msra.mxu0 0.0
    %128 = vmatpush.msra.mxu0 0.0
    %129 = vmatpush.msra.mxu0 0.0
    %130 = vmatpush.msra.mxu0 0.0
    %131 = vmatpush.msra.mxu0 0.0
    %132 = vmatpush.msra.mxu0 0.0
    %133 = vmatpush.msra.mxu0 0.0
    %134 = vmatpush.msra.mxu0 0.0
    %135 = vmatpush.msra.mxu0 0.0
    %136 = vmatpush.msra.mxu0 0.0
    %137 = vmatpush.msra.mxu0 %v124
    %138 = vmatpush.msra.mxu0 %v63
    %139 = vmatpush.msra.mxu0 %v62
    %140 = vmatpush.msra.mxu0 %v61
    %141 = vmatpush.msra.mxu0 %v60
    %142 = vmatmul.f32.gmra.mxu0 %v117
    %v143 = vpop.f32.mrf.mxu0
    %v144 = vadd.f32 %v109, %v143
    %145 = vmatmul.f32.gmra.mxu0 %v119
    %v146 = vpop.f32.mrf.mxu0
    %v147 = vadd.f32 %v112, %v146
    %148 = vmatmul.f32.gmra.mxu0 %v121
    %v149 = vpop.f32.mrf.mxu0
    %v150 = vadd.f32 %v115, %v149
    %151 = vdwg.mxu0
    %s152 = scalar_lea.vmem %s2, 80
    %v153 = vld [vmem:[%s152] sm:$0xff]
    %v154 = vld [vmem:[%s152 + $0x8] sm:$0xff]
    %v155 = vld [vmem:[%s152 + $0x10] sm:$0xff]
    %v156 = vld [vmem:[%s152 + $0x18] sm:$0xff]
    %v157 = vld [vmem:[%s152 + $0x20] sm:$0x3f]
    %v158 = vrot.slane %v57, 2
    %v159 = vrot.slane %v58, 2
    %v160 = vsel %vm87, %v158, %v159
    %v161 = vrot.slane %v59, 2
    %v162 = vsel %vm87, %v159, %v161
    %v163 = vsel %vm80, %v160, 0
    %v165 = vsel %vm80, %v162, 0
    %v167 = vsel %vm80, %v161, 0
    %v170 = vsel %vm87, %v157, 0
    %172 = vmatpush.msra.mxu0 0.0
    %173 = vmatpush.msra.mxu0 0.0
    %174 = vmatpush.msra.mxu0 0.0
    %175 = vmatpush.msra.mxu0 0.0
    %176 = vmatpush.msra.mxu0 0.0
    %177 = vmatpush.msra.mxu0 0.0
    %178 = vmatpush.msra.mxu0 0.0
    %179 = vmatpush.msra.mxu0 0.0
    %180 = vmatpush.msra.mxu0 0.0
    %181 = vmatpush.msra.mxu0 0.0
    %182 = vmatpush.msra.mxu0 0.0
    %183 = vmatpush.msra.mxu0 %v170
    %184 = vmatpush.msra.mxu0 %v156
    %185 = vmatpush.msra.mxu0 %v155
    %186 = vmatpush.msra.mxu0 %v154
    %187 = vmatpush.msra.mxu0 %v153
    %188 = vmatmul.f32.gmra.mxu0 %v163
    %v189 = vpop.f32.mrf.mxu0
    %v190 = vadd.f32 0.0, %v189
    %191 = vmatmul.f32.gmra.mxu0 %v165
    %v192 = vpop.f32.mrf.mxu0
    %v193 = vadd.f32 0.0, %v192
    %194 = vmatmul.f32.gmra.mxu0 %v167
    %v195 = vpop.f32.mrf.mxu0
    %v196 = vadd.f32 0.0, %v195
    %197 = vdwg.mxu0
    %v198 = vadd.f32 %v144, %v190
    %v199 = vadd.f32 %v147, %v193
    %v200 = vadd.f32 %v150, %v196
    %v201 = vld [vmem:[%s3] sm:$0x1]
    %v203 = vperm.slane %v201, 0
    %v205 = vadd.f32 %v198, %v203
    %v206 = vadd.f32 %v199, %v203
    %v207 = vadd.f32 %v200, %v203
    %v208 = vmax.f32 %v205, 0.0
    %v209 = vmax.f32 %v206, 0.0
    %v210 = vmax.f32 %v207, 0.0
    %v211 = vld [vmem:[%s4] sm:$0xff]
    %v212 = vld [vmem:[%s4 + $0x8] sm:$0xff]
    %v213 = vld [vmem:[%s4 + $0x10] sm:$0xff]
    %v214 = vld [vmem:[%s4 + $0x18] sm:$0xff]
    %v215 = vld [vmem:[%s4 + $0x20] sm:$0xff]
    %v216 = vld [vmem:[%s4 + $0x28] sm:$0xff]
    %v217 = vld [vmem:[%s4 + $0x30] sm:$0xff]
    %v218 = vld [vmem:[%s4 + $0x38] sm:$0xff]
    %v219 = vld [vmem:[%s4 + $0x40] sm:$0xff]
    %v220 = vld [vmem:[%s4 + $0x48] sm:$0xff]
    %v221 = vld [vmem:[%s4 + $0x50] sm:$0xff]
    %v222 = vld [vmem:[%s4 + $0x58] sm:$0xff]
    %v223 = vld [vmem:[%s4 + $0x60] sm:$0xf]
    %v224 = vld [vmem:[%s6] sm:$0x1]
    %v226 = vperm.slane %v224, 0
    %vm228 = vcmask 818176
    %v230 = vsel %vm228, %v208, 0
    %v233 = vsel %vm228, %v209, 0
    %v236 = vsel %vm228, %v210, 0
    %vm238 = vcmask 1043456
    %v240 = vsel %vm238, %v223, 0
    %242 = vmatpush.msra.mxu0 0.0
    %243 = vmatpush.msra.mxu0 0.0
    %244 = vmatpush.msra.mxu0 0.0
    %245 = vmatpush.msra.mxu0 %v240
    %246 = vmatpush.msra.mxu0 %v222
    %247 = vmatpush.msra.mxu0 %v221
    %248 = vmatpush.msra.mxu0 %v220
    %249 = vmatpush.msra.mxu0 %v219
    %250 = vmatpush.msra.mxu0 %v218
    %251 = vmatpush.msra.mxu0 %v217
    %252 = vmatpush.msra.mxu0 %v216
    %253 = vmatpush.msra.mxu0 %v215
    %254 = vmatpush.msra.mxu0 %v214
    %255 = vmatpush.msra.mxu0 %v213
    %256 = vmatpush.msra.mxu0 %v212
    %257 = vmatpush.msra.mxu0 %v211
    %258 = vmatmul.f32.gmra.mxu0 %v230
    %v259 = vpop.f32.mrf.mxu0
    %v260 = vadd.f32 %v226, %v259
    %261 = vmatmul.f32.gmra.mxu0 %v233
    %v262 = vpop.f32.mrf.mxu0
    %v263 = vadd.f32 %v226, %v262
    %264 = vmatmul.f32.gmra.mxu0 %v236
    %v265 = vpop.f32.mrf.mxu0
    %v266 = vadd.f32 %v226, %v265
    %267 = vdwg.mxu0
    %vm268 = vcmask 785408
    %269 = vst.msk [vmem:[#allocation2] sm:$0xff] %vm268, %v260
    %270 = vst.msk [vmem:[#allocation2 + $0x8] sm:$0xff] %vm268, %v263
    %vm271 = vcmask 783360
    %272 = vst.msk [vmem:[#allocation2 + $0x10] sm:$0x3f] %vm271, %v266
    %v273 = vld [vmem:[%s8] sm:$0xff]
    %v274 = vld [vmem:[%s8 + $0x8] sm:$0xff]
    %v275 = vld [vmem:[%s8 + $0x10] sm:$0xff]
    %v276 = vld [vmem:[%s8 + $0x18] sm:$0xff]
    %v277 = vld [vmem:[%s8 + $0x20] sm:$0xff]
    %v278 = vld [vmem:[%s8 + $0x28] sm:$0xff]
    %v279 = vld [vmem:[%s8 + $0x30] sm:$0xff]
    %v280 = vld [vmem:[%s8 + $0x38] sm:$0xff]
    %v281 = vld [vmem:[%s8 + $0x40] sm:$0xff]
    %v282 = vld [vmem:[%s8 + $0x48] sm:$0xff]
    %v283 = vld [vmem:[%s8 + $0x50] sm:$0xff]
    %v284 = vld [vmem:[%s8 + $0x58] sm:$0xff]
    %v285 = vld [vmem:[%s8 + $0x60] sm:$0xff]
    %v286 = vld [vmem:[%s8 + $0x68] sm:$0xff]
    %v287 = vld [vmem:[%s8 + $0x70] sm:$0xff]
    %v288 = vld [vmem:[%s8 + $0x78] sm:$0xff]
    %v289 = vld [vmem:[%s8 + $0x80] sm:$0xff]
    %v290 = vld [vmem:[%s8 + $0x88] sm:$0xff]
    %v291 = vld [vmem:[%s8 + $0x90] sm:$0xff]
    %v292 = vld [vmem:[%s8 + $0x98] sm:$0xff]
    %v293 = vld [vmem:[%s8 + $0xa0] sm:$0xff]
    %v294 = vld [vmem:[%s8 + $0xa8] sm:$0xff]
    %v295 = vld [vmem:[%s8 + $0xb0] sm:$0xff]
    %v296 = vld [vmem:[%s8 + $0xb8] sm:$0xff]
    %v297 = vld [vmem:[%s8 + $0xc0] sm:$0xf]
    %v298 = vld [vmem:[%s8 + $0xc8] sm:$0xf]
    %v299 = vld [vmem:[%s10] sm:$0x3]
    %v301 = vperm.slane %v299, 0
    %v302 = vperm.slane %v299, 1
    %v305 = vrot.slane %v208, 2
    %v306 = vrot.slane %v209, 2
    %v307 = vsel %vm87, %v305, %v306
    %v308 = vrot.slane %v210, 2
    %v309 = vsel %vm87, %v306, %v308
    %v310 = vsel %vm228, %v307, 0
    %v312 = vsel %vm228, %v309, 0
    %v314 = vsel %vm228, %v308, 0
    %v317 = vsel %vm238, %v297, 0
    %v320 = vsel %vm238, %v298, 0
    %322 = vmatpush.msra.mxu0 0.0
    %323 = vmatpush.msra.mxu0 0.0
    %324 = vmatpush.msra.mxu0 0.0
    %325 = vmatpush.msra.mxu0 %v317
    %326 = vmatpush.msra.mxu0 %v295
    %327 = vmatpush.msra.mxu0 %v293
    %328 = vmatpush.msra.mxu0 %v291
    %329 = vmatpush.msra.mxu0 %v289
    %330 = vmatpush.msra.mxu0 %v287
    %331 = vmatpush.msra.mxu0 %v285
    %332 = vmatpush.msra.mxu0 %v283
    %333 = vmatpush.msra.mxu0 %v281
    %334 = vmatpush.msra.mxu0 %v279
    %335 = vmatpush.msra.mxu0 %v277
    %336 = vmatpush.msra.mxu0 %v275
    %337 = vmatpush.msra.mxu0 %v273
    %338 = vmatmul.f32.gmra.mxu0 %v310
    %v339 = vpop.f32.mrf.mxu0
    %v340 = vadd.f32 %v301, %v339
    %341 = vmatmul.f32.gmra.mxu0 %v312
    %v342 = vpop.f32.mrf.mxu0
    %v343 = vadd.f32 %v301, %v342
    %344 = vmatmul.f32.gmra.mxu0 %v314
    %v345 = vpop.f32.mrf.mxu0
    %v346 = vadd.f32 %v301, %v345
    %347 = vdwg.mxu0
    %348 = vmatpush.msra.mxu0 0.0
    %349 = vmatpush.msra.mxu0 0.0
    %350 = vmatpush.msra.mxu0 0.0
    %351 = vmatpush.msra.mxu0 %v320
    %352 = vmatpush.msra.mxu0 %v296
    %353 = vmatpush.msra.mxu0 %v294
    %354 = vmatpush.msra.mxu0 %v292
    %355 = vmatpush.msra.mxu0 %v290
    %356 = vmatpush.msra.mxu0 %v288
    %357 = vmatpush.msra.mxu0 %v286
    %358 = vmatpush.msra.mxu0 %v284
    %359 = vmatpush.msra.mxu0 %v282
    %360 = vmatpush.msra.mxu0 %v280
    %361 = vmatpush.msra.mxu0 %v278
    %362 = vmatpush.msra.mxu0 %v276
    %363 = vmatpush.msra.mxu0 %v274
    %364 = vmatmul.f32.gmra.mxu0 %v310
    %v365 = vpop.f32.mrf.mxu0
    %v366 = vadd.f32 %v302, %v365
    %367 = vmatmul.f32.gmra.mxu0 %v312
    %v368 = vpop.f32.mrf.mxu0
    %v369 = vadd.f32 %v302, %v368
    %370 = vmatmul.f32.gmra.mxu0 %v314
    %v371 = vpop.f32.mrf.mxu0
    %v372 = vadd.f32 %v302, %v371
    %373 = vdwg.mxu0
    %374 = vst [vmem:[#allocation3] sm:$0xff] %v340
    %vm375 = vcmask 179200
    %376 = vst.msk [vmem:[#allocation3 + $0x8] sm:$0xff] %vm375, %v366
    %377 = vst [vmem:[#allocation3 + $0x10] sm:$0xff] %v343
    %378 = vst.msk [vmem:[#allocation3 + $0x18] sm:$0xff] %vm375, %v369
    %379 = vst [vmem:[#allocation3 + $0x20] sm:$0xf] %v346
    %vm380 = vcmask 175104
    %381 = vst.msk [vmem:[#allocation3 + $0x28] sm:$0xf] %vm380, %v372
    %v382 = vld [vmem:[#allocation3] sm:$0xff]
    %v383 = vld [vmem:[#allocation3 + $0x8] sm:$0xff]
    %v384 = vld [vmem:[#allocation3 + $0x10] sm:$0xff]
    %v385 = vld [vmem:[#allocation3 + $0x18] sm:$0xff]
    %v386 = vld [vmem:[#allocation3 + $0x20] sm:$0xf]
    %v387 = vld [vmem:[#allocation3 + $0x28] sm:$0xf]
    %v388 = vld [vmem:[%s9] sm:$0xff]
    %v389 = vld [vmem:[%s9 + $0x8] sm:$0xff]
    %v390 = vld [vmem:[%s9 + $0x10] sm:$0xff]
    %v391 = vld [vmem:[%s9 + $0x18] sm:$0xff]
    %v392 = vld [vmem:[%s9 + $0x20] sm:$0xff]
    %v393 = vld [vmem:[%s9 + $0x28] sm:$0xff]
    %v394 = vld [vmem:[%s9 + $0x30] sm:$0xff]
    %v395 = vld [vmem:[%s9 + $0x38] sm:$0xff]
    %v396 = vld [vmem:[%s9 + $0x40] sm:$0xff]
    %v397 = vld [vmem:[%s9 + $0x48] sm:$0xff]
    %v398 = vld [vmem:[%s9 + $0x50] sm:$0xff]
    %v399 = vld [vmem:[%s9 + $0x58] sm:$0xff]
    %v400 = vld [vmem:[%s9 + $0x60] sm:$0x3]
    %v401 = vld [vmem:[%s9 + $0x68] sm:$0x3]
    %v402 = vld [vmem:[%s11] sm:$0x3]
    %v404 = vperm.slane %v402, 0
    %v405 = vperm.slane %v402, 1
    %vm408 = vcmask 408576
    %v410 = vsel %vm408, 0.0, 0
    %vm412 = vcmask 1041408
    %v414 = vsel %vm412, %v400, 0
    %v417 = vsel %vm412, %v401, 0
    %419 = vmatpush.msra.mxu0 0.0
    %420 = vmatpush.msra.mxu0 0.0
    %421 = vmatpush.msra.mxu0 0.0
    %422 = vmatpush.msra.mxu0 0.0
    %423 = vmatpush.msra.mxu0 0.0
    %424 = vmatpush.msra.mxu0 0.0
    %425 = vmatpush.msra.mxu0 0.0
    %426 = vmatpush.msra.mxu0 0.0
    %427 = vmatpush.msra.mxu0 0.0
    %428 = vmatpush.msra.mxu0 %v414
    %429 = vmatpush.msra.mxu0 %v398
    %430 = vmatpush.msra.mxu0 %v396
    %431 = vmatpush.msra.mxu0 %v394
    %432 = vmatpush.msra.mxu0 %v392
    %433 = vmatpush.msra.mxu0 %v390
    %434 = vmatpush.msra.mxu0 %v388
    %435 = vmatmul.f32.gmra.mxu0 %v410
    %v436 = vpop.f32.mrf.mxu0
    %v437 = vadd.f32 %v404, %v436
    %438 = vmatmul.f32.gmra.mxu0 %v410
    %v439 = vpop.f32.mrf.mxu0
    %v440 = vadd.f32 %v404, %v439
    %441 = vmatmul.f32.gmra.mxu0 %v410
    %v442 = vpop.f32.mrf.mxu0
    %v443 = vadd.f32 %v404, %v442
    %444 = vdwg.mxu0
    %445 = vmatpush.msra.mxu0 0.0
    %446 = vmatpush.msra.mxu0 0.0
    %447 = vmatpush.msra.mxu0 0.0
    %448 = vmatpush.msra.mxu0 0.0
    %449 = vmatpush.msra.mxu0 0.0
    %450 = vmatpush.msra.mxu0 0.0
    %451 = vmatpush.msra.mxu0 0.0
    %452 = vmatpush.msra.mxu0 0.0
    %453 = vmatpush.msra.mxu0 0.0
    %454 = vmatpush.msra.mxu0 %v417
    %455 = vmatpush.msra.mxu0 %v399
    %456 = vmatpush.msra.mxu0 %v397
    %457 = vmatpush.msra.mxu0 %v395
    %458 = vmatpush.msra.mxu0 %v393
    %459 = vmatpush.msra.mxu0 %v391
    %460 = vmatpush.msra.mxu0 %v389
    %461 = vmatmul.f32.gmra.mxu0 %v410
    %v462 = vpop.f32.mrf.mxu0
    %v463 = vadd.f32 %v405, %v462
    %464 = vmatmul.f32.gmra.mxu0 %v410
    %v465 = vpop.f32.mrf.mxu0
    %v466 = vadd.f32 %v405, %v465
    %467 = vmatmul.f32.gmra.mxu0 %v410
    %v468 = vpop.f32.mrf.mxu0
    %v469 = vadd.f32 %v405, %v468
    %470 = vdwg.mxu0
    %v471 = vadd.f32 %v382, %v437
    %v472 = vadd.f32 %v384, %v440
    %v473 = vadd.f32 %v386, %v443
    %v474 = vxor.u32 %v471, 2147483648
    %v475 = vxor.u32 %v472, 2147483648
    %v476 = vxor.u32 %v473, 2147483648
    %v477 = vmul.f32 %v474, 1.442695
    %v478 = vpow.pop %v477
    %v479 = vmul.f32 %v475, 1.442695
    %v480 = vpow.pop %v479
    %v481 = vmul.f32 %v476, 1.442695
    %v482 = vpow.pop %v481
    %v483 = vadd.f32 %v478, 1.0
    %v484 = vadd.f32 %v480, 1.0
    %v485 = vadd.f32 %v482, 1.0
    %v486 = vrcp.pop %v483
    %v487 = vmul.f32 %v483, %v486
    %v488 = vsub.f32 1.0, %v487
    %v489 = vmul.f32 %v486, %v488
    %v490 = vadd.f32 %v486, %v489
    %vm491 = vweird.f32 %v483
    %vm492 = vweird.f32 %v486
    %vm493 = vmor %vm491, %vm492
    %v494 = vsel %vm493, %v486, %v490
    %v495 = vand.u32 2147483647, %v483
    %vm496 = vcmp.eq.f32.partialorder %v495, 8.507059e+37
    %v497 = vand.u32 %v483, 2147483648
    %v498 = vor.u32 1.1754944e-38, %v497
    %v499 = vsel %vm496, %v498, %v494
    %v500 = vmul.f32 1.0, %v499
    %v501 = vrcp.pop %v484
    %v502 = vmul.f32 %v484, %v501
    %v503 = vsub.f32 1.0, %v502
    %v504 = vmul.f32 %v501, %v503
    %v505 = vadd.f32 %v501, %v504
    %vm506 = vweird.f32 %v484
    %vm507 = vweird.f32 %v501
    %vm508 = vmor %vm506, %vm507
    %v509 = vsel %vm508, %v501, %v505
    %v510 = vand.u32 2147483647, %v484
    %vm511 = vcmp.eq.f32.partialorder %v510, 8.507059e+37
    %v512 = vand.u32 %v484, 2147483648
    %v513 = vor.u32 1.1754944e-38, %v512
    %v514 = vsel %vm511, %v513, %v509
    %v515 = vmul.f32 1.0, %v514
    %v516 = vrcp.pop %v485
    %v517 = vmul.f32 %v485, %v516
    %v518 = vsub.f32 1.0, %v517
    %v519 = vmul.f32 %v516, %v518
    %v520 = vadd.f32 %v516, %v519
    %vm521 = vweird.f32 %v485
    %vm522 = vweird.f32 %v516
    %vm523 = vmor %vm521, %vm522
    %v524 = vsel %vm523, %v516, %v520
    %v525 = vand.u32 2147483647, %v485
    %vm526 = vcmp.eq.f32.partialorder %v525, 8.507059e+37
    %v527 = vand.u32 %v485, 2147483648
    %v528 = vor.u32 1.1754944e-38, %v527
    %v529 = vsel %vm526, %v528, %v524
    %v530 = vmul.f32 1.0, %v529
    %537 = vrot.lane.b32.xlu0 %v437, 28
    %v538 = vpop.permute.xlu0 %537
    %539 = vrot.lane.b32.xlu0 %v463, 28
    %v540 = vpop.permute.xlu0 %539
    %541 = vrot.lane.b32.xlu0 %v440, 28
    %v542 = vpop.permute.xlu0 %541
    %543 = vrot.lane.b32.xlu0 %v466, 28
    %v544 = vpop.permute.xlu0 %543
    %545 = vrot.lane.b32.xlu0 %v443, 28
    %v546 = vpop.permute.xlu0 %545
    %547 = vrot.lane.b32.xlu0 %v469, 28
    %v548 = vpop.permute.xlu0 %547
    %vm549 = vcmask 228352
    %v550 = vsel %vm549, %v538, %v540
    %v551 = vsel %vm549, %v542, %v544
    %v552 = vsel %vm549, %v546, %v548
    %v556 = vmul.f32 %v500, %v550
    %v557 = vmul.f32 %v515, %v551
    %v558 = vmul.f32 %v530, %v552
    %562 = vrot.lane.b32.xlu0 %v556, 100
    %v563 = vpop.permute.xlu0 %562
    %564 = vrot.lane.b32.xlu0 %v557, 100
    %v565 = vpop.permute.xlu0 %564
    %566 = vrot.lane.b32.xlu0 %v558, 100
    %v567 = vpop.permute.xlu0 %566
    %v571 = vadd.f32 %v382, %v563
    %v572 = vadd.f32 %v383, %v563
    %v573 = vadd.f32 %v384, %v565
    %v574 = vadd.f32 %v385, %v565
    %v575 = vadd.f32 %v386, %v567
    %v576 = vadd.f32 %v387, %v567
    %v577 = vtanh.pop %v571
    %v578 = vtanh.pop %v572
    %v579 = vtanh.pop %v573
    %v580 = vtanh.pop %v574
    %v581 = vtanh.pop %v575
    %v582 = vtanh.pop %v576
    %v583 = vsub.f32 1.0, %v500
    %v584 = vsub.f32 1.0, %v515
    %v585 = vsub.f32 1.0, %v530
    %592 = vrot.lane.b32.xlu0 %v577, 78
    %v593 = vpop.permute.xlu0 %592
    %594 = vrot.lane.b32.xlu0 %v578, 78
    %v595 = vpop.permute.xlu0 %594
    %596 = vrot.lane.b32.xlu0 %v579, 78
    %v597 = vpop.permute.xlu0 %596
    %598 = vrot.lane.b32.xlu0 %v580, 78
    %v599 = vpop.permute.xlu0 %598
    %600 = vrot.lane.b32.xlu0 %v581, 78
    %v601 = vpop.permute.xlu0 %600
    %602 = vrot.lane.b32.xlu0 %v582, 78
    %v603 = vpop.permute.xlu0 %602
    %vm604 = vcmask 637952
    %v605 = vsel %vm604, %v593, %v595
    %v606 = vsel %vm604, %v597, %v599
    %v607 = vsel %vm604, %v601, %v603
    %v611 = vmul.f32 %v583, %v605
    %v612 = vmul.f32 %v584, %v606
    %v613 = vmul.f32 %v585, %v607
    %v614 = vmul.f32 %v500, 0.0
    %v615 = vmul.f32 %v515, 0.0
    %v616 = vmul.f32 %v530, 0.0
    %v617 = vadd.f32 %v611, %v614
    %v618 = vadd.f32 %v612, %v615
    %v619 = vadd.f32 %v613, %v616
    %v620 = vld [vmem:[#allocation2] sm:$0x1]
    %v621 = vld [vmem:[%s5] sm:$0xff]
    %v622 = vld [vmem:[%s5 + $0x8] sm:$0xff]
    %v623 = vld [vmem:[%s5 + $0x10] sm:$0xff]
    %v624 = vld [vmem:[%s5 + $0x18] sm:$0xff]
    %v625 = vld [vmem:[%s7] sm:$0x1]
    %vm626 = vcmask 261120
    %v627 = vsel %vm626, 0.0, 0
    %629 = vmatpush.msra.mxu0 0.0
    %630 = vmatpush.msra.mxu0 0.0
    %631 = vmatpush.msra.mxu0 0.0
    %632 = vmatpush.msra.mxu0 0.0
    %633 = vmatpush.msra.mxu0 0.0
    %634 = vmatpush.msra.mxu0 0.0
    %635 = vmatpush.msra.mxu0 0.0
    %636 = vmatpush.msra.mxu0 0.0
    %637 = vmatpush.msra.mxu0 0.0
    %638 = vmatpush.msra.mxu0 0.0
    %639 = vmatpush.msra.mxu0 0.0
    %640 = vmatpush.msra.mxu0 0.0
    %641 = vmatpush.msra.mxu0 %v624
    %642 = vmatpush.msra.mxu0 %v623
    %643 = vmatpush.msra.mxu0 %v622
    %644 = vmatpush.msra.mxu0 %v621
    %645 = vmatmul.f32.gmra.mxu0 %v627
    %v646 = vpop.f32.mrf.mxu0
    %v647 = vadd.f32 %v625, %v646
    %648 = vdwg.mxu0
    %v649 = vadd.f32 %v620, %v647
    %v650 = vxor.u32 %v649, 2147483648
    %v651 = vmul.f32 %v650, 1.442695
    %v652 = vpow.pop %v651
    %v653 = vadd.f32 %v652, 1.0
    %v654 = vrcp.pop %v653
    %v655 = vmul.f32 %v653, %v654
    %v656 = vsub.f32 1.0, %v655
    %v657 = vmul.f32 %v654, %v656
    %v658 = vadd.f32 %v654, %v657
    %vm659 = vweird.f32 %v653
    %vm660 = vweird.f32 %v654
    %vm661 = vmor %vm659, %vm660
    %v662 = vsel %vm661, %v654, %v658
    %v663 = vand.u32 2147483647, %v653
    %vm664 = vcmp.eq.f32.partialorder %v663, 8.507059e+37
    %v665 = vand.u32 %v653, 2147483648
    %v666 = vor.u32 1.1754944e-38, %v665
    %v667 = vsel %vm664, %v666, %v662
    %v668 = vmul.f32 1.0, %v667
    %670 = vrot.lane.b32.xlu0 %v647, 64
    %v671 = vpop.permute.xlu0 %670
    %v673 = vmul.f32 %v668, %v671
    %675 = vrot.lane.b32.xlu0 %v673, 64
    %v676 = vpop.permute.xlu0 %675
    %v678 = vadd.f32 %v620, %v676
    %v679 = vtanh.pop %v678
    %v680 = vsub.f32 1.0, %v668
    %682 = vrot.lane.b32.xlu0 %v679, 96
    %v683 = vpop.permute.xlu0 %682
    %v685 = vmul.f32 %v680, %v683
    %v686 = vmul.f32 %v668, 0.0
    %v687 = vadd.f32 %v685, %v686
    %v688 = vld [vmem:[#allocation2 + $0x1] sm:$0x1]
    %690 = vrot.lane.b32.xlu0 %v687, 96
    %v691 = vpop.permute.xlu0 %690
    %v692 = vsel %vm626, %v691, 0
    %694 = vmatpush.msra.mxu0 0.0
    %695 = vmatpush.msra.mxu0 0.0
    %696 = vmatpush.msra.mxu0 0.0
    %697 = vmatpush.msra.mxu0 0.0
    %698 = vmatpush.msra.mxu0 0.0
    %699 = vmatpush.msra.mxu0 0.0
    %700 = vmatpush.msra.mxu0 0.0
    %701 = vmatpush.msra.mxu0 0.0
    %702 = vmatpush.msra.mxu0 0.0
    %703 = vmatpush.msra.mxu0 0.0
    %704 = vmatpush.msra.mxu0 0.0
    %705 = vmatpush.msra.mxu0 0.0
    %706 = vmatpush.msra.mxu0 %v624
    %707 = vmatpush.msra.mxu0 %v623
    %708 = vmatpush.msra.mxu0 %v622
    %709 = vmatpush.msra.mxu0 %v621
    %710 = vmatmul.f32.gmra.mxu0 %v692
    %v711 = vpop.f32.mrf.mxu0
    %v712 = vadd.f32 %v625, %v711
    %713 = vdwg.mxu0
    %v714 = vadd.f32 %v688, %v712
    %v715 = vxor.u32 %v714, 2147483648
    %v716 = vmul.f32 %v715, 1.442695
    %v717 = vpow.pop %v716
    %v718 = vadd.f32 %v717, 1.0
    %v719 = vrcp.pop %v718
    %v720 = vmul.f32 %v718, %v719
    %v721 = vsub.f32 1.0, %v720
    %v722 = vmul.f32 %v719, %v721
    %v723 = vadd.f32 %v719, %v722
    %vm724 = vweird.f32 %v718
    %vm725 = vweird.f32 %v719
    %vm726 = vmor %vm724, %vm725
    %v727 = vsel %vm726, %v719, %v723
    %v728 = vand.u32 2147483647, %v718
    %vm729 = vcmp.eq.f32.partialorder %v728, 8.507059e+37
    %v730 = vand.u32 %v718, 2147483648
    %v731 = vor.u32 1.1754944e-38, %v730
    %v732 = vsel %vm729, %v731, %v727
    %v733 = vmul.f32 1.0, %v732
    %735 = vrot.lane.b32.xlu0 %v712, 64
    %v736 = vpop.permute.xlu0 %735
    %v738 = vmul.f32 %v733, %v736
    %740 = vrot.lane.b32.xlu0 %v738, 64
    %v741 = vpop.permute.xlu0 %740
    %v743 = vadd.f32 %v688, %v741
    %v744 = vtanh.pop %v743
    %v745 = vsub.f32 1.0, %v733
    %747 = vrot.lane.b32.xlu0 %v744, 96
    %v748 = vpop.permute.xlu0 %747
    %v750 = vmul.f32 %v745, %v748
    %v751 = vmul.f32 %v733, %v687
    %v752 = vadd.f32 %v750, %v751
    %v753 = vld [vmem:[#allocation2 + $0x2] sm:$0x1]
    %755 = vrot.lane.b32.xlu0 %v752, 96
    %v756 = vpop.permute.xlu0 %755
    %v757 = vsel %vm626, %v756, 0
    %759 = vmatpush.msra.mxu0 0.0
    %760 = vmatpush.msra.mxu0 0.0
    %761 = vmatpush.msra.mxu0 0.0
    %762 = vmatpush.msra.mxu0 0.0
    %763 = vmatpush.msra.mxu0 0.0
    %764 = vmatpush.msra.mxu0 0.0
    %765 = vmatpush.msra.mxu0 0.0
    %766 = vmatpush.msra.mxu0 0.0
    %767 = vmatpush.msra.mxu0 0.0
    %768 = vmatpush.msra.mxu0 0.0
    %769 = vmatpush.msra.mxu0 0.0
    %770 = vmatpush.msra.mxu0 0.0
    %771 = vmatpush.msra.mxu0 %v624
    %772 = vmatpush.msra.mxu0 %v623
    %773 = vmatpush.msra.mxu0 %v622
    %774 = vmatpush.msra.mxu0 %v621
    %775 = vmatmul.f32.gmra.mxu0 %v757
    %v776 = vpop.f32.mrf.mxu0
    %v777 = vadd.f32 %v625, %v776
    %778 = vdwg.mxu0
    %v779 = vadd.f32 %v753, %v777
    %v780 = vxor.u32 %v779, 2147483648
    %v781 = vmul.f32 %v780, 1.442695
    %v782 = vpow.pop %v781
    %v783 = vadd.f32 %v782, 1.0
    %v784 = vrcp.pop %v783
    %v785 = vmul.f32 %v783, %v784
    %v786 = vsub.f32 1.0, %v785
    %v787 = vmul.f32 %v784, %v786
    %v788 = vadd.f32 %v784, %v787
    %vm789 = vweird.f32 %v783
    %vm790 = vweird.f32 %v784
    %vm791 = vmor %vm789, %vm790
    %v792 = vsel %vm791, %v784, %v788
    %v793 = vand.u32 2147483647, %v783
    %vm794 = vcmp.eq.f32.partialorder %v793, 8.507059e+37
    %v795 = vand.u32 %v783, 2147483648
    %v796 = vor.u32 1.1754944e-38, %v795
    %v797 = vsel %vm794, %v796, %v792
    %v798 = vmul.f32 1.0, %v797
    %800 = vrot.lane.b32.xlu0 %v777, 64
    %v801 = vpop.permute.xlu0 %800
    %v803 = vmul.f32 %v798, %v801
    %805 = vrot.lane.b32.xlu0 %v803, 64
    %v806 = vpop.permute.xlu0 %805
    %v808 = vadd.f32 %v753, %v806
    %v809 = vtanh.pop %v808
    %v810 = vsub.f32 1.0, %v798
    %812 = vrot.lane.b32.xlu0 %v809, 96
    %v813 = vpop.permute.xlu0 %812
    %v815 = vmul.f32 %v810, %v813
    %v816 = vmul.f32 %v798, %v752
    %v817 = vadd.f32 %v815, %v816
    %v818 = vld [vmem:[#allocation2 + $0x3] sm:$0x1]
    %820 = vrot.lane.b32.xlu0 %v817, 96
    %v821 = vpop.permute.xlu0 %820
    %v822 = vsel %vm626, %v821, 0
    %824 = vmatpush.msra.mxu0 0.0
    %825 = vmatpush.msra.mxu0 0.0
    %826 = vmatpush.msra.mxu0 0.0
    %827 = vmatpush.msra.mxu0 0.0
    %828 = vmatpush.msra.mxu0 0.0
    %829 = vmatpush.msra.mxu0 0.0
    %830 = vmatpush.msra.mxu0 0.0
    %831 = vmatpush.msra.mxu0 0.0
    %832 = vmatpush.msra.mxu0 0.0
    %833 = vmatpush.msra.mxu0 0.0
    %834 = vmatpush.msra.mxu0 0.0
    %835 = vmatpush.msra.mxu0 0.0
    %836 = vmatpush.msra.mxu0 %v624
    %837 = vmatpush.msra.mxu0 %v623
    %838 = vmatpush.msra.mxu0 %v622
    %839 = vmatpush.msra.mxu0 %v621
    %840 = vmatmul.f32.gmra.mxu0 %v822
    %v841 = vpop.f32.mrf.mxu0
    %v842 = vadd.f32 %v625, %v841
    %843 = vdwg.mxu0
    %v844 = vadd.f32 %v818, %v842
    %v845 = vxor.u32 %v844, 2147483648
    %v846 = vmul.f32 %v845, 1.442695
    %v847 = vpow.pop %v846
    %v848 = vadd.f32 %v847, 1.0
    %v849 = vrcp.pop %v848
    %v850 = vmul.f32 %v848, %v849
    %v851 = vsub.f32 1.0, %v850
    %v852 = vmul.f32 %v849, %v851
    %v853 = vadd.f32 %v849, %v852
    %vm854 = vweird.f32 %v848
    %vm855 = vweird.f32 %v849
    %vm856 = vmor %vm854, %vm855
    %v857 = vsel %vm856, %v849, %v853
    %v858 = vand.u32 2147483647, %v848
    %vm859 = vcmp.eq.f32.partialorder %v858, 8.507059e+37
    %v860 = vand.u32 %v848, 2147483648
    %v861 = vor.u32 1.1754944e-38, %v860
    %v862 = vsel %vm859, %v861, %v857
    %v863 = vmul.f32 1.0, %v862
    %865 = vrot.lane.b32.xlu0 %v842, 64
    %v866 = vpop.permute.xlu0 %865
    %v868 = vmul.f32 %v863, %v866
    %870 = vrot.lane.b32.xlu0 %v868, 64
    %v871 = vpop.permute.xlu0 %870
    %v873 = vadd.f32 %v818, %v871
    %v874 = vtanh.pop %v873
    %v875 = vsub.f32 1.0, %v863
    %877 = vrot.lane.b32.xlu0 %v874, 96
    %v878 = vpop.permute.xlu0 %877
    %v880 = vmul.f32 %v875, %v878
    %v881 = vmul.f32 %v863, %v817
    %v882 = vadd.f32 %v880, %v881
    %v883 = vld [vmem:[#allocation2 + $0x4] sm:$0x1]
    %885 = vrot.lane.b32.xlu0 %v882, 96
    %v886 = vpop.permute.xlu0 %885
    %v887 = vsel %vm626, %v886, 0
    %889 = vmatpush.msra.mxu0 0.0
    %890 = vmatpush.msra.mxu0 0.0
    %891 = vmatpush.msra.mxu0 0.0
    %892 = vmatpush.msra.mxu0 0.0
    %893 = vmatpush.msra.mxu0 0.0
    %894 = vmatpush.msra.mxu0 0.0
    %895 = vmatpush.msra.mxu0 0.0
    %896 = vmatpush.msra.mxu0 0.0
    %897 = vmatpush.msra.mxu0 0.0
    %898 = vmatpush.msra.mxu0 0.0
    %899 = vmatpush.msra.mxu0 0.0
    %900 = vmatpush.msra.mxu0 0.0
    %901 = vmatpush.msra.mxu0 %v624
    %902 = vmatpush.msra.mxu0 %v623
    %903 = vmatpush.msra.mxu0 %v622
    %904 = vmatpush.msra.mxu0 %v621
    %905 = vmatmul.f32.gmra.mxu0 %v887
    %v906 = vpop.f32.mrf.mxu0
    %v907 = vadd.f32 %v625, %v906
    %908 = vdwg.mxu0
    %v909 = vadd.f32 %v883, %v907
    %v910 = vxor.u32 %v909, 2147483648
    %v911 = vmul.f32 %v910, 1.442695
    %v912 = vpow.pop %v911
    %v913 = vadd.f32 %v912, 1.0
    %v914 = vrcp.pop %v913
    %v915 = vmul.f32 %v913, %v914
    %v916 = vsub.f32 1.0, %v915
    %v917 = vmul.f32 %v914, %v916
    %v918 = vadd.f32 %v914, %v917
    %vm919 = vweird.f32 %v913
    %vm920 = vweird.f32 %v914
    %vm921 = vmor %vm919, %vm920
    %v922 = vsel %vm921, %v914, %v918
    %v923 = vand.u32 2147483647, %v913
    %vm924 = vcmp.eq.f32.partialorder %v923, 8.507059e+37
    %v925 = vand.u32 %v913, 2147483648
    %v926 = vor.u32 1.1754944e-38, %v925
    %v927 = vsel %vm924, %v926, %v922
    %v928 = vmul.f32 1.0, %v927
    %930 = vrot.lane.b32.xlu0 %v907, 64
    %v931 = vpop.permute.xlu0 %930
    %v933 = vmul.f32 %v928, %v931
    %935 = vrot.lane.b32.xlu0 %v933, 64
    %v936 = vpop.permute.xlu0 %935
    %v938 = vadd.f32 %v883, %v936
    %v939 = vtanh.pop %v938
    %v940 = vsub.f32 1.0, %v928
    %942 = vrot.lane.b32.xlu0 %v939, 96
    %v943 = vpop.permute.xlu0 %942
    %v945 = vmul.f32 %v940, %v943
    %v946 = vmul.f32 %v928, %v882
    %v947 = vadd.f32 %v945, %v946
    %v948 = vld [vmem:[#allocation2 + $0x5] sm:$0x1]
    %950 = vrot.lane.b32.xlu0 %v947, 96
    %v951 = vpop.permute.xlu0 %950
    %v952 = vsel %vm626, %v951, 0
    %954 = vmatpush.msra.mxu0 0.0
    %955 = vmatpush.msra.mxu0 0.0
    %956 = vmatpush.msra.mxu0 0.0
    %957 = vmatpush.msra.mxu0 0.0
    %958 = vmatpush.msra.mxu0 0.0
    %959 = vmatpush.msra.mxu0 0.0
    %960 = vmatpush.msra.mxu0 0.0
    %961 = vmatpush.msra.mxu0 0.0
    %962 = vmatpush.msra.mxu0 0.0
    %963 = vmatpush.msra.mxu0 0.0
    %964 = vmatpush.msra.mxu0 0.0
    %965 = vmatpush.msra.mxu0 0.0
    %966 = vmatpush.msra.mxu0 %v624
    %967 = vmatpush.msra.mxu0 %v623
    %968 = vmatpush.msra.mxu0 %v622
    %969 = vmatpush.msra.mxu0 %v621
    %970 = vmatmul.f32.gmra.mxu0 %v952
    %v971 = vpop.f32.mrf.mxu0
    %v972 = vadd.f32 %v625, %v971
    %973 = vdwg.mxu0
    %v974 = vadd.f32 %v948, %v972
    %v975 = vxor.u32 %v974, 2147483648
    %v976 = vmul.f32 %v975, 1.442695
    %v977 = vpow.pop %v976
    %v978 = vadd.f32 %v977, 1.0
    %v979 = vrcp.pop %v978
    %v980 = vmul.f32 %v978, %v979
    %v981 = vsub.f32 1.0, %v980
    %v982 = vmul.f32 %v979, %v981
    %v983 = vadd.f32 %v979, %v982
    %vm984 = vweird.f32 %v978
    %vm985 = vweird.f32 %v979
    %vm986 = vmor %vm984, %vm985
    %v987 = vsel %vm986, %v979, %v983
    %v988 = vand.u32 2147483647, %v978
    %vm989 = vcmp.eq.f32.partialorder %v988, 8.507059e+37
    %v990 = vand.u32 %v978, 2147483648
    %v991 = vor.u32 1.1754944e-38, %v990
    %v992 = vsel %vm989, %v991, %v987
    %v993 = vmul.f32 1.0, %v992
    %995 = vrot.lane.b32.xlu0 %v972, 64
    %v996 = vpop.permute.xlu0 %995
    %v998 = vmul.f32 %v993, %v996
    %1000 = vrot.lane.b32.xlu0 %v998, 64
    %v1001 = vpop.permute.xlu0 %1000
    %v1003 = vadd.f32 %v948, %v1001
    %v1004 = vtanh.pop %v1003
    %v1005 = vsub.f32 1.0, %v993
    %1007 = vrot.lane.b32.xlu0 %v1004, 96
    %v1008 = vpop.permute.xlu0 %1007
    %v1010 = vmul.f32 %v1005, %v1008
    %v1011 = vmul.f32 %v993, %v947
    %v1012 = vadd.f32 %v1010, %v1011
    %v1013 = vld [vmem:[#allocation2 + $0x6] sm:$0x1]
    %1015 = vrot.lane.b32.xlu0 %v1012, 96
    %v1016 = vpop.permute.xlu0 %1015
    %v1017 = vsel %vm626, %v1016, 0
    %1019 = vmatpush.msra.mxu0 0.0
    %1020 = vmatpush.msra.mxu0 0.0
    %1021 = vmatpush.msra.mxu0 0.0
    %1022 = vmatpush.msra.mxu0 0.0
    %1023 = vmatpush.msra.mxu0 0.0
    %1024 = vmatpush.msra.mxu0 0.0
    %1025 = vmatpush.msra.mxu0 0.0
    %1026 = vmatpush.msra.mxu0 0.0
    %1027 = vmatpush.msra.mxu0 0.0
    %1028 = vmatpush.msra.mxu0 0.0
    %1029 = vmatpush.msra.mxu0 0.0
    %1030 = vmatpush.msra.mxu0 0.0
    %1031 = vmatpush.msra.mxu0 %v624
    %1032 = vmatpush.msra.mxu0 %v623
    %1033 = vmatpush.msra.mxu0 %v622
    %1034 = vmatpush.msra.mxu0 %v621
    %1035 = vmatmul.f32.gmra.mxu0 %v1017
    %v1036 = vpop.f32.mrf.mxu0
    %v1037 = vadd.f32 %v625, %v1036
    %1038 = vdwg.mxu0
    %v1039 = vadd.f32 %v1013, %v1037
    %v1040 = vxor.u32 %v1039, 2147483648
    %v1041 = vmul.f32 %v1040, 1.442695
    %v1042 = vpow.pop %v1041
    %v1043 = vadd.f32 %v1042, 1.0
    %v1044 = vrcp.pop %v1043
    %v1045 = vmul.f32 %v1043, %v1044
    %v1046 = vsub.f32 1.0, %v1045
    %v1047 = vmul.f32 %v1044, %v1046
    %v1048 = vadd.f32 %v1044, %v1047
    %vm1049 = vweird.f32 %v1043
    %vm1050 = vweird.f32 %v1044
    %vm1051 = vmor %vm1049, %vm1050
    %v1052 = vsel %vm1051, %v1044, %v1048
    %v1053 = vand.u32 2147483647, %v1043
    %vm1054 = vcmp.eq.f32.partialorder %v1053, 8.507059e+37
    %v1055 = vand.u32 %v1043, 2147483648
    %v1056 = vor.u32 1.1754944e-38, %v1055
    %v1057 = vsel %vm1054, %v1056, %v1052
    %v1058 = vmul.f32 1.0, %v1057
    %1060 = vrot.lane.b32.xlu0 %v1037, 64
    %v1061 = vpop.permute.xlu0 %1060
    %v1063 = vmul.f32 %v1058, %v1061
    %1065 = vrot.lane.b32.xlu0 %v1063, 64
    %v1066 = vpop.permute.xlu0 %1065
    %v1068 = vadd.f32 %v1013, %v1066
    %v1069 = vtanh.pop %v1068
    %v1070 = vsub.f32 1.0, %v1058
    %1072 = vrot.lane.b32.xlu0 %v1069, 96
    %v1073 = vpop.permute.xlu0 %1072
    %v1075 = vmul.f32 %v1070, %v1073
    %v1076 = vmul.f32 %v1058, %v1012
    %v1077 = vadd.f32 %v1075, %v1076
    %v1078 = vld [vmem:[#allocation2 + $0x7] sm:$0x1]
    %1080 = vrot.lane.b32.xlu0 %v1077, 96
    %v1081 = vpop.permute.xlu0 %1080
    %v1082 = vsel %vm626, %v1081, 0
    %1084 = vmatpush.msra.mxu0 0.0
    %1085 = vmatpush.msra.mxu0 0.0
    %1086 = vmatpush.msra.mxu0 0.0
    %1087 = vmatpush.msra.mxu0 0.0
    %1088 = vmatpush.msra.mxu0 0.0
    %1089 = vmatpush.msra.mxu0 0.0
    %1090 = vmatpush.msra.mxu0 0.0
    %1091 = vmatpush.msra.mxu0 0.0
    %1092 = vmatpush.msra.mxu0 0.0
    %1093 = vmatpush.msra.mxu0 0.0
    %1094 = vmatpush.msra.mxu0 0.0
    %1095 = vmatpush.msra.mxu0 0.0
    %1096 = vmatpush.msra.mxu0 %v624
    %1097 = vmatpush.msra.mxu0 %v623
    %1098 = vmatpush.msra.mxu0 %v622
    %1099 = vmatpush.msra.mxu0 %v621
    %1100 = vmatmul.f32.gmra.mxu0 %v1082
    %v1101 = vpop.f32.mrf.mxu0
    %v1102 = vadd.f32 %v625, %v1101
    %1103 = vdwg.mxu0
    %v1104 = vadd.f32 %v1078, %v1102
    %v1105 = vxor.u32 %v1104, 2147483648
    %v1106 = vmul.f32 %v1105, 1.442695
    %v1107 = vpow.pop %v1106
    %v1108 = vadd.f32 %v1107, 1.0
    %v1109 = vrcp.pop %v1108
    %v1110 = vmul.f32 %v1108, %v1109
    %v1111 = vsub.f32 1.0, %v1110
    %v1112 = vmul.f32 %v1109, %v1111
    %v1113 = vadd.f32 %v1109, %v1112
    %vm1114 = vweird.f32 %v1108
    %vm1115 = vweird.f32 %v1109
    %vm1116 = vmor %vm1114, %vm1115
    %v1117 = vsel %vm1116, %v1109, %v1113
    %v1118 = vand.u32 2147483647, %v1108
    %vm1119 = vcmp.eq.f32.partialorder %v1118, 8.507059e+37
    %v1120 = vand.u32 %v1108, 2147483648
    %v1121 = vor.u32 1.1754944e-38, %v1120
    %v1122 = vsel %vm1119, %v1121, %v1117
    %v1123 = vmul.f32 1.0, %v1122
    %1125 = vrot.lane.b32.xlu0 %v1102, 64
    %v1126 = vpop.permute.xlu0 %1125
    %v1128 = vmul.f32 %v1123, %v1126
    %1130 = vrot.lane.b32.xlu0 %v1128, 64
    %v1131 = vpop.permute.xlu0 %1130
    %v1133 = vadd.f32 %v1078, %v1131
    %v1134 = vtanh.pop %v1133
    %v1135 = vsub.f32 1.0, %v1123
    %1137 = vrot.lane.b32.xlu0 %v1134, 96
    %v1138 = vpop.permute.xlu0 %1137
    %v1140 = vmul.f32 %v1135, %v1138
    %v1141 = vmul.f32 %v1123, %v1077
    %v1142 = vadd.f32 %v1140, %v1141
    %v1143 = vld [vmem:[#allocation2 + $0x8] sm:$0x1]
    %1145 = vrot.lane.b32.xlu0 %v1142, 96
    %v1146 = vpop.permute.xlu0 %1145
    %v1147 = vsel %vm626, %v1146, 0
    %1149 = vmatpush.msra.mxu0 0.0
    %1150 = vmatpush.msra.mxu0 0.0
    %1151 = vmatpush.msra.mxu0 0.0
    %1152 = vmatpush.msra.mxu0 0.0
    %1153 = vmatpush.msra.mxu0 0.0
    %1154 = vmatpush.msra.mxu0 0.0
    %1155 = vmatpush.msra.mxu0 0.0
    %1156 = vmatpush.msra.mxu0 0.0
    %1157 = vmatpush.msra.mxu0 0.0
    %1158 = vmatpush.msra.mxu0 0.0
    %1159 = vmatpush.msra.mxu0 0.0
    %1160 = vmatpush.msra.mxu0 0.0
    %1161 = vmatpush.msra.mxu0 %v624
    %1162 = vmatpush.msra.mxu0 %v623
    %1163 = vmatpush.msra.mxu0 %v622
    %1164 = vmatpush.msra.mxu0 %v621
    %1165 = vmatmul.f32.gmra.mxu0 %v1147
    %v1166 = vpop.f32.mrf.mxu0
    %v1167 = vadd.f32 %v625, %v1166
    %1168 = vdwg.mxu0
    %v1169 = vadd.f32 %v1143, %v1167
    %v1170 = vxor.u32 %v1169, 2147483648
    %v1171 = vmul.f32 %v1170, 1.442695
    %v1172 = vpow.pop %v1171
    %v1173 = vadd.f32 %v1172, 1.0
    %v1174 = vrcp.pop %v1173
    %v1175 = vmul.f32 %v1173, %v1174
    %v1176 = vsub.f32 1.0, %v1175
    %v1177 = vmul.f32 %v1174, %v1176
    %v1178 = vadd.f32 %v1174, %v1177
    %vm1179 = vweird.f32 %v1173
    %vm1180 = vweird.f32 %v1174
    %vm1181 = vmor %vm1179, %vm1180
    %v1182 = vsel %vm1181, %v1174, %v1178
    %v1183 = vand.u32 2147483647, %v1173
    %vm1184 = vcmp.eq.f32.partialorder %v1183, 8.507059e+37
    %v1185 = vand.u32 %v1173, 2147483648
    %v1186 = vor.u32 1.1754944e-38, %v1185
    %v1187 = vsel %vm1184, %v1186, %v1182
    %v1188 = vmul.f32 1.0, %v1187
    %1190 = vrot.lane.b32.xlu0 %v1167, 64
    %v1191 = vpop.permute.xlu0 %1190
    %v1193 = vmul.f32 %v1188, %v1191
    %1195 = vrot.lane.b32.xlu0 %v1193, 64
    %v1196 = vpop.permute.xlu0 %1195
    %v1198 = vadd.f32 %v1143, %v1196
    %v1199 = vtanh.pop %v1198
    %v1200 = vsub.f32 1.0, %v1188
    %1202 = vrot.lane.b32.xlu0 %v1199, 96
    %v1203 = vpop.permute.xlu0 %1202
    %v1205 = vmul.f32 %v1200, %v1203
    %v1206 = vmul.f32 %v1188, %v1142
    %v1207 = vadd.f32 %v1205, %v1206
    %v1208 = vld [vmem:[#allocation2 + $0x9] sm:$0x1]
    %1210 = vrot.lane.b32.xlu0 %v1207, 96
    %v1211 = vpop.permute.xlu0 %1210
    %v1212 = vsel %vm626, %v1211, 0
    %1214 = vmatpush.msra.mxu0 0.0
    %1215 = vmatpush.msra.mxu0 0.0
    %1216 = vmatpush.msra.mxu0 0.0
    %1217 = vmatpush.msra.mxu0 0.0
    %1218 = vmatpush.msra.mxu0 0.0
    %1219 = vmatpush.msra.mxu0 0.0
    %1220 = vmatpush.msra.mxu0 0.0
    %1221 = vmatpush.msra.mxu0 0.0
    %1222 = vmatpush.msra.mxu0 0.0
    %1223 = vmatpush.msra.mxu0 0.0
    %1224 = vmatpush.msra.mxu0 0.0
    %1225 = vmatpush.msra.mxu0 0.0
    %1226 = vmatpush.msra.mxu0 %v624
    %1227 = vmatpush.msra.mxu0 %v623
    %1228 = vmatpush.msra.mxu0 %v622
    %1229 = vmatpush.msra.mxu0 %v621
    %1230 = vmatmul.f32.gmra.mxu0 %v1212
    %v1231 = vpop.f32.mrf.mxu0
    %v1232 = vadd.f32 %v625, %v1231
    %1233 = vdwg.mxu0
    %v1234 = vadd.f32 %v1208, %v1232
    %v1235 = vxor.u32 %v1234, 2147483648
    %v1236 = vmul.f32 %v1235, 1.442695
    %v1237 = vpow.pop %v1236
    %v1238 = vadd.f32 %v1237, 1.0
    %v1239 = vrcp.pop %v1238
    %v1240 = vmul.f32 %v1238, %v1239
    %v1241 = vsub.f32 1.0, %v1240
    %v1242 = vmul.f32 %v1239, %v1241
    %v1243 = vadd.f32 %v1239, %v1242
    %vm1244 = vweird.f32 %v1238
    %vm1245 = vweird.f32 %v1239
    %vm1246 = vmor %vm1244, %vm1245
    %v1247 = vsel %vm1246, %v1239, %v1243
    %v1248 = vand.u32 2147483647, %v1238
    %vm1249 = vcmp.eq.f32.partialorder %v1248, 8.507059e+37
    %v1250 = vand.u32 %v1238, 2147483648
    %v1251 = vor.u32 1.1754944e-38, %v1250
    %v1252 = vsel %vm1249, %v1251, %v1247
    %v1253 = vmul.f32 1.0, %v1252
    %1255 = vrot.lane.b32.xlu0 %v1232, 64
    %v1256 = vpop.permute.xlu0 %1255
    %v1258 = vmul.f32 %v1253, %v1256
    %1260 = vrot.lane.b32.xlu0 %v1258, 64
    %v1261 = vpop.permute.xlu0 %1260
    %v1263 = vadd.f32 %v1208, %v1261
    %v1264 = vtanh.pop %v1263
    %v1265 = vsub.f32 1.0, %v1253
    %1267 = vrot.lane.b32.xlu0 %v1264, 96
    %v1268 = vpop.permute.xlu0 %1267
    %v1270 = vmul.f32 %v1265, %v1268
    %v1271 = vmul.f32 %v1253, %v1207
    %v1272 = vadd.f32 %v1270, %v1271
    %v1273 = vld [vmem:[#allocation2 + $0xa] sm:$0x1]
    %1275 = vrot.lane.b32.xlu0 %v1272, 96
    %v1276 = vpop.permute.xlu0 %1275
    %v1277 = vsel %vm626, %v1276, 0
    %1279 = vmatpush.msra.mxu0 0.0
    %1280 = vmatpush.msra.mxu0 0.0
    %1281 = vmatpush.msra.mxu0 0.0
    %1282 = vmatpush.msra.mxu0 0.0
    %1283 = vmatpush.msra.mxu0 0.0
    %1284 = vmatpush.msra.mxu0 0.0
    %1285 = vmatpush.msra.mxu0 0.0
    %1286 = vmatpush.msra.mxu0 0.0
    %1287 = vmatpush.msra.mxu0 0.0
    %1288 = vmatpush.msra.mxu0 0.0
    %1289 = vmatpush.msra.mxu0 0.0
    %1290 = vmatpush.msra.mxu0 0.0
    %1291 = vmatpush.msra.mxu0 %v624
    %1292 = vmatpush.msra.mxu0 %v623
    %1293 = vmatpush.msra.mxu0 %v622
    %1294 = vmatpush.msra.mxu0 %v621
    %1295 = vmatmul.f32.gmra.mxu0 %v1277
    %v1296 = vpop.f32.mrf.mxu0
    %v1297 = vadd.f32 %v625, %v1296
    %1298 = vdwg.mxu0
    %v1299 = vadd.f32 %v1273, %v1297
    %v1300 = vxor.u32 %v1299, 2147483648
    %v1301 = vmul.f32 %v1300, 1.442695
    %v1302 = vpow.pop %v1301
    %v1303 = vadd.f32 %v1302, 1.0
    %v1304 = vrcp.pop %v1303
    %v1305 = vmul.f32 %v1303, %v1304
    %v1306 = vsub.f32 1.0, %v1305
    %v1307 = vmul.f32 %v1304, %v1306
    %v1308 = vadd.f32 %v1304, %v1307
    %vm1309 = vweird.f32 %v1303
    %vm1310 = vweird.f32 %v1304
    %vm1311 = vmor %vm1309, %vm1310
    %v1312 = vsel %vm1311, %v1304, %v1308
    %v1313 = vand.u32 2147483647, %v1303
    %vm1314 = vcmp.eq.f32.partialorder %v1313, 8.507059e+37
    %v1315 = vand.u32 %v1303, 2147483648
    %v1316 = vor.u32 1.1754944e-38, %v1315
    %v1317 = vsel %vm1314, %v1316, %v1312
    %v1318 = vmul.f32 1.0, %v1317
    %1320 = vrot.lane.b32.xlu0 %v1297, 64
    %v1321 = vpop.permute.xlu0 %1320
    %v1323 = vmul.f32 %v1318, %v1321
    %1325 = vrot.lane.b32.xlu0 %v1323, 64
    %v1326 = vpop.permute.xlu0 %1325
    %v1328 = vadd.f32 %v1273, %v1326
    %v1329 = vtanh.pop %v1328
    %v1330 = vsub.f32 1.0, %v1318
    %1332 = vrot.lane.b32.xlu0 %v1329, 96
    %v1333 = vpop.permute.xlu0 %1332
    %v1335 = vmul.f32 %v1330, %v1333
    %v1336 = vmul.f32 %v1318, %v1272
    %v1337 = vadd.f32 %v1335, %v1336
    %v1338 = vld [vmem:[#allocation2 + $0xb] sm:$0x1]
    %1340 = vrot.lane.b32.xlu0 %v1337, 96
    %v1341 = vpop.permute.xlu0 %1340
    %v1342 = vsel %vm626, %v1341, 0
    %1344 = vmatpush.msra.mxu0 0.0
    %1345 = vmatpush.msra.mxu0 0.0
    %1346 = vmatpush.msra.mxu0 0.0
    %1347 = vmatpush.msra.mxu0 0.0
    %1348 = vmatpush.msra.mxu0 0.0
    %1349 = vmatpush.msra.mxu0 0.0
    %1350 = vmatpush.msra.mxu0 0.0
    %1351 = vmatpush.msra.mxu0 0.0
    %1352 = vmatpush.msra.mxu0 0.0
    %1353 = vmatpush.msra.mxu0 0.0
    %1354 = vmatpush.msra.mxu0 0.0
    %1355 = vmatpush.msra.mxu0 0.0
    %1356 = vmatpush.msra.mxu0 %v624
    %1357 = vmatpush.msra.mxu0 %v623
    %1358 = vmatpush.msra.mxu0 %v622
    %1359 = vmatpush.msra.mxu0 %v621
    %1360 = vmatmul.f32.gmra.mxu0 %v1342
    %v1361 = vpop.f32.mrf.mxu0
    %v1362 = vadd.f32 %v625, %v1361
    %1363 = vdwg.mxu0
    %v1364 = vadd.f32 %v1338, %v1362
    %v1365 = vxor.u32 %v1364, 2147483648
    %v1366 = vmul.f32 %v1365, 1.442695
    %v1367 = vpow.pop %v1366
    %v1368 = vadd.f32 %v1367, 1.0
    %v1369 = vrcp.pop %v1368
    %v1370 = vmul.f32 %v1368, %v1369
    %v1371 = vsub.f32 1.0, %v1370
    %v1372 = vmul.f32 %v1369, %v1371
    %v1373 = vadd.f32 %v1369, %v1372
    %vm1374 = vweird.f32 %v1368
    %vm1375 = vweird.f32 %v1369
    %vm1376 = vmor %vm1374, %vm1375
    %v1377 = vsel %vm1376, %v1369, %v1373
    %v1378 = vand.u32 2147483647, %v1368
    %vm1379 = vcmp.eq.f32.partialorder %v1378, 8.507059e+37
    %v1380 = vand.u32 %v1368, 2147483648
    %v1381 = vor.u32 1.1754944e-38, %v1380
    %v1382 = vsel %vm1379, %v1381, %v1377
    %v1383 = vmul.f32 1.0, %v1382
    %1385 = vrot.lane.b32.xlu0 %v1362, 64
    %v1386 = vpop.permute.xlu0 %1385
    %v1388 = vmul.f32 %v1383, %v1386
    %1390 = vrot.lane.b32.xlu0 %v1388, 64
    %v1391 = vpop.permute.xlu0 %1390
    %v1393 = vadd.f32 %v1338, %v1391
    %v1394 = vtanh.pop %v1393
    %v1395 = vsub.f32 1.0, %v1383
    %1397 = vrot.lane.b32.xlu0 %v1394, 96
    %v1398 = vpop.permute.xlu0 %1397
    %v1400 = vmul.f32 %v1395, %v1398
    %v1401 = vmul.f32 %v1383, %v1337
    %v1402 = vadd.f32 %v1400, %v1401
    %v1403 = vld [vmem:[#allocation2 + $0xc] sm:$0x1]
    %1405 = vrot.lane.b32.xlu0 %v1402, 96
    %v1406 = vpop.permute.xlu0 %1405
    %v1407 = vsel %vm626, %v1406, 0
    %1409 = vmatpush.msra.mxu0 0.0
    %1410 = vmatpush.msra.mxu0 0.0
    %1411 = vmatpush.msra.mxu0 0.0
    %1412 = vmatpush.msra.mxu0 0.0
    %1413 = vmatpush.msra.mxu0 0.0
    %1414 = vmatpush.msra.mxu0 0.0
    %1415 = vmatpush.msra.mxu0 0.0
    %1416 = vmatpush.msra.mxu0 0.0
    %1417 = vmatpush.msra.mxu0 0.0
    %1418 = vmatpush.msra.mxu0 0.0
    %1419 = vmatpush.msra.mxu0 0.0
    %1420 = vmatpush.msra.mxu0 0.0
    %1421 = vmatpush.msra.mxu0 %v624
    %1422 = vmatpush.msra.mxu0 %v623
    %1423 = vmatpush.msra.mxu0 %v622
    %1424 = vmatpush.msra.mxu0 %v621
    %1425 = vmatmul.f32.gmra.mxu0 %v1407
    %v1426 = vpop.f32.mrf.mxu0
    %v1427 = vadd.f32 %v625, %v1426
    %1428 = vdwg.mxu0
    %v1429 = vadd.f32 %v1403, %v1427
    %v1430 = vxor.u32 %v1429, 2147483648
    %v1431 = vmul.f32 %v1430, 1.442695
    %v1432 = vpow.pop %v1431
    %v1433 = vadd.f32 %v1432, 1.0
    %v1434 = vrcp.pop %v1433
    %v1435 = vmul.f32 %v1433, %v1434
    %v1436 = vsub.f32 1.0, %v1435
    %v1437 = vmul.f32 %v1434, %v1436
    %v1438 = vadd.f32 %v1434, %v1437
    %vm1439 = vweird.f32 %v1433
    %vm1440 = vweird.f32 %v1434
    %vm1441 = vmor %vm1439, %vm1440
    %v1442 = vsel %vm1441, %v1434, %v1438
    %v1443 = vand.u32 2147483647, %v1433
    %vm1444 = vcmp.eq.f32.partialorder %v1443, 8.507059e+37
    %v1445 = vand.u32 %v1433, 2147483648
    %v1446 = vor.u32 1.1754944e-38, %v1445
    %v1447 = vsel %vm1444, %v1446, %v1442
    %v1448 = vmul.f32 1.0, %v1447
    %1450 = vrot.lane.b32.xlu0 %v1427, 64
    %v1451 = vpop.permute.xlu0 %1450
    %v1453 = vmul.f32 %v1448, %v1451
    %1455 = vrot.lane.b32.xlu0 %v1453, 64
    %v1456 = vpop.permute.xlu0 %1455
    %v1458 = vadd.f32 %v1403, %v1456
    %v1459 = vtanh.pop %v1458
    %v1460 = vsub.f32 1.0, %v1448
    %1462 = vrot.lane.b32.xlu0 %v1459, 96
    %v1463 = vpop.permute.xlu0 %1462
    %v1465 = vmul.f32 %v1460, %v1463
    %v1466 = vmul.f32 %v1448, %v1402
    %v1467 = vadd.f32 %v1465, %v1466
    %v1468 = vld [vmem:[#allocation2 + $0xd] sm:$0x1]
    %1470 = vrot.lane.b32.xlu0 %v1467, 96
    %v1471 = vpop.permute.xlu0 %1470
    %v1472 = vsel %vm626, %v1471, 0
    %1474 = vmatpush.msra.mxu0 0.0
    %1475 = vmatpush.msra.mxu0 0.0
    %1476 = vmatpush.msra.mxu0 0.0
    %1477 = vmatpush.msra.mxu0 0.0
    %1478 = vmatpush.msra.mxu0 0.0
    %1479 = vmatpush.msra.mxu0 0.0
    %1480 = vmatpush.msra.mxu0 0.0
    %1481 = vmatpush.msra.mxu0 0.0
    %1482 = vmatpush.msra.mxu0 0.0
    %1483 = vmatpush.msra.mxu0 0.0
    %1484 = vmatpush.msra.mxu0 0.0
    %1485 = vmatpush.msra.mxu0 0.0
    %1486 = vmatpush.msra.mxu0 %v624
    %1487 = vmatpush.msra.mxu0 %v623
    %1488 = vmatpush.msra.mxu0 %v622
    %1489 = vmatpush.msra.mxu0 %v621
    %1490 = vmatmul.f32.gmra.mxu0 %v1472
    %v1491 = vpop.f32.mrf.mxu0
    %v1492 = vadd.f32 %v625, %v1491
    %1493 = vdwg.mxu0
    %v1494 = vadd.f32 %v1468, %v1492
    %v1495 = vxor.u32 %v1494, 2147483648
    %v1496 = vmul.f32 %v1495, 1.442695
    %v1497 = vpow.pop %v1496
    %v1498 = vadd.f32 %v1497, 1.0
    %v1499 = vrcp.pop %v1498
    %v1500 = vmul.f32 %v1498, %v1499
    %v1501 = vsub.f32 1.0, %v1500
    %v1502 = vmul.f32 %v1499, %v1501
    %v1503 = vadd.f32 %v1499, %v1502
    %vm1504 = vweird.f32 %v1498
    %vm1505 = vweird.f32 %v1499
    %vm1506 = vmor %vm1504, %vm1505
    %v1507 = vsel %vm1506, %v1499, %v1503
    %v1508 = vand.u32 2147483647, %v1498
    %vm1509 = vcmp.eq.f32.partialorder %v1508, 8.507059e+37
    %v1510 = vand.u32 %v1498, 2147483648
    %v1511 = vor.u32 1.1754944e-38, %v1510
    %v1512 = vsel %vm1509, %v1511, %v1507
    %v1513 = vmul.f32 1.0, %v1512
    %1515 = vrot.lane.b32.xlu0 %v1492, 64
    %v1516 = vpop.permute.xlu0 %1515
    %v1518 = vmul.f32 %v1513, %v1516
    %1520 = vrot.lane.b32.xlu0 %v1518, 64
    %v1521 = vpop.permute.xlu0 %1520
    %v1523 = vadd.f32 %v1468, %v1521
    %v1524 = vtanh.pop %v1523
    %v1525 = vsub.f32 1.0, %v1513
    %1527 = vrot.lane.b32.xlu0 %v1524, 96
    %v1528 = vpop.permute.xlu0 %1527
    %v1530 = vmul.f32 %v1525, %v1528
    %v1531 = vmul.f32 %v1513, %v1467
    %v1532 = vadd.f32 %v1530, %v1531
    %v1533 = vld [vmem:[#allocation2 + $0xe] sm:$0x1]
    %1535 = vrot.lane.b32.xlu0 %v1532, 96
    %v1536 = vpop.permute.xlu0 %1535
    %v1537 = vsel %vm626, %v1536, 0
    %1539 = vmatpush.msra.mxu0 0.0
    %1540 = vmatpush.msra.mxu0 0.0
    %1541 = vmatpush.msra.mxu0 0.0
    %1542 = vmatpush.msra.mxu0 0.0
    %1543 = vmatpush.msra.mxu0 0.0
    %1544 = vmatpush.msra.mxu0 0.0
    %1545 = vmatpush.msra.mxu0 0.0
    %1546 = vmatpush.msra.mxu0 0.0
    %1547 = vmatpush.msra.mxu0 0.0
    %1548 = vmatpush.msra.mxu0 0.0
    %1549 = vmatpush.msra.mxu0 0.0
    %1550 = vmatpush.msra.mxu0 0.0
    %1551 = vmatpush.msra.mxu0 %v624
    %1552 = vmatpush.msra.mxu0 %v623
    %1553 = vmatpush.msra.mxu0 %v622
    %1554 = vmatpush.msra.mxu0 %v621
    %1555 = vmatmul.f32.gmra.mxu0 %v1537
    %v1556 = vpop.f32.mrf.mxu0
    %v1557 = vadd.f32 %v625, %v1556
    %1558 = vdwg.mxu0
    %v1559 = vadd.f32 %v1533, %v1557
    %v1560 = vxor.u32 %v1559, 2147483648
    %v1561 = vmul.f32 %v1560, 1.442695
    %v1562 = vpow.pop %v1561
    %v1563 = vadd.f32 %v1562, 1.0
    %v1564 = vrcp.pop %v1563
    %v1565 = vmul.f32 %v1563, %v1564
    %v1566 = vsub.f32 1.0, %v1565
    %v1567 = vmul.f32 %v1564, %v1566
    %v1568 = vadd.f32 %v1564, %v1567
    %vm1569 = vweird.f32 %v1563
    %vm1570 = vweird.f32 %v1564
    %vm1571 = vmor %vm1569, %vm1570
    %v1572 = vsel %vm1571, %v1564, %v1568
    %v1573 = vand.u32 2147483647, %v1563
    %vm1574 = vcmp.eq.f32.partialorder %v1573, 8.507059e+37
    %v1575 = vand.u32 %v1563, 2147483648
    %v1576 = vor.u32 1.1754944e-38, %v1575
    %v1577 = vsel %vm1574, %v1576, %v1572
    %v1578 = vmul.f32 1.0, %v1577
    %1580 = vrot.lane.b32.xlu0 %v1557, 64
    %v1581 = vpop.permute.xlu0 %1580
    %v1583 = vmul.f32 %v1578, %v1581
    %1585 = vrot.lane.b32.xlu0 %v1583, 64
    %v1586 = vpop.permute.xlu0 %1585
    %v1588 = vadd.f32 %v1533, %v1586
    %v1589 = vtanh.pop %v1588
    %v1590 = vsub.f32 1.0, %v1578
    %1592 = vrot.lane.b32.xlu0 %v1589, 96
    %v1593 = vpop.permute.xlu0 %1592
    %v1595 = vmul.f32 %v1590, %v1593
    %v1596 = vmul.f32 %v1578, %v1532
    %v1597 = vadd.f32 %v1595, %v1596
    %v1598 = vld [vmem:[#allocation2 + $0xf] sm:$0x1]
    %1600 = vrot.lane.b32.xlu0 %v1597, 96
    %v1601 = vpop.permute.xlu0 %1600
    %v1602 = vsel %vm626, %v1601, 0
    %1604 = vmatpush.msra.mxu0 0.0
    %1605 = vmatpush.msra.mxu0 0.0
    %1606 = vmatpush.msra.mxu0 0.0
    %1607 = vmatpush.msra.mxu0 0.0
    %1608 = vmatpush.msra.mxu0 0.0
    %1609 = vmatpush.msra.mxu0 0.0
    %1610 = vmatpush.msra.mxu0 0.0
    %1611 = vmatpush.msra.mxu0 0.0
    %1612 = vmatpush.msra.mxu0 0.0
    %1613 = vmatpush.msra.mxu0 0.0
    %1614 = vmatpush.msra.mxu0 0.0
    %1615 = vmatpush.msra.mxu0 0.0
    %1616 = vmatpush.msra.mxu0 %v624
    %1617 = vmatpush.msra.mxu0 %v623
    %1618 = vmatpush.msra.mxu0 %v622
    %1619 = vmatpush.msra.mxu0 %v621
    %1620 = vmatmul.f32.gmra.mxu0 %v1602
    %v1621 = vpop.f32.mrf.mxu0
    %v1622 = vadd.f32 %v625, %v1621
    %1623 = vdwg.mxu0
    %v1624 = vadd.f32 %v1598, %v1622
    %v1625 = vxor.u32 %v1624, 2147483648
    %v1626 = vmul.f32 %v1625, 1.442695
    %v1627 = vpow.pop %v1626
    %v1628 = vadd.f32 %v1627, 1.0
    %v1629 = vrcp.pop %v1628
    %v1630 = vmul.f32 %v1628, %v1629
    %v1631 = vsub.f32 1.0, %v1630
    %v1632 = vmul.f32 %v1629, %v1631
    %v1633 = vadd.f32 %v1629, %v1632
    %vm1634 = vweird.f32 %v1628
    %vm1635 = vweird.f32 %v1629
    %vm1636 = vmor %vm1634, %vm1635
    %v1637 = vsel %vm1636, %v1629, %v1633
    %v1638 = vand.u32 2147483647, %v1628
    %vm1639 = vcmp.eq.f32.partialorder %v1638, 8.507059e+37
    %v1640 = vand.u32 %v1628, 2147483648
    %v1641 = vor.u32 1.1754944e-38, %v1640
    %v1642 = vsel %vm1639, %v1641, %v1637
    %v1643 = vmul.f32 1.0, %v1642
    %1645 = vrot.lane.b32.xlu0 %v1622, 64
    %v1646 = vpop.permute.xlu0 %1645
    %v1648 = vmul.f32 %v1643, %v1646
    %1650 = vrot.lane.b32.xlu0 %v1648, 64
    %v1651 = vpop.permute.xlu0 %1650
    %v1653 = vadd.f32 %v1598, %v1651
    %v1654 = vtanh.pop %v1653
    %v1655 = vsub.f32 1.0, %v1643
    %1657 = vrot.lane.b32.xlu0 %v1654, 96
    %v1658 = vpop.permute.xlu0 %1657
    %v1660 = vmul.f32 %v1655, %v1658
    %v1661 = vmul.f32 %v1643, %v1597
    %v1662 = vadd.f32 %v1660, %v1661
    %v1663 = vld [vmem:[#allocation2 + $0x10] sm:$0x1]
    %1665 = vrot.lane.b32.xlu0 %v1662, 96
    %v1666 = vpop.permute.xlu0 %1665
    %v1667 = vsel %vm626, %v1666, 0
    %1669 = vmatpush.msra.mxu0 0.0
    %1670 = vmatpush.msra.mxu0 0.0
    %1671 = vmatpush.msra.mxu0 0.0
    %1672 = vmatpush.msra.mxu0 0.0
    %1673 = vmatpush.msra.mxu0 0.0
    %1674 = vmatpush.msra.mxu0 0.0
    %1675 = vmatpush.msra.mxu0 0.0
    %1676 = vmatpush.msra.mxu0 0.0
    %1677 = vmatpush.msra.mxu0 0.0
    %1678 = vmatpush.msra.mxu0 0.0
    %1679 = vmatpush.msra.mxu0 0.0
    %1680 = vmatpush.msra.mxu0 0.0
    %1681 = vmatpush.msra.mxu0 %v624
    %1682 = vmatpush.msra.mxu0 %v623
    %1683 = vmatpush.msra.mxu0 %v622
    %1684 = vmatpush.msra.mxu0 %v621
    %1685 = vmatmul.f32.gmra.mxu0 %v1667
    %v1686 = vpop.f32.mrf.mxu0
    %v1687 = vadd.f32 %v625, %v1686
    %1688 = vdwg.mxu0
    %v1689 = vadd.f32 %v1663, %v1687
    %v1690 = vxor.u32 %v1689, 2147483648
    %v1691 = vmul.f32 %v1690, 1.442695
    %v1692 = vpow.pop %v1691
    %v1693 = vadd.f32 %v1692, 1.0
    %v1694 = vrcp.pop %v1693
    %v1695 = vmul.f32 %v1693, %v1694
    %v1696 = vsub.f32 1.0, %v1695
    %v1697 = vmul.f32 %v1694, %v1696
    %v1698 = vadd.f32 %v1694, %v1697
    %vm1699 = vweird.f32 %v1693
    %vm1700 = vweird.f32 %v1694
    %vm1701 = vmor %vm1699, %vm1700
    %v1702 = vsel %vm1701, %v1694, %v1698
    %v1703 = vand.u32 2147483647, %v1693
    %vm1704 = vcmp.eq.f32.partialorder %v1703, 8.507059e+37
    %v1705 = vand.u32 %v1693, 2147483648
    %v1706 = vor.u32 1.1754944e-38, %v1705
    %v1707 = vsel %vm1704, %v1706, %v1702
    %v1708 = vmul.f32 1.0, %v1707
    %1710 = vrot.lane.b32.xlu0 %v1687, 64
    %v1711 = vpop.permute.xlu0 %1710
    %v1713 = vmul.f32 %v1708, %v1711
    %1715 = vrot.lane.b32.xlu0 %v1713, 64
    %v1716 = vpop.permute.xlu0 %1715
    %v1718 = vadd.f32 %v1663, %v1716
    %v1719 = vtanh.pop %v1718
    %v1720 = vsub.f32 1.0, %v1708
    %1722 = vrot.lane.b32.xlu0 %v1719, 96
    %v1723 = vpop.permute.xlu0 %1722
    %v1725 = vmul.f32 %v1720, %v1723
    %v1726 = vmul.f32 %v1708, %v1662
    %v1727 = vadd.f32 %v1725, %v1726
    %v1728 = vld [vmem:[#allocation2 + $0x11] sm:$0x1]
    %1730 = vrot.lane.b32.xlu0 %v1727, 96
    %v1731 = vpop.permute.xlu0 %1730
    %v1732 = vsel %vm626, %v1731, 0
    %1734 = vmatpush.msra.mxu0 0.0
    %1735 = vmatpush.msra.mxu0 0.0
    %1736 = vmatpush.msra.mxu0 0.0
    %1737 = vmatpush.msra.mxu0 0.0
    %1738 = vmatpush.msra.mxu0 0.0
    %1739 = vmatpush.msra.mxu0 0.0
    %1740 = vmatpush.msra.mxu0 0.0
    %1741 = vmatpush.msra.mxu0 0.0
    %1742 = vmatpush.msra.mxu0 0.0
    %1743 = vmatpush.msra.mxu0 0.0
    %1744 = vmatpush.msra.mxu0 0.0
    %1745 = vmatpush.msra.mxu0 0.0
    %1746 = vmatpush.msra.mxu0 %v624
    %1747 = vmatpush.msra.mxu0 %v623
    %1748 = vmatpush.msra.mxu0 %v622
    %1749 = vmatpush.msra.mxu0 %v621
    %1750 = vmatmul.f32.gmra.mxu0 %v1732
    %v1751 = vpop.f32.mrf.mxu0
    %v1752 = vadd.f32 %v625, %v1751
    %1753 = vdwg.mxu0
    %v1754 = vadd.f32 %v1728, %v1752
    %v1755 = vxor.u32 %v1754, 2147483648
    %v1756 = vmul.f32 %v1755, 1.442695
    %v1757 = vpow.pop %v1756
    %v1758 = vadd.f32 %v1757, 1.0
    %v1759 = vrcp.pop %v1758
    %v1760 = vmul.f32 %v1758, %v1759
    %v1761 = vsub.f32 1.0, %v1760
    %v1762 = vmul.f32 %v1759, %v1761
    %v1763 = vadd.f32 %v1759, %v1762
    %vm1764 = vweird.f32 %v1758
    %vm1765 = vweird.f32 %v1759
    %vm1766 = vmor %vm1764, %vm1765
    %v1767 = vsel %vm1766, %v1759, %v1763
    %v1768 = vand.u32 2147483647, %v1758
    %vm1769 = vcmp.eq.f32.partialorder %v1768, 8.507059e+37
    %v1770 = vand.u32 %v1758, 2147483648
    %v1771 = vor.u32 1.1754944e-38, %v1770
    %v1772 = vsel %vm1769, %v1771, %v1767
    %v1773 = vmul.f32 1.0, %v1772
    %1775 = vrot.lane.b32.xlu0 %v1752, 64
    %v1776 = vpop.permute.xlu0 %1775
    %v1778 = vmul.f32 %v1773, %v1776
    %1780 = vrot.lane.b32.xlu0 %v1778, 64
    %v1781 = vpop.permute.xlu0 %1780
    %v1783 = vadd.f32 %v1728, %v1781
    %v1784 = vtanh.pop %v1783
    %v1785 = vsub.f32 1.0, %v1773
    %1787 = vrot.lane.b32.xlu0 %v1784, 96
    %v1788 = vpop.permute.xlu0 %1787
    %v1790 = vmul.f32 %v1785, %v1788
    %v1791 = vmul.f32 %v1773, %v1727
    %v1792 = vadd.f32 %v1790, %v1791
    %v1793 = vld [vmem:[#allocation2 + $0x12] sm:$0x1]
    %1795 = vrot.lane.b32.xlu0 %v1792, 96
    %v1796 = vpop.permute.xlu0 %1795
    %v1797 = vsel %vm626, %v1796, 0
    %1799 = vmatpush.msra.mxu0 0.0
    %1800 = vmatpush.msra.mxu0 0.0
    %1801 = vmatpush.msra.mxu0 0.0
    %1802 = vmatpush.msra.mxu0 0.0
    %1803 = vmatpush.msra.mxu0 0.0
    %1804 = vmatpush.msra.mxu0 0.0
    %1805 = vmatpush.msra.mxu0 0.0
    %1806 = vmatpush.msra.mxu0 0.0
    %1807 = vmatpush.msra.mxu0 0.0
    %1808 = vmatpush.msra.mxu0 0.0
    %1809 = vmatpush.msra.mxu0 0.0
    %1810 = vmatpush.msra.mxu0 0.0
    %1811 = vmatpush.msra.mxu0 %v624
    %1812 = vmatpush.msra.mxu0 %v623
    %1813 = vmatpush.msra.mxu0 %v622
    %1814 = vmatpush.msra.mxu0 %v621
    %1815 = vmatmul.f32.gmra.mxu0 %v1797
    %v1816 = vpop.f32.mrf.mxu0
    %v1817 = vadd.f32 %v625, %v1816
    %1818 = vdwg.mxu0
    %v1819 = vadd.f32 %v1793, %v1817
    %v1820 = vxor.u32 %v1819, 2147483648
    %v1821 = vmul.f32 %v1820, 1.442695
    %v1822 = vpow.pop %v1821
    %v1823 = vadd.f32 %v1822, 1.0
    %v1824 = vrcp.pop %v1823
    %v1825 = vmul.f32 %v1823, %v1824
    %v1826 = vsub.f32 1.0, %v1825
    %v1827 = vmul.f32 %v1824, %v1826
    %v1828 = vadd.f32 %v1824, %v1827
    %vm1829 = vweird.f32 %v1823
    %vm1830 = vweird.f32 %v1824
    %vm1831 = vmor %vm1829, %vm1830
    %v1832 = vsel %vm1831, %v1824, %v1828
    %v1833 = vand.u32 2147483647, %v1823
    %vm1834 = vcmp.eq.f32.partialorder %v1833, 8.507059e+37
    %v1835 = vand.u32 %v1823, 2147483648
    %v1836 = vor.u32 1.1754944e-38, %v1835
    %v1837 = vsel %vm1834, %v1836, %v1832
    %v1838 = vmul.f32 1.0, %v1837
    %1840 = vrot.lane.b32.xlu0 %v1817, 64
    %v1841 = vpop.permute.xlu0 %1840
    %v1843 = vmul.f32 %v1838, %v1841
    %1845 = vrot.lane.b32.xlu0 %v1843, 64
    %v1846 = vpop.permute.xlu0 %1845
    %v1848 = vadd.f32 %v1793, %v1846
    %v1849 = vtanh.pop %v1848
    %v1850 = vsub.f32 1.0, %v1838
    %1852 = vrot.lane.b32.xlu0 %v1849, 96
    %v1853 = vpop.permute.xlu0 %1852
    %v1855 = vmul.f32 %v1850, %v1853
    %v1856 = vmul.f32 %v1838, %v1792
    %v1857 = vadd.f32 %v1855, %v1856
    %v1858 = vld [vmem:[#allocation2 + $0x13] sm:$0x1]
    %1860 = vrot.lane.b32.xlu0 %v1857, 96
    %v1861 = vpop.permute.xlu0 %1860
    %v1862 = vsel %vm626, %v1861, 0
    %1864 = vmatpush.msra.mxu0 0.0
    %1865 = vmatpush.msra.mxu0 0.0
    %1866 = vmatpush.msra.mxu0 0.0
    %1867 = vmatpush.msra.mxu0 0.0
    %1868 = vmatpush.msra.mxu0 0.0
    %1869 = vmatpush.msra.mxu0 0.0
    %1870 = vmatpush.msra.mxu0 0.0
    %1871 = vmatpush.msra.mxu0 0.0
    %1872 = vmatpush.msra.mxu0 0.0
    %1873 = vmatpush.msra.mxu0 0.0
    %1874 = vmatpush.msra.mxu0 0.0
    %1875 = vmatpush.msra.mxu0 0.0
    %1876 = vmatpush.msra.mxu0 %v624
    %1877 = vmatpush.msra.mxu0 %v623
    %1878 = vmatpush.msra.mxu0 %v622
    %1879 = vmatpush.msra.mxu0 %v621
    %1880 = vmatmul.f32.gmra.mxu0 %v1862
    %v1881 = vpop.f32.mrf.mxu0
    %v1882 = vadd.f32 %v625, %v1881
    %1883 = vdwg.mxu0
    %v1884 = vadd.f32 %v1858, %v1882
    %v1885 = vxor.u32 %v1884, 2147483648
    %v1886 = vmul.f32 %v1885, 1.442695
    %v1887 = vpow.pop %v1886
    %v1888 = vadd.f32 %v1887, 1.0
    %v1889 = vrcp.pop %v1888
    %v1890 = vmul.f32 %v1888, %v1889
    %v1891 = vsub.f32 1.0, %v1890
    %v1892 = vmul.f32 %v1889, %v1891
    %v1893 = vadd.f32 %v1889, %v1892
    %vm1894 = vweird.f32 %v1888
    %vm1895 = vweird.f32 %v1889
    %vm1896 = vmor %vm1894, %vm1895
    %v1897 = vsel %vm1896, %v1889, %v1893
    %v1898 = vand.u32 2147483647, %v1888
    %vm1899 = vcmp.eq.f32.partialorder %v1898, 8.507059e+37
    %v1900 = vand.u32 %v1888, 2147483648
    %v1901 = vor.u32 1.1754944e-38, %v1900
    %v1902 = vsel %vm1899, %v1901, %v1897
    %v1903 = vmul.f32 1.0, %v1902
    %1905 = vrot.lane.b32.xlu0 %v1882, 64
    %v1906 = vpop.permute.xlu0 %1905
    %v1908 = vmul.f32 %v1903, %v1906
    %1910 = vrot.lane.b32.xlu0 %v1908, 64
    %v1911 = vpop.permute.xlu0 %1910
    %v1913 = vadd.f32 %v1858, %v1911
    %v1914 = vtanh.pop %v1913
    %v1915 = vsub.f32 1.0, %v1903
    %1917 = vrot.lane.b32.xlu0 %v1914, 96
    %v1918 = vpop.permute.xlu0 %1917
    %v1920 = vmul.f32 %v1915, %v1918
    %v1921 = vmul.f32 %v1903, %v1857
    %v1922 = vadd.f32 %v1920, %v1921
    %v1923 = vld [vmem:[#allocation2 + $0x14] sm:$0x1]
    %1925 = vrot.lane.b32.xlu0 %v1922, 96
    %v1926 = vpop.permute.xlu0 %1925
    %v1927 = vsel %vm626, %v1926, 0
    %1929 = vmatpush.msra.mxu0 0.0
    %1930 = vmatpush.msra.mxu0 0.0
    %1931 = vmatpush.msra.mxu0 0.0
    %1932 = vmatpush.msra.mxu0 0.0
    %1933 = vmatpush.msra.mxu0 0.0
    %1934 = vmatpush.msra.mxu0 0.0
    %1935 = vmatpush.msra.mxu0 0.0
    %1936 = vmatpush.msra.mxu0 0.0
    %1937 = vmatpush.msra.mxu0 0.0
    %1938 = vmatpush.msra.mxu0 0.0
    %1939 = vmatpush.msra.mxu0 0.0
    %1940 = vmatpush.msra.mxu0 0.0
    %1941 = vmatpush.msra.mxu0 %v624
    %1942 = vmatpush.msra.mxu0 %v623
    %1943 = vmatpush.msra.mxu0 %v622
    %1944 = vmatpush.msra.mxu0 %v621
    %1945 = vmatmul.f32.gmra.mxu0 %v1927
    %v1946 = vpop.f32.mrf.mxu0
    %v1947 = vadd.f32 %v625, %v1946
    %1948 = vdwg.mxu0
    %v1949 = vadd.f32 %v1923, %v1947
    %v1950 = vxor.u32 %v1949, 2147483648
    %v1951 = vmul.f32 %v1950, 1.442695
    %v1952 = vpow.pop %v1951
    %v1953 = vadd.f32 %v1952, 1.0
    %v1954 = vrcp.pop %v1953
    %v1955 = vmul.f32 %v1953, %v1954
    %v1956 = vsub.f32 1.0, %v1955
    %v1957 = vmul.f32 %v1954, %v1956
    %v1958 = vadd.f32 %v1954, %v1957
    %vm1959 = vweird.f32 %v1953
    %vm1960 = vweird.f32 %v1954
    %vm1961 = vmor %vm1959, %vm1960
    %v1962 = vsel %vm1961, %v1954, %v1958
    %v1963 = vand.u32 2147483647, %v1953
    %vm1964 = vcmp.eq.f32.partialorder %v1963, 8.507059e+37
    %v1965 = vand.u32 %v1953, 2147483648
    %v1966 = vor.u32 1.1754944e-38, %v1965
    %v1967 = vsel %vm1964, %v1966, %v1962
    %v1968 = vmul.f32 1.0, %v1967
    %1970 = vrot.lane.b32.xlu0 %v1947, 64
    %v1971 = vpop.permute.xlu0 %1970
    %v1973 = vmul.f32 %v1968, %v1971
    %1975 = vrot.lane.b32.xlu0 %v1973, 64
    %v1976 = vpop.permute.xlu0 %1975
    %v1978 = vadd.f32 %v1923, %v1976
    %v1979 = vtanh.pop %v1978
    %v1980 = vsub.f32 1.0, %v1968
    %1982 = vrot.lane.b32.xlu0 %v1979, 96
    %v1983 = vpop.permute.xlu0 %1982
    %v1985 = vmul.f32 %v1980, %v1983
    %v1986 = vmul.f32 %v1968, %v1922
    %v1987 = vadd.f32 %v1985, %v1986
    %v1988 = vld [vmem:[#allocation2 + $0x15] sm:$0x1]
    %1990 = vrot.lane.b32.xlu0 %v1987, 96
    %v1991 = vpop.permute.xlu0 %1990
    %v1992 = vsel %vm626, %v1991, 0
    %1994 = vmatpush.msra.mxu0 0.0
    %1995 = vmatpush.msra.mxu0 0.0
    %1996 = vmatpush.msra.mxu0 0.0
    %1997 = vmatpush.msra.mxu0 0.0
    %1998 = vmatpush.msra.mxu0 0.0
    %1999 = vmatpush.msra.mxu0 0.0
    %2000 = vmatpush.msra.mxu0 0.0
    %2001 = vmatpush.msra.mxu0 0.0
    %2002 = vmatpush.msra.mxu0 0.0
    %2003 = vmatpush.msra.mxu0 0.0
    %2004 = vmatpush.msra.mxu0 0.0
    %2005 = vmatpush.msra.mxu0 0.0
    %2006 = vmatpush.msra.mxu0 %v624
    %2007 = vmatpush.msra.mxu0 %v623
    %2008 = vmatpush.msra.mxu0 %v622
    %2009 = vmatpush.msra.mxu0 %v621
    %2010 = vmatmul.f32.gmra.mxu0 %v1992
    %v2011 = vpop.f32.mrf.mxu0
    %v2012 = vadd.f32 %v625, %v2011
    %2013 = vdwg.mxu0
    %v2014 = vadd.f32 %v1988, %v2012
    %v2015 = vxor.u32 %v2014, 2147483648
    %v2016 = vmul.f32 %v2015, 1.442695
    %v2017 = vpow.pop %v2016
    %v2018 = vadd.f32 %v2017, 1.0
    %v2019 = vrcp.pop %v2018
    %v2020 = vmul.f32 %v2018, %v2019
    %v2021 = vsub.f32 1.0, %v2020
    %v2022 = vmul.f32 %v2019, %v2021
    %v2023 = vadd.f32 %v2019, %v2022
    %vm2024 = vweird.f32 %v2018
    %vm2025 = vweird.f32 %v2019
    %vm2026 = vmor %vm2024, %vm2025
    %v2027 = vsel %vm2026, %v2019, %v2023
    %v2028 = vand.u32 2147483647, %v2018
    %vm2029 = vcmp.eq.f32.partialorder %v2028, 8.507059e+37
    %v2030 = vand.u32 %v2018, 2147483648
    %v2031 = vor.u32 1.1754944e-38, %v2030
    %v2032 = vsel %vm2029, %v2031, %v2027
    %v2033 = vmul.f32 1.0, %v2032
    %2035 = vrot.lane.b32.xlu0 %v2012, 64
    %v2036 = vpop.permute.xlu0 %2035
    %v2038 = vmul.f32 %v2033, %v2036
    %2040 = vrot.lane.b32.xlu0 %v2038, 64
    %v2041 = vpop.permute.xlu0 %2040
    %v2043 = vadd.f32 %v1988, %v2041
    %v2044 = vtanh.pop %v2043
    %v2045 = vsub.f32 1.0, %v2033
    %2047 = vrot.lane.b32.xlu0 %v2044, 96
    %v2048 = vpop.permute.xlu0 %2047
    %v2050 = vmul.f32 %v2045, %v2048
    %v2051 = vmul.f32 %v2033, %v1987
    %v2052 = vadd.f32 %v2050, %v2051
    %v2053 = vld [vmem:[%s12] sm:$0xff]
    %v2054 = vld [vmem:[%s12 + $0x8] sm:$0xff]
    %v2055 = vld [vmem:[%s12 + $0x10] sm:$0xff]
    %v2056 = vld [vmem:[%s12 + $0x18] sm:$0xff]
    %v2057 = vld [vmem:[%s14] sm:$0x1]
    %2059 = vrot.lane.b32.xlu0 %v2052, 96
    %v2060 = vpop.permute.xlu0 %2059
    %v2061 = vsel %vm626, %v2060, 0
    %2063 = vmatpush.msra.mxu0 0.0
    %2064 = vmatpush.msra.mxu0 0.0
    %2065 = vmatpush.msra.mxu0 0.0
    %2066 = vmatpush.msra.mxu0 0.0
    %2067 = vmatpush.msra.mxu0 0.0
    %2068 = vmatpush.msra.mxu0 0.0
    %2069 = vmatpush.msra.mxu0 0.0
    %2070 = vmatpush.msra.mxu0 0.0
    %2071 = vmatpush.msra.mxu0 0.0
    %2072 = vmatpush.msra.mxu0 0.0
    %2073 = vmatpush.msra.mxu0 0.0
    %2074 = vmatpush.msra.mxu0 0.0
    %2075 = vmatpush.msra.mxu0 %v2056
    %2076 = vmatpush.msra.mxu0 %v2055
    %2077 = vmatpush.msra.mxu0 %v2054
    %2078 = vmatpush.msra.mxu0 %v2053
    %2079 = vmatmul.f32.gmra.mxu0 %v2061
    %v2080 = vpop.f32.mrf.mxu0
    %v2081 = vadd.f32 %v2057, %v2080
    %2082 = vdwg.mxu0
    %v2083 = vld [vmem:[%s13] sm:$0xff]
    %v2084 = vld [vmem:[%s13 + $0x8] sm:$0xff]
    %v2085 = vld [vmem:[%s13 + $0x10] sm:$0xff]
    %v2086 = vld [vmem:[%s13 + $0x18] sm:$0xff]
    %v2087 = vld [vmem:[%s13 + $0x20] sm:$0xff]
    %v2088 = vld [vmem:[%s13 + $0x28] sm:$0xff]
    %v2089 = vld [vmem:[%s13 + $0x30] sm:$0x3]
    %2091 = vrot.lane.b32.xlu0 %v617, 78
    %v2092 = vpop.permute.xlu0 %2091
    %v2093 = vsel %vm408, %v2092, 0
    %v2096 = vsel %vm412, %v2089, 0
    %2098 = vmatpush.msra.mxu0 0.0
    %2099 = vmatpush.msra.mxu0 0.0
    %2100 = vmatpush.msra.mxu0 0.0
    %2101 = vmatpush.msra.mxu0 0.0
    %2102 = vmatpush.msra.mxu0 0.0
    %2103 = vmatpush.msra.mxu0 0.0
    %2104 = vmatpush.msra.mxu0 0.0
    %2105 = vmatpush.msra.mxu0 0.0
    %2106 = vmatpush.msra.mxu0 0.0
    %2107 = vmatpush.msra.mxu0 %v2096
    %2108 = vmatpush.msra.mxu0 %v2088
    %2109 = vmatpush.msra.mxu0 %v2087
    %2110 = vmatpush.msra.mxu0 %v2086
    %2111 = vmatpush.msra.mxu0 %v2085
    %2112 = vmatpush.msra.mxu0 %v2084
    %2113 = vmatpush.msra.mxu0 %v2083
    %2114 = vmatmul.f32.gmra.mxu0 %v2093
    %v2115 = vpop.f32.mrf.mxu0
    %v2116 = vadd.f32 0.0, %v2115
    %2117 = vdwg.mxu0
    %v2118 = vadd.f32 %v2081, %v2116
    %s2119 = scalar_lea.vmem %s13, 56
    %v2120 = vld [vmem:[%s2119] sm:$0xff]
    %v2121 = vld [vmem:[%s2119 + $0x8] sm:$0xff]
    %v2122 = vld [vmem:[%s2119 + $0x10] sm:$0xff]
    %v2123 = vld [vmem:[%s2119 + $0x18] sm:$0xff]
    %v2124 = vld [vmem:[%s2119 + $0x20] sm:$0xff]
    %v2125 = vld [vmem:[%s2119 + $0x28] sm:$0xff]
    %v2126 = vld [vmem:[%s2119 + $0x30] sm:$0x3]
    %v2127 = vrot.slane %v617, 1
    %2128 = vrot.lane.b32.xlu0 %v2127, 78
    %v2129 = vpop.permute.xlu0 %2128
    %v2130 = vsel %vm408, %v2129, 0
    %v2133 = vsel %vm412, %v2126, 0
    %2135 = vmatpush.msra.mxu0 0.0
    %2136 = vmatpush.msra.mxu0 0.0
    %2137 = vmatpush.msra.mxu0 0.0
    %2138 = vmatpush.msra.mxu0 0.0
    %2139 = vmatpush.msra.mxu0 0.0
    %2140 = vmatpush.msra.mxu0 0.0
    %2141 = vmatpush.msra.mxu0 0.0
    %2142 = vmatpush.msra.mxu0 0.0
    %2143 = vmatpush.msra.mxu0 0.0
    %2144 = vmatpush.msra.mxu0 %v2133
    %2145 = vmatpush.msra.mxu0 %v2125
    %2146 = vmatpush.msra.mxu0 %v2124
    %2147 = vmatpush.msra.mxu0 %v2123
    %2148 = vmatpush.msra.mxu0 %v2122
    %2149 = vmatpush.msra.mxu0 %v2121
    %2150 = vmatpush.msra.mxu0 %v2120
    %2151 = vmatmul.f32.gmra.mxu0 %v2130
    %v2152 = vpop.f32.mrf.mxu0
    %v2153 = vadd.f32 0.0, %v2152
    %2154 = vdwg.mxu0
    %v2155 = vadd.f32 %v2118, %v2153
    %s2156 = scalar_lea.vmem %s13, 112
    %v2157 = vld [vmem:[%s2156] sm:$0xff]
    %v2158 = vld [vmem:[%s2156 + $0x8] sm:$0xff]
    %v2159 = vld [vmem:[%s2156 + $0x10] sm:$0xff]
    %v2160 = vld [vmem:[%s2156 + $0x18] sm:$0xff]
    %v2161 = vld [vmem:[%s2156 + $0x20] sm:$0xff]
    %v2162 = vld [vmem:[%s2156 + $0x28] sm:$0xff]
    %v2163 = vld [vmem:[%s2156 + $0x30] sm:$0x3]
    %v2164 = vrot.slane %v617, 2
    %2165 = vrot.lane.b32.xlu0 %v2164, 78
    %v2166 = vpop.permute.xlu0 %2165
    %v2167 = vsel %vm408, %v2166, 0
    %v2170 = vsel %vm412, %v2163, 0
    %2172 = vmatpush.msra.mxu0 0.0
    %2173 = vmatpush.msra.mxu0 0.0
    %2174 = vmatpush.msra.mxu0 0.0
    %2175 = vmatpush.msra.mxu0 0.0
    %2176 = vmatpush.msra.mxu0 0.0
    %2177 = vmatpush.msra.mxu0 0.0
    %2178 = vmatpush.msra.mxu0 0.0
    %2179 = vmatpush.msra.mxu0 0.0
    %2180 = vmatpush.msra.mxu0 0.0
    %2181 = vmatpush.msra.mxu0 %v2170
    %2182 = vmatpush.msra.mxu0 %v2162
    %2183 = vmatpush.msra.mxu0 %v2161
    %2184 = vmatpush.msra.mxu0 %v2160
    %2185 = vmatpush.msra.mxu0 %v2159
    %2186 = vmatpush.msra.mxu0 %v2158
    %2187 = vmatpush.msra.mxu0 %v2157
    %2188 = vmatmul.f32.gmra.mxu0 %v2167
    %v2189 = vpop.f32.mrf.mxu0
    %v2190 = vadd.f32 0.0, %v2189
    %2191 = vdwg.mxu0
    %v2192 = vadd.f32 %v2155, %v2190
    %s2193 = scalar_lea.vmem %s13, 168
    %v2194 = vld [vmem:[%s2193] sm:$0xff]
    %v2195 = vld [vmem:[%s2193 + $0x8] sm:$0xff]
    %v2196 = vld [vmem:[%s2193 + $0x10] sm:$0xff]
    %v2197 = vld [vmem:[%s2193 + $0x18] sm:$0xff]
    %v2198 = vld [vmem:[%s2193 + $0x20] sm:$0xff]
    %v2199 = vld [vmem:[%s2193 + $0x28] sm:$0xff]
    %v2200 = vld [vmem:[%s2193 + $0x30] sm:$0x3]
    %v2201 = vrot.slane %v617, 3
    %2202 = vrot.lane.b32.xlu0 %v2201, 78
    %v2203 = vpop.permute.xlu0 %2202
    %v2204 = vsel %vm408, %v2203, 0
    %v2207 = vsel %vm412, %v2200, 0
    %2209 = vmatpush.msra.mxu0 0.0
    %2210 = vmatpush.msra.mxu0 0.0
    %2211 = vmatpush.msra.mxu0 0.0
    %2212 = vmatpush.msra.mxu0 0.0
    %2213 = vmatpush.msra.mxu0 0.0
    %2214 = vmatpush.msra.mxu0 0.0
    %2215 = vmatpush.msra.mxu0 0.0
    %2216 = vmatpush.msra.mxu0 0.0
    %2217 = vmatpush.msra.mxu0 0.0
    %2218 = vmatpush.msra.mxu0 %v2207
    %2219 = vmatpush.msra.mxu0 %v2199
    %2220 = vmatpush.msra.mxu0 %v2198
    %2221 = vmatpush.msra.mxu0 %v2197
    %2222 = vmatpush.msra.mxu0 %v2196
    %2223 = vmatpush.msra.mxu0 %v2195
    %2224 = vmatpush.msra.mxu0 %v2194
    %2225 = vmatmul.f32.gmra.mxu0 %v2204
    %v2226 = vpop.f32.mrf.mxu0
    %v2227 = vadd.f32 0.0, %v2226
    %2228 = vdwg.mxu0
    %v2229 = vadd.f32 %v2192, %v2227
    %s2230 = scalar_lea.vmem %s13, 224
    %v2231 = vld [vmem:[%s2230] sm:$0xff]
    %v2232 = vld [vmem:[%s2230 + $0x8] sm:$0xff]
    %v2233 = vld [vmem:[%s2230 + $0x10] sm:$0xff]
    %v2234 = vld [vmem:[%s2230 + $0x18] sm:$0xff]
    %v2235 = vld [vmem:[%s2230 + $0x20] sm:$0xff]
    %v2236 = vld [vmem:[%s2230 + $0x28] sm:$0xff]
    %v2237 = vld [vmem:[%s2230 + $0x30] sm:$0x3]
    %v2238 = vrot.slane %v617, 4
    %2239 = vrot.lane.b32.xlu0 %v2238, 78
    %v2240 = vpop.permute.xlu0 %2239
    %v2241 = vsel %vm408, %v2240, 0
    %v2244 = vsel %vm412, %v2237, 0
    %2246 = vmatpush.msra.mxu0 0.0
    %2247 = vmatpush.msra.mxu0 0.0
    %2248 = vmatpush.msra.mxu0 0.0
    %2249 = vmatpush.msra.mxu0 0.0
    %2250 = vmatpush.msra.mxu0 0.0
    %2251 = vmatpush.msra.mxu0 0.0
    %2252 = vmatpush.msra.mxu0 0.0
    %2253 = vmatpush.msra.mxu0 0.0
    %2254 = vmatpush.msra.mxu0 0.0
    %2255 = vmatpush.msra.mxu0 %v2244
    %2256 = vmatpush.msra.mxu0 %v2236
    %2257 = vmatpush.msra.mxu0 %v2235
    %2258 = vmatpush.msra.mxu0 %v2234
    %2259 = vmatpush.msra.mxu0 %v2233
    %2260 = vmatpush.msra.mxu0 %v2232
    %2261 = vmatpush.msra.mxu0 %v2231
    %2262 = vmatmul.f32.gmra.mxu0 %v2241
    %v2263 = vpop.f32.mrf.mxu0
    %v2264 = vadd.f32 0.0, %v2263
    %2265 = vdwg.mxu0
    %v2266 = vadd.f32 %v2229, %v2264
    %s2267 = scalar_lea.vmem %s13, 280
    %v2268 = vld [vmem:[%s2267] sm:$0xff]
    %v2269 = vld [vmem:[%s2267 + $0x8] sm:$0xff]
    %v2270 = vld [vmem:[%s2267 + $0x10] sm:$0xff]
    %v2271 = vld [vmem:[%s2267 + $0x18] sm:$0xff]
    %v2272 = vld [vmem:[%s2267 + $0x20] sm:$0xff]
    %v2273 = vld [vmem:[%s2267 + $0x28] sm:$0xff]
    %v2274 = vld [vmem:[%s2267 + $0x30] sm:$0x3]
    %v2275 = vrot.slane %v617, 5
    %2276 = vrot.lane.b32.xlu0 %v2275, 78
    %v2277 = vpop.permute.xlu0 %2276
    %v2278 = vsel %vm408, %v2277, 0
    %v2281 = vsel %vm412, %v2274, 0
    %2283 = vmatpush.msra.mxu0 0.0
    %2284 = vmatpush.msra.mxu0 0.0
    %2285 = vmatpush.msra.mxu0 0.0
    %2286 = vmatpush.msra.mxu0 0.0
    %2287 = vmatpush.msra.mxu0 0.0
    %2288 = vmatpush.msra.mxu0 0.0
    %2289 = vmatpush.msra.mxu0 0.0
    %2290 = vmatpush.msra.mxu0 0.0
    %2291 = vmatpush.msra.mxu0 0.0
    %2292 = vmatpush.msra.mxu0 %v2281
    %2293 = vmatpush.msra.mxu0 %v2273
    %2294 = vmatpush.msra.mxu0 %v2272
    %2295 = vmatpush.msra.mxu0 %v2271
    %2296 = vmatpush.msra.mxu0 %v2270
    %2297 = vmatpush.msra.mxu0 %v2269
    %2298 = vmatpush.msra.mxu0 %v2268
    %2299 = vmatmul.f32.gmra.mxu0 %v2278
    %v2300 = vpop.f32.mrf.mxu0
    %v2301 = vadd.f32 0.0, %v2300
    %2302 = vdwg.mxu0
    %v2303 = vadd.f32 %v2266, %v2301
    %s2304 = scalar_lea.vmem %s13, 336
    %v2305 = vld [vmem:[%s2304] sm:$0xff]
    %v2306 = vld [vmem:[%s2304 + $0x8] sm:$0xff]
    %v2307 = vld [vmem:[%s2304 + $0x10] sm:$0xff]
    %v2308 = vld [vmem:[%s2304 + $0x18] sm:$0xff]
    %v2309 = vld [vmem:[%s2304 + $0x20] sm:$0xff]
    %v2310 = vld [vmem:[%s2304 + $0x28] sm:$0xff]
    %v2311 = vld [vmem:[%s2304 + $0x30] sm:$0x3]
    %v2312 = vrot.slane %v617, 6
    %2313 = vrot.lane.b32.xlu0 %v2312, 78
    %v2314 = vpop.permute.xlu0 %2313
    %v2315 = vsel %vm408, %v2314, 0
    %v2318 = vsel %vm412, %v2311, 0
    %2320 = vmatpush.msra.mxu0 0.0
    %2321 = vmatpush.msra.mxu0 0.0
    %2322 = vmatpush.msra.mxu0 0.0
    %2323 = vmatpush.msra.mxu0 0.0
    %2324 = vmatpush.msra.mxu0 0.0
    %2325 = vmatpush.msra.mxu0 0.0
    %2326 = vmatpush.msra.mxu0 0.0
    %2327 = vmatpush.msra.mxu0 0.0
    %2328 = vmatpush.msra.mxu0 0.0
    %2329 = vmatpush.msra.mxu0 %v2318
    %2330 = vmatpush.msra.mxu0 %v2310
    %2331 = vmatpush.msra.mxu0 %v2309
    %2332 = vmatpush.msra.mxu0 %v2308
    %2333 = vmatpush.msra.mxu0 %v2307
    %2334 = vmatpush.msra.mxu0 %v2306
    %2335 = vmatpush.msra.mxu0 %v2305
    %2336 = vmatmul.f32.gmra.mxu0 %v2315
    %v2337 = vpop.f32.mrf.mxu0
    %v2338 = vadd.f32 0.0, %v2337
    %2339 = vdwg.mxu0
    %v2340 = vadd.f32 %v2303, %v2338
    %s2341 = scalar_lea.vmem %s13, 392
    %v2342 = vld [vmem:[%s2341] sm:$0xff]
    %v2343 = vld [vmem:[%s2341 + $0x8] sm:$0xff]
    %v2344 = vld [vmem:[%s2341 + $0x10] sm:$0xff]
    %v2345 = vld [vmem:[%s2341 + $0x18] sm:$0xff]
    %v2346 = vld [vmem:[%s2341 + $0x20] sm:$0xff]
    %v2347 = vld [vmem:[%s2341 + $0x28] sm:$0xff]
    %v2348 = vld [vmem:[%s2341 + $0x30] sm:$0x3]
    %v2349 = vrot.slane %v617, 7
    %2350 = vrot.lane.b32.xlu0 %v2349, 78
    %v2351 = vpop.permute.xlu0 %2350
    %v2352 = vsel %vm408, %v2351, 0
    %v2355 = vsel %vm412, %v2348, 0
    %2357 = vmatpush.msra.mxu0 0.0
    %2358 = vmatpush.msra.mxu0 0.0
    %2359 = vmatpush.msra.mxu0 0.0
    %2360 = vmatpush.msra.mxu0 0.0
    %2361 = vmatpush.msra.mxu0 0.0
    %2362 = vmatpush.msra.mxu0 0.0
    %2363 = vmatpush.msra.mxu0 0.0
    %2364 = vmatpush.msra.mxu0 0.0
    %2365 = vmatpush.msra.mxu0 0.0
    %2366 = vmatpush.msra.mxu0 %v2355
    %2367 = vmatpush.msra.mxu0 %v2347
    %2368 = vmatpush.msra.mxu0 %v2346
    %2369 = vmatpush.msra.mxu0 %v2345
    %2370 = vmatpush.msra.mxu0 %v2344
    %2371 = vmatpush.msra.mxu0 %v2343
    %2372 = vmatpush.msra.mxu0 %v2342
    %2373 = vmatmul.f32.gmra.mxu0 %v2352
    %v2374 = vpop.f32.mrf.mxu0
    %v2375 = vadd.f32 0.0, %v2374
    %2376 = vdwg.mxu0
    %v2377 = vadd.f32 %v2340, %v2375
    %s2378 = scalar_lea.vmem %s13, 448
    %v2379 = vld [vmem:[%s2378] sm:$0xff]
    %v2380 = vld [vmem:[%s2378 + $0x8] sm:$0xff]
    %v2381 = vld [vmem:[%s2378 + $0x10] sm:$0xff]
    %v2382 = vld [vmem:[%s2378 + $0x18] sm:$0xff]
    %v2383 = vld [vmem:[%s2378 + $0x20] sm:$0xff]
    %v2384 = vld [vmem:[%s2378 + $0x28] sm:$0xff]
    %v2385 = vld [vmem:[%s2378 + $0x30] sm:$0x3]
    %2387 = vrot.lane.b32.xlu0 %v618, 78
    %v2388 = vpop.permute.xlu0 %2387
    %v2389 = vsel %vm408, %v2388, 0
    %v2392 = vsel %vm412, %v2385, 0
    %2394 = vmatpush.msra.mxu0 0.0
    %2395 = vmatpush.msra.mxu0 0.0
    %2396 = vmatpush.msra.mxu0 0.0
    %2397 = vmatpush.msra.mxu0 0.0
    %2398 = vmatpush.msra.mxu0 0.0
    %2399 = vmatpush.msra.mxu0 0.0
    %2400 = vmatpush.msra.mxu0 0.0
    %2401 = vmatpush.msra.mxu0 0.0
    %2402 = vmatpush.msra.mxu0 0.0
    %2403 = vmatpush.msra.mxu0 %v2392
    %2404 = vmatpush.msra.mxu0 %v2384
    %2405 = vmatpush.msra.mxu0 %v2383
    %2406 = vmatpush.msra.mxu0 %v2382
    %2407 = vmatpush.msra.mxu0 %v2381
    %2408 = vmatpush.msra.mxu0 %v2380
    %2409 = vmatpush.msra.mxu0 %v2379
    %2410 = vmatmul.f32.gmra.mxu0 %v2389
    %v2411 = vpop.f32.mrf.mxu0
    %v2412 = vadd.f32 0.0, %v2411
    %2413 = vdwg.mxu0
    %v2414 = vadd.f32 %v2377, %v2412
    %s2415 = scalar_lea.vmem %s13, 504
    %v2416 = vld [vmem:[%s2415] sm:$0xff]
    %v2417 = vld [vmem:[%s2415 + $0x8] sm:$0xff]
    %v2418 = vld [vmem:[%s2415 + $0x10] sm:$0xff]
    %v2419 = vld [vmem:[%s2415 + $0x18] sm:$0xff]
    %v2420 = vld [vmem:[%s2415 + $0x20] sm:$0xff]
    %v2421 = vld [vmem:[%s2415 + $0x28] sm:$0xff]
    %v2422 = vld [vmem:[%s2415 + $0x30] sm:$0x3]
    %v2423 = vrot.slane %v618, 1
    %2424 = vrot.lane.b32.xlu0 %v2423, 78
    %v2425 = vpop.permute.xlu0 %2424
    %v2426 = vsel %vm408, %v2425, 0
    %v2429 = vsel %vm412, %v2422, 0
    %2431 = vmatpush.msra.mxu0 0.0
    %2432 = vmatpush.msra.mxu0 0.0
    %2433 = vmatpush.msra.mxu0 0.0
    %2434 = vmatpush.msra.mxu0 0.0
    %2435 = vmatpush.msra.mxu0 0.0
    %2436 = vmatpush.msra.mxu0 0.0
    %2437 = vmatpush.msra.mxu0 0.0
    %2438 = vmatpush.msra.mxu0 0.0
    %2439 = vmatpush.msra.mxu0 0.0
    %2440 = vmatpush.msra.mxu0 %v2429
    %2441 = vmatpush.msra.mxu0 %v2421
    %2442 = vmatpush.msra.mxu0 %v2420
    %2443 = vmatpush.msra.mxu0 %v2419
    %2444 = vmatpush.msra.mxu0 %v2418
    %2445 = vmatpush.msra.mxu0 %v2417
    %2446 = vmatpush.msra.mxu0 %v2416
    %2447 = vmatmul.f32.gmra.mxu0 %v2426
    %v2448 = vpop.f32.mrf.mxu0
    %v2449 = vadd.f32 0.0, %v2448
    %2450 = vdwg.mxu0
    %v2451 = vadd.f32 %v2414, %v2449
    %s2452 = scalar_lea.vmem %s13, 560
    %v2453 = vld [vmem:[%s2452] sm:$0xff]
    %v2454 = vld [vmem:[%s2452 + $0x8] sm:$0xff]
    %v2455 = vld [vmem:[%s2452 + $0x10] sm:$0xff]
    %v2456 = vld [vmem:[%s2452 + $0x18] sm:$0xff]
    %v2457 = vld [vmem:[%s2452 + $0x20] sm:$0xff]
    %v2458 = vld [vmem:[%s2452 + $0x28] sm:$0xff]
    %v2459 = vld [vmem:[%s2452 + $0x30] sm:$0x3]
    %v2460 = vrot.slane %v618, 2
    %2461 = vrot.lane.b32.xlu0 %v2460, 78
    %v2462 = vpop.permute.xlu0 %2461
    %v2463 = vsel %vm408, %v2462, 0
    %v2466 = vsel %vm412, %v2459, 0
    %2468 = vmatpush.msra.mxu0 0.0
    %2469 = vmatpush.msra.mxu0 0.0
    %2470 = vmatpush.msra.mxu0 0.0
    %2471 = vmatpush.msra.mxu0 0.0
    %2472 = vmatpush.msra.mxu0 0.0
    %2473 = vmatpush.msra.mxu0 0.0
    %2474 = vmatpush.msra.mxu0 0.0
    %2475 = vmatpush.msra.mxu0 0.0
    %2476 = vmatpush.msra.mxu0 0.0
    %2477 = vmatpush.msra.mxu0 %v2466
    %2478 = vmatpush.msra.mxu0 %v2458
    %2479 = vmatpush.msra.mxu0 %v2457
    %2480 = vmatpush.msra.mxu0 %v2456
    %2481 = vmatpush.msra.mxu0 %v2455
    %2482 = vmatpush.msra.mxu0 %v2454
    %2483 = vmatpush.msra.mxu0 %v2453
    %2484 = vmatmul.f32.gmra.mxu0 %v2463
    %v2485 = vpop.f32.mrf.mxu0
    %v2486 = vadd.f32 0.0, %v2485
    %2487 = vdwg.mxu0
    %v2488 = vadd.f32 %v2451, %v2486
    %s2489 = scalar_lea.vmem %s13, 616
    %v2490 = vld [vmem:[%s2489] sm:$0xff]
    %v2491 = vld [vmem:[%s2489 + $0x8] sm:$0xff]
    %v2492 = vld [vmem:[%s2489 + $0x10] sm:$0xff]
    %v2493 = vld [vmem:[%s2489 + $0x18] sm:$0xff]
    %v2494 = vld [vmem:[%s2489 + $0x20] sm:$0xff]
    %v2495 = vld [vmem:[%s2489 + $0x28] sm:$0xff]
    %v2496 = vld [vmem:[%s2489 + $0x30] sm:$0x3]
    %v2497 = vrot.slane %v618, 3
    %2498 = vrot.lane.b32.xlu0 %v2497, 78
    %v2499 = vpop.permute.xlu0 %2498
    %v2500 = vsel %vm408, %v2499, 0
    %v2503 = vsel %vm412, %v2496, 0
    %2505 = vmatpush.msra.mxu0 0.0
    %2506 = vmatpush.msra.mxu0 0.0
    %2507 = vmatpush.msra.mxu0 0.0
    %2508 = vmatpush.msra.mxu0 0.0
    %2509 = vmatpush.msra.mxu0 0.0
    %2510 = vmatpush.msra.mxu0 0.0
    %2511 = vmatpush.msra.mxu0 0.0
    %2512 = vmatpush.msra.mxu0 0.0
    %2513 = vmatpush.msra.mxu0 0.0
    %2514 = vmatpush.msra.mxu0 %v2503
    %2515 = vmatpush.msra.mxu0 %v2495
    %2516 = vmatpush.msra.mxu0 %v2494
    %2517 = vmatpush.msra.mxu0 %v2493
    %2518 = vmatpush.msra.mxu0 %v2492
    %2519 = vmatpush.msra.mxu0 %v2491
    %2520 = vmatpush.msra.mxu0 %v2490
    %2521 = vmatmul.f32.gmra.mxu0 %v2500
    %v2522 = vpop.f32.mrf.mxu0
    %v2523 = vadd.f32 0.0, %v2522
    %2524 = vdwg.mxu0
    %v2525 = vadd.f32 %v2488, %v2523
    %s2526 = scalar_lea.vmem %s13, 672
    %v2527 = vld [vmem:[%s2526] sm:$0xff]
    %v2528 = vld [vmem:[%s2526 + $0x8] sm:$0xff]
    %v2529 = vld [vmem:[%s2526 + $0x10] sm:$0xff]
    %v2530 = vld [vmem:[%s2526 + $0x18] sm:$0xff]
    %v2531 = vld [vmem:[%s2526 + $0x20] sm:$0xff]
    %v2532 = vld [vmem:[%s2526 + $0x28] sm:$0xff]
    %v2533 = vld [vmem:[%s2526 + $0x30] sm:$0x3]
    %v2534 = vrot.slane %v618, 4
    %2535 = vrot.lane.b32.xlu0 %v2534, 78
    %v2536 = vpop.permute.xlu0 %2535
    %v2537 = vsel %vm408, %v2536, 0
    %v2540 = vsel %vm412, %v2533, 0
    %2542 = vmatpush.msra.mxu0 0.0
    %2543 = vmatpush.msra.mxu0 0.0
    %2544 = vmatpush.msra.mxu0 0.0
    %2545 = vmatpush.msra.mxu0 0.0
    %2546 = vmatpush.msra.mxu0 0.0
    %2547 = vmatpush.msra.mxu0 0.0
    %2548 = vmatpush.msra.mxu0 0.0
    %2549 = vmatpush.msra.mxu0 0.0
    %2550 = vmatpush.msra.mxu0 0.0
    %2551 = vmatpush.msra.mxu0 %v2540
    %2552 = vmatpush.msra.mxu0 %v2532
    %2553 = vmatpush.msra.mxu0 %v2531
    %2554 = vmatpush.msra.mxu0 %v2530
    %2555 = vmatpush.msra.mxu0 %v2529
    %2556 = vmatpush.msra.mxu0 %v2528
    %2557 = vmatpush.msra.mxu0 %v2527
    %2558 = vmatmul.f32.gmra.mxu0 %v2537
    %v2559 = vpop.f32.mrf.mxu0
    %v2560 = vadd.f32 0.0, %v2559
    %2561 = vdwg.mxu0
    %v2562 = vadd.f32 %v2525, %v2560
    %s2563 = scalar_lea.vmem %s13, 728
    %v2564 = vld [vmem:[%s2563] sm:$0xff]
    %v2565 = vld [vmem:[%s2563 + $0x8] sm:$0xff]
    %v2566 = vld [vmem:[%s2563 + $0x10] sm:$0xff]
    %v2567 = vld [vmem:[%s2563 + $0x18] sm:$0xff]
    %v2568 = vld [vmem:[%s2563 + $0x20] sm:$0xff]
    %v2569 = vld [vmem:[%s2563 + $0x28] sm:$0xff]
    %v2570 = vld [vmem:[%s2563 + $0x30] sm:$0x3]
    %v2571 = vrot.slane %v618, 5
    %2572 = vrot.lane.b32.xlu0 %v2571, 78
    %v2573 = vpop.permute.xlu0 %2572
    %v2574 = vsel %vm408, %v2573, 0
    %v2577 = vsel %vm412, %v2570, 0
    %2579 = vmatpush.msra.mxu0 0.0
    %2580 = vmatpush.msra.mxu0 0.0
    %2581 = vmatpush.msra.mxu0 0.0
    %2582 = vmatpush.msra.mxu0 0.0
    %2583 = vmatpush.msra.mxu0 0.0
    %2584 = vmatpush.msra.mxu0 0.0
    %2585 = vmatpush.msra.mxu0 0.0
    %2586 = vmatpush.msra.mxu0 0.0
    %2587 = vmatpush.msra.mxu0 0.0
    %2588 = vmatpush.msra.mxu0 %v2577
    %2589 = vmatpush.msra.mxu0 %v2569
    %2590 = vmatpush.msra.mxu0 %v2568
    %2591 = vmatpush.msra.mxu0 %v2567
    %2592 = vmatpush.msra.mxu0 %v2566
    %2593 = vmatpush.msra.mxu0 %v2565
    %2594 = vmatpush.msra.mxu0 %v2564
    %2595 = vmatmul.f32.gmra.mxu0 %v2574
    %v2596 = vpop.f32.mrf.mxu0
    %v2597 = vadd.f32 0.0, %v2596
    %2598 = vdwg.mxu0
    %v2599 = vadd.f32 %v2562, %v2597
    %s2600 = scalar_lea.vmem %s13, 784
    %v2601 = vld [vmem:[%s2600] sm:$0xff]
    %v2602 = vld [vmem:[%s2600 + $0x8] sm:$0xff]
    %v2603 = vld [vmem:[%s2600 + $0x10] sm:$0xff]
    %v2604 = vld [vmem:[%s2600 + $0x18] sm:$0xff]
    %v2605 = vld [vmem:[%s2600 + $0x20] sm:$0xff]
    %v2606 = vld [vmem:[%s2600 + $0x28] sm:$0xff]
    %v2607 = vld [vmem:[%s2600 + $0x30] sm:$0x3]
    %v2608 = vrot.slane %v618, 6
    %2609 = vrot.lane.b32.xlu0 %v2608, 78
    %v2610 = vpop.permute.xlu0 %2609
    %v2611 = vsel %vm408, %v2610, 0
    %v2614 = vsel %vm412, %v2607, 0
    %2616 = vmatpush.msra.mxu0 0.0
    %2617 = vmatpush.msra.mxu0 0.0
    %2618 = vmatpush.msra.mxu0 0.0
    %2619 = vmatpush.msra.mxu0 0.0
    %2620 = vmatpush.msra.mxu0 0.0
    %2621 = vmatpush.msra.mxu0 0.0
    %2622 = vmatpush.msra.mxu0 0.0
    %2623 = vmatpush.msra.mxu0 0.0
    %2624 = vmatpush.msra.mxu0 0.0
    %2625 = vmatpush.msra.mxu0 %v2614
    %2626 = vmatpush.msra.mxu0 %v2606
    %2627 = vmatpush.msra.mxu0 %v2605
    %2628 = vmatpush.msra.mxu0 %v2604
    %2629 = vmatpush.msra.mxu0 %v2603
    %2630 = vmatpush.msra.mxu0 %v2602
    %2631 = vmatpush.msra.mxu0 %v2601
    %2632 = vmatmul.f32.gmra.mxu0 %v2611
    %v2633 = vpop.f32.mrf.mxu0
    %v2634 = vadd.f32 0.0, %v2633
    %2635 = vdwg.mxu0
    %v2636 = vadd.f32 %v2599, %v2634
    %s2637 = scalar_lea.vmem %s13, 840
    %v2638 = vld [vmem:[%s2637] sm:$0xff]
    %v2639 = vld [vmem:[%s2637 + $0x8] sm:$0xff]
    %v2640 = vld [vmem:[%s2637 + $0x10] sm:$0xff]
    %v2641 = vld [vmem:[%s2637 + $0x18] sm:$0xff]
    %v2642 = vld [vmem:[%s2637 + $0x20] sm:$0xff]
    %v2643 = vld [vmem:[%s2637 + $0x28] sm:$0xff]
    %v2644 = vld [vmem:[%s2637 + $0x30] sm:$0x3]
    %v2645 = vrot.slane %v618, 7
    %2646 = vrot.lane.b32.xlu0 %v2645, 78
    %v2647 = vpop.permute.xlu0 %2646
    %v2648 = vsel %vm408, %v2647, 0
    %v2651 = vsel %vm412, %v2644, 0
    %2653 = vmatpush.msra.mxu0 0.0
    %2654 = vmatpush.msra.mxu0 0.0
    %2655 = vmatpush.msra.mxu0 0.0
    %2656 = vmatpush.msra.mxu0 0.0
    %2657 = vmatpush.msra.mxu0 0.0
    %2658 = vmatpush.msra.mxu0 0.0
    %2659 = vmatpush.msra.mxu0 0.0
    %2660 = vmatpush.msra.mxu0 0.0
    %2661 = vmatpush.msra.mxu0 0.0
    %2662 = vmatpush.msra.mxu0 %v2651
    %2663 = vmatpush.msra.mxu0 %v2643
    %2664 = vmatpush.msra.mxu0 %v2642
    %2665 = vmatpush.msra.mxu0 %v2641
    %2666 = vmatpush.msra.mxu0 %v2640
    %2667 = vmatpush.msra.mxu0 %v2639
    %2668 = vmatpush.msra.mxu0 %v2638
    %2669 = vmatmul.f32.gmra.mxu0 %v2648
    %v2670 = vpop.f32.mrf.mxu0
    %v2671 = vadd.f32 0.0, %v2670
    %2672 = vdwg.mxu0
    %v2673 = vadd.f32 %v2636, %v2671
    %s2674 = scalar_lea.vmem %s13, 896
    %v2675 = vld [vmem:[%s2674] sm:$0xff]
    %v2676 = vld [vmem:[%s2674 + $0x8] sm:$0xff]
    %v2677 = vld [vmem:[%s2674 + $0x10] sm:$0xff]
    %v2678 = vld [vmem:[%s2674 + $0x18] sm:$0xff]
    %v2679 = vld [vmem:[%s2674 + $0x20] sm:$0xff]
    %v2680 = vld [vmem:[%s2674 + $0x28] sm:$0xff]
    %v2681 = vld [vmem:[%s2674 + $0x30] sm:$0x3]
    %2683 = vrot.lane.b32.xlu0 %v619, 78
    %v2684 = vpop.permute.xlu0 %2683
    %v2685 = vsel %vm408, %v2684, 0
    %v2688 = vsel %vm412, %v2681, 0
    %2690 = vmatpush.msra.mxu0 0.0
    %2691 = vmatpush.msra.mxu0 0.0
    %2692 = vmatpush.msra.mxu0 0.0
    %2693 = vmatpush.msra.mxu0 0.0
    %2694 = vmatpush.msra.mxu0 0.0
    %2695 = vmatpush.msra.mxu0 0.0
    %2696 = vmatpush.msra.mxu0 0.0
    %2697 = vmatpush.msra.mxu0 0.0
    %2698 = vmatpush.msra.mxu0 0.0
    %2699 = vmatpush.msra.mxu0 %v2688
    %2700 = vmatpush.msra.mxu0 %v2680
    %2701 = vmatpush.msra.mxu0 %v2679
    %2702 = vmatpush.msra.mxu0 %v2678
    %2703 = vmatpush.msra.mxu0 %v2677
    %2704 = vmatpush.msra.mxu0 %v2676
    %2705 = vmatpush.msra.mxu0 %v2675
    %2706 = vmatmul.f32.gmra.mxu0 %v2685
    %v2707 = vpop.f32.mrf.mxu0
    %v2708 = vadd.f32 0.0, %v2707
    %2709 = vdwg.mxu0
    %v2710 = vadd.f32 %v2673, %v2708
    %s2711 = scalar_lea.vmem %s13, 952
    %v2712 = vld [vmem:[%s2711] sm:$0xff]
    %v2713 = vld [vmem:[%s2711 + $0x8] sm:$0xff]
    %v2714 = vld [vmem:[%s2711 + $0x10] sm:$0xff]
    %v2715 = vld [vmem:[%s2711 + $0x18] sm:$0xff]
    %v2716 = vld [vmem:[%s2711 + $0x20] sm:$0xff]
    %v2717 = vld [vmem:[%s2711 + $0x28] sm:$0xff]
    %v2718 = vld [vmem:[%s2711 + $0x30] sm:$0x3]
    %v2719 = vrot.slane %v619, 1
    %2720 = vrot.lane.b32.xlu0 %v2719, 78
    %v2721 = vpop.permute.xlu0 %2720
    %v2722 = vsel %vm408, %v2721, 0
    %v2725 = vsel %vm412, %v2718, 0
    %2727 = vmatpush.msra.mxu0 0.0
    %2728 = vmatpush.msra.mxu0 0.0
    %2729 = vmatpush.msra.mxu0 0.0
    %2730 = vmatpush.msra.mxu0 0.0
    %2731 = vmatpush.msra.mxu0 0.0
    %2732 = vmatpush.msra.mxu0 0.0
    %2733 = vmatpush.msra.mxu0 0.0
    %2734 = vmatpush.msra.mxu0 0.0
    %2735 = vmatpush.msra.mxu0 0.0
    %2736 = vmatpush.msra.mxu0 %v2725
    %2737 = vmatpush.msra.mxu0 %v2717
    %2738 = vmatpush.msra.mxu0 %v2716
    %2739 = vmatpush.msra.mxu0 %v2715
    %2740 = vmatpush.msra.mxu0 %v2714
    %2741 = vmatpush.msra.mxu0 %v2713
    %2742 = vmatpush.msra.mxu0 %v2712
    %2743 = vmatmul.f32.gmra.mxu0 %v2722
    %v2744 = vpop.f32.mrf.mxu0
    %v2745 = vadd.f32 0.0, %v2744
    %2746 = vdwg.mxu0
    %v2747 = vadd.f32 %v2710, %v2745
    %s2748 = scalar_lea.vmem %s13, 1008
    %v2749 = vld [vmem:[%s2748] sm:$0xff]
    %v2750 = vld [vmem:[%s2748 + $0x8] sm:$0xff]
    %v2751 = vld [vmem:[%s2748 + $0x10] sm:$0xff]
    %v2752 = vld [vmem:[%s2748 + $0x18] sm:$0xff]
    %v2753 = vld [vmem:[%s2748 + $0x20] sm:$0xff]
    %v2754 = vld [vmem:[%s2748 + $0x28] sm:$0xff]
    %v2755 = vld [vmem:[%s2748 + $0x30] sm:$0x3]
    %v2756 = vrot.slane %v619, 2
    %2757 = vrot.lane.b32.xlu0 %v2756, 78
    %v2758 = vpop.permute.xlu0 %2757
    %v2759 = vsel %vm408, %v2758, 0
    %v2762 = vsel %vm412, %v2755, 0
    %2764 = vmatpush.msra.mxu0 0.0
    %2765 = vmatpush.msra.mxu0 0.0
    %2766 = vmatpush.msra.mxu0 0.0
    %2767 = vmatpush.msra.mxu0 0.0
    %2768 = vmatpush.msra.mxu0 0.0
    %2769 = vmatpush.msra.mxu0 0.0
    %2770 = vmatpush.msra.mxu0 0.0
    %2771 = vmatpush.msra.mxu0 0.0
    %2772 = vmatpush.msra.mxu0 0.0
    %2773 = vmatpush.msra.mxu0 %v2762
    %2774 = vmatpush.msra.mxu0 %v2754
    %2775 = vmatpush.msra.mxu0 %v2753
    %2776 = vmatpush.msra.mxu0 %v2752
    %2777 = vmatpush.msra.mxu0 %v2751
    %2778 = vmatpush.msra.mxu0 %v2750
    %2779 = vmatpush.msra.mxu0 %v2749
    %2780 = vmatmul.f32.gmra.mxu0 %v2759
    %v2781 = vpop.f32.mrf.mxu0
    %v2782 = vadd.f32 0.0, %v2781
    %2783 = vdwg.mxu0
    %v2784 = vadd.f32 %v2747, %v2782
    %s2785 = scalar_lea.vmem %s13, 1064
    %v2786 = vld [vmem:[%s2785] sm:$0xff]
    %v2787 = vld [vmem:[%s2785 + $0x8] sm:$0xff]
    %v2788 = vld [vmem:[%s2785 + $0x10] sm:$0xff]
    %v2789 = vld [vmem:[%s2785 + $0x18] sm:$0xff]
    %v2790 = vld [vmem:[%s2785 + $0x20] sm:$0xff]
    %v2791 = vld [vmem:[%s2785 + $0x28] sm:$0xff]
    %v2792 = vld [vmem:[%s2785 + $0x30] sm:$0x3]
    %v2793 = vrot.slane %v619, 3
    %2794 = vrot.lane.b32.xlu0 %v2793, 78
    %v2795 = vpop.permute.xlu0 %2794
    %v2796 = vsel %vm408, %v2795, 0
    %v2799 = vsel %vm412, %v2792, 0
    %2801 = vmatpush.msra.mxu0 0.0
    %2802 = vmatpush.msra.mxu0 0.0
    %2803 = vmatpush.msra.mxu0 0.0
    %2804 = vmatpush.msra.mxu0 0.0
    %2805 = vmatpush.msra.mxu0 0.0
    %2806 = vmatpush.msra.mxu0 0.0
    %2807 = vmatpush.msra.mxu0 0.0
    %2808 = vmatpush.msra.mxu0 0.0
    %2809 = vmatpush.msra.mxu0 0.0
    %2810 = vmatpush.msra.mxu0 %v2799
    %2811 = vmatpush.msra.mxu0 %v2791
    %2812 = vmatpush.msra.mxu0 %v2790
    %2813 = vmatpush.msra.mxu0 %v2789
    %2814 = vmatpush.msra.mxu0 %v2788
    %2815 = vmatpush.msra.mxu0 %v2787
    %2816 = vmatpush.msra.mxu0 %v2786
    %2817 = vmatmul.f32.gmra.mxu0 %v2796
    %v2818 = vpop.f32.mrf.mxu0
    %v2819 = vadd.f32 0.0, %v2818
    %2820 = vdwg.mxu0
    %v2821 = vadd.f32 %v2784, %v2819
    %v2822 = vld [vmem:[%s1] sm:$0xff]
    %v2823 = vld [vmem:[%s1 + $0x8] sm:$0xff]
    %v2824 = vld [vmem:[%s1 + $0x10] sm:$0xff]
    %v2825 = vld [vmem:[%s1 + $0x18] sm:$0xff]
    %v2826 = vld [vmem:[%s1 + $0x20] sm:$0x3f]
    %v2827 = vld [vmem:[%s15] sm:$0xff]
    %v2828 = vld [vmem:[%s15 + $0x8] sm:$0xff]
    %v2829 = vld [vmem:[%s15 + $0x10] sm:$0xf]
    %v2830 = vld [vmem:[%s16] sm:$0x1]
    %v2832 = vperm.slane %v2830, 0
    %vm2834 = vcmask 162816
    %v2836 = vsel %vm2834, %v2822, 0
    %v2839 = vsel %vm2834, %v2823, 0
    %v2842 = vsel %vm2834, %v2824, 0
    %v2845 = vsel %vm2834, %v2825, 0
    %v2848 = vsel %vm2834, %v2826, 0
    %v2851 = vsel %vm238, %v2829, 0
    %2853 = vmatpush.msra.mxu0 0.0
    %2854 = vmatpush.msra.mxu0 0.0
    %2855 = vmatpush.msra.mxu0 0.0
    %2856 = vmatpush.msra.mxu0 0.0
    %2857 = vmatpush.msra.mxu0 0.0
    %2858 = vmatpush.msra.mxu0 0.0
    %2859 = vmatpush.msra.mxu0 0.0
    %2860 = vmatpush.msra.mxu0 0.0
    %2861 = vmatpush.msra.mxu0 0.0
    %2862 = vmatpush.msra.mxu0 0.0
    %2863 = vmatpush.msra.mxu0 0.0
    %2864 = vmatpush.msra.mxu0 0.0
    %2865 = vmatpush.msra.mxu0 0.0
    %2866 = vmatpush.msra.mxu0 %v2851
    %2867 = vmatpush.msra.mxu0 %v2828
    %2868 = vmatpush.msra.mxu0 %v2827
    %2869 = vmatmul.f32.gmra.mxu0 %v2836
    %v2870 = vpop.f32.mrf.mxu0
    %v2871 = vadd.f32 %v2832, %v2870
    %2872 = vmatmul.f32.gmra.mxu0 %v2839
    %v2873 = vpop.f32.mrf.mxu0
    %v2874 = vadd.f32 %v2832, %v2873
    %2875 = vmatmul.f32.gmra.mxu0 %v2842
    %v2876 = vpop.f32.mrf.mxu0
    %v2877 = vadd.f32 %v2832, %v2876
    %2878 = vmatmul.f32.gmra.mxu0 %v2845
    %v2879 = vpop.f32.mrf.mxu0
    %v2880 = vadd.f32 %v2832, %v2879
    %2881 = vmatmul.f32.gmra.mxu0 %v2848
    %v2882 = vpop.f32.mrf.mxu0
    %v2883 = vadd.f32 %v2832, %v2882
    %2884 = vdwg.mxu0
    %v2885 = vperm.slane %v2821, 0
    %v2886 = vadd.f32 %v2885, %v2871
    %v2887 = vadd.f32 %v2885, %v2874
    %v2888 = vadd.f32 %v2885, %v2877
    %v2889 = vadd.f32 %v2885, %v2880
    %v2890 = vadd.f32 %v2885, %v2883
    %2891 = vst.msk [vmem:[#allocation4] sm:$0xff] %vm80, %v2886
    %2892 = vst.msk [vmem:[#allocation4 + $0x8] sm:$0xff] %vm80, %v2887
    %2893 = vst.msk [vmem:[#allocation4 + $0x10] sm:$0xff] %vm80, %v2888
    %2894 = vst.msk [vmem:[#allocation4 + $0x18] sm:$0xff] %vm80, %v2889
    %vm2895 = vcmask 308224
    %2896 = vst.msk [vmem:[#allocation4 + $0x20] sm:$0x3f] %vm2895, %v2890
    // Predicated region
    $region70: #{lstnet_forward.1} parent=1 // pred_check
      _
    $region71: #{lstnet_forward.1} parent=1 // pred_check_branch
      %2898 = sbr.rel (0) target = $region73
    $region72: #{lstnet_forward.1} parent=1 // pred_region
      %2900 = vsyncadd [#allocation5], 0
      %s2901 = sshll.u32 [#allocation4], 4
      %s2902 = int_to_ptr.vmem [resolvable:$true] %s2901
      %s2903 = sshll.u32 %s17, 4
      %s2904 = int_to_ptr.hbm [resolvable:$true] %s2903
      %2909 = dma.vmem_to_hbm [thread:$0]  %s2902, 640, %s2904, [#allocation5], 128, 128, 8
    $region73: #{lstnet_forward.1} parent=1 // pred_fallthru
      _
    // Predicated region
    $region74: #{lstnet_forward.1} parent=1 // pred_check
      _
    $region75: #{lstnet_forward.1} parent=1 // pred_check_branch
      %2911 = sbr.rel (0) target = $region77
    $region76: #{lstnet_forward.1} parent=1 // pred_region
      %2913 = dma.done [#allocation5], 640
    $region77: #{lstnet_forward.1} parent=1 // pred_fallthru
      _
    %2914 = vsyncpa [#allocation5], 1

</llo_original>
